<compile_context>
chip_gen: v7x
topology: tpu7x:2x2x1
jax: 0.10.0
libtpu: 0.0.40
codegen_flags: <defaults>
</compile_context>

<pallas_src>
import jax
import jax.numpy as jnp
from jax import lax
from jax.experimental import pallas as pl
from jax.experimental.pallas import tpu as pltpu


# ----------------------------------------------------------------------------
# helpers
# ----------------------------------------------------------------------------
def _round_up(x, m):
    return (x + m - 1) // m * m


def _choose_time_block(T, cap=64):
    """Largest time block <= cap that divides T (whole sequence if T <= cap)."""
    if T <= cap:
        return T
    for tb in range(cap, 0, -1):
        if T % tb == 0:
            return tb
    return 1


# ----------------------------------------------------------------------------
# Fused Pallas kernel: input-proj + LSTM1 + LSTM2 + Linear
# ----------------------------------------------------------------------------
def _fused_kernel(e_ref, wih1_ref, b1_ref, whh1_ref,
                  wih2_ref, whh2_ref, b2_ref,
                  wl_ref, bl_ref,
                  h01_ref, c01_ref, h02_ref, c02_ref,
                  out_ref, hn1_ref, cn1_ref, hn2_ref, cn2_ref,
                  h1_sc, c1_sc, h2_sc, c2_sc, gx_sc, y2_sc):
    tb = pl.program_id(0)
    T_blk, Bp, E = e_ref.shape
    H = h1_sc.shape[-1]
    Vp = out_ref.shape[-1]

    # Initialize the recurrent state once, at the first time block.
    @pl.when(tb == 0)
    def _():
        h1_sc[...] = h01_ref[...]
        c1_sc[...] = c01_ref[...]
        h2_sc[...] = h02_ref[...]
        c2_sc[...] = c02_ref[...]

    # Hoisted layer-1 input projection: one well-shaped MXU matmul for the
    # whole time block, (T_blk*Bp, E) @ (E, 4H) + bias.
    e_blk = e_ref[...].reshape(T_blk * Bp, E)
    gx = (jnp.dot(e_blk, wih1_ref[...], preferred_element_type=jnp.float32)
          + b1_ref[...])
    gx_sc[...] = gx.reshape(T_blk, Bp, 4 * H)

    whh1 = whh1_ref[...]
    wih2 = wih2_ref[...]
    whh2 = whh2_ref[...]
    b2 = b2_ref[...]

    def step(t, carry):
        h1 = h1_sc[...]
        c1 = c1_sc[...]
        h2 = h2_sc[...]
        c2 = c2_sc[...]

        # ---- layer 1: only the recurrent matmul is left on the serial path.
        g1 = gx_sc[t] + jnp.dot(h1, whh1, preferred_element_type=jnp.float32)
        i1 = jax.nn.sigmoid(g1[:, 0:H])
        f1 = jax.nn.sigmoid(g1[:, H:2 * H])
        gg1 = jnp.tanh(g1[:, 2 * H:3 * H])
        o1 = jax.nn.sigmoid(g1[:, 3 * H:4 * H])
        c1 = f1 * c1 + i1 * gg1
        h1 = o1 * jnp.tanh(c1)

        # ---- layer 2 (consumes h1 directly from registers; no HBM traffic).
        g2 = (jnp.dot(h1, wih2, preferred_element_type=jnp.float32)
              + jnp.dot(h2, whh2, preferred_element_type=jnp.float32)
              + b2)
        i2 = jax.nn.sigmoid(g2[:, 0:H])
        f2 = jax.nn.sigmoid(g2[:, H:2 * H])
        gg2 = jnp.tanh(g2[:, 2 * H:3 * H])
        o2 = jax.nn.sigmoid(g2[:, 3 * H:4 * H])
        c2 = f2 * c2 + i2 * gg2
        h2 = o2 * jnp.tanh(c2)

        h1_sc[...] = h1
        c1_sc[...] = c1
        h2_sc[...] = h2
        c2_sc[...] = c2
        y2_sc[t] = h2
        return carry

    lax.fori_loop(0, T_blk, step, 0, unroll=(T_blk <= 16))

    # Final Linear for the whole block: one (T_blk*Bp, H) @ (H, Vp) matmul.
    # Vp is a multiple of 128 -> the store below is lane-dense.
    y2 = y2_sc[...].reshape(T_blk * Bp, H)
    logits = (jnp.dot(y2, wl_ref[...], preferred_element_type=jnp.float32)
              + bl_ref[...])
    out_ref[...] = logits.reshape(T_blk, Bp, Vp).astype(out_ref.dtype)

    # Emit (h_n, c_n) of both layers only at the last grid step.
    @pl.when(tb == pl.num_programs(0) - 1)
    def _():
        hn1_ref[...] = h1_sc[...]
        cn1_ref[...] = c1_sc[...]
        hn2_ref[...] = h2_sc[...]
        cn2_ref[...] = c2_sc[...]


def _fused_forward_pallas(e_tm, lstm1, lstm2, linear_w, linear_b,
                          h01, c01, h02, c02):
    """e_tm: (T, Bp, E) f32 time-major, batch already padded to a multiple of 8.
    Returns logits (T, Bp, Vp) with Vp = round_up(V, 128), plus hn/cn of both
    LSTM layers, each (Bp, H)."""
    T, Bp, E = e_tm.shape
    H = lstm1["w_hh"].shape[1]
    G = 4 * H
    V = linear_w.shape[0]
    Vp = _round_up(V, 128)
    T_blk = _choose_time_block(T)
    f32 = jnp.float32

    # PyTorch-style params -> matmul-ready layout (transposed, biases fused).
    wih1_t = jnp.asarray(lstm1["w_ih"], f32).T                       # (E, 4H)
    whh1_t = jnp.asarray(lstm1["w_hh"], f32).T                       # (H, 4H)
    b1 = (jnp.asarray(lstm1["b_ih"], f32)
          + jnp.asarray(lstm1["b_hh"], f32)).reshape(1, G)
    wih2_t = jnp.asarray(lstm2["w_ih"], f32).T                       # (H, 4H)
    whh2_t = jnp.asarray(lstm2["w_hh"], f32).T                       # (H, 4H)
    b2 = (jnp.asarray(lstm2["b_ih"], f32)
          + jnp.asarray(lstm2["b_hh"], f32)).reshape(1, G)
    # Pad the vocab (lane) dim of the classifier to a multiple of 128.
    wl_t = jnp.zeros((H, Vp), f32).at[:, :V].set(jnp.asarray(linear_w, f32).T)
    bl = jnp.zeros((1, Vp), f32).at[:, :V].set(jnp.asarray(linear_b, f32))

    def const2d(shape):
        return pl.BlockSpec(shape, lambda i: (0, 0))

    out_shapes = (jax.ShapeDtypeStruct((T, Bp, Vp), f32),
                  jax.ShapeDtypeStruct((Bp, H), f32),
                  jax.ShapeDtypeStruct((Bp, H), f32),
                  jax.ShapeDtypeStruct((Bp, H), f32),
                  jax.ShapeDtypeStruct((Bp, H), f32))

    return pl.pallas_call(
        _fused_kernel,
        out_shape=out_shapes,
        grid_spec=pltpu.PrefetchScalarGridSpec(
            num_scalar_prefetch=0,
            grid=(T // T_blk,),
            in_specs=[
                pl.BlockSpec((T_blk, Bp, E), lambda i: (i, 0, 0)),   # embeddings
                const2d((E, G)),      # W_ih1^T
                const2d((1, G)),      # b1 (b_ih1 + b_hh1)
                const2d((H, G)),      # W_hh1^T
                const2d((H, G)),      # W_ih2^T
                const2d((H, G)),      # W_hh2^T
                const2d((1, G)),      # b2
                const2d((H, Vp)),     # W_l^T (lane-padded)
                const2d((1, Vp)),     # b_l (lane-padded)
                const2d((Bp, H)),     # h0 layer 1
                const2d((Bp, H)),     # c0 layer 1
                const2d((Bp, H)),     # h0 layer 2
                const2d((Bp, H)),     # c0 layer 2
            ],
            out_specs=(
                pl.BlockSpec((T_blk, Bp, Vp), lambda i: (i, 0, 0)),  # logits
                const2d((Bp, H)), const2d((Bp, H)),                  # hn1, cn1
                const2d((Bp, H)), const2d((Bp, H)),                  # hn2, cn2
            ),
            scratch_shapes=[
                pltpu.VMEM((Bp, H), f32), pltpu.VMEM((Bp, H), f32),  # h1, c1
                pltpu.VMEM((Bp, H), f32), pltpu.VMEM((Bp, H), f32),  # h2, c2
                pltpu.VMEM((T_blk, Bp, G), f32),                     # gates_x block
                pltpu.VMEM((T_blk, Bp, H), f32),                     # y2 block
            ],
        ),
        compiler_params=pltpu.CompilerParams(
            dimension_semantics=("arbitrary",)),   # serial recurrence over time
    )(e_tm, wih1_t, b1, whh1_t, wih2_t, whh2_t, b2, wl_t, bl,
      h01, c01, h02, c02)


# ----------------------------------------------------------------------------
# LSTM_NET_2 forward (matches the PyTorch module, including its quirk that the
# second call uses self.lstm1's weights when hidden2 is provided).
# ----------------------------------------------------------------------------
def lstm_net_2_forward(params, target, hidden1, hidden2):
    """target: (B, T) int32. hidden1/hidden2: None or (h, c), each (1, B, H)."""
    B, T = target.shape
    H = params["lstm1"]["w_hh"].shape[1]
    V = params["l1"]["w"].shape[0]
    Bp = max(8, _round_up(B, 8))     # sublane-pad the batch

    # Embedding lookup (gather), directly time-major: (T, B, E).
    e_tm = jnp.take(params["embedding"], target.T, axis=0).astype(jnp.float32)
    if Bp > B:
        e_tm = jnp.pad(e_tm, ((0, 0), (0, Bp - B), (0, 0)))

    def prep_state(hc):
        if hc is None:
            z = jnp.zeros((Bp, H), jnp.float32)
            return z, z
        h = jnp.asarray(hc[0], jnp.float32)[0]
        c = jnp.asarray(hc[1], jnp.float32)[0]
        if Bp > B:
            h = jnp.pad(h, ((0, Bp - B), (0, 0)))
            c = jnp.pad(c, ((0, Bp - B), (0, 0)))
        return h, c

    h01, c01 = prep_state(hidden1)
    h02, c02 = prep_state(hidden2)

    p1, p2 = params["lstm1"], params["lstm2"]
    # Faithfully replicates the original module's bug: self.lstm1(y1, hidden2)
    # when hidden2 is provided.
    lstm2_params = p2 if hidden2 is None else p1

    logits_p, h1n, c1n, h2n, c2n = _fused_forward_pallas(
        e_tm, p1, lstm2_params, params["l1"]["w"], params["l1"]["b"],
        h01, c01, h02, c02)

    v = jnp.transpose(logits_p[:, :B, :V], (1, 0, 2))      # back to (B, T, V)
    hidden1_out = (h1n[:B][None, ...], c1n[:B][None, ...])
    hidden2_out = (h2n[:B][None, ...], c2n[:B][None, ...])
    return v, hidden1_out, hidden2_out


# ----------------------------------------------------------------------------
# Pure-JAX reference (for self-check), replicating the same module quirk.
# ----------------------------------------------------------------------------
def _lstm_ref(x_tm, w_ih, w_hh, b_ih, b_hh, h0, c0):
    def step(carry, x_t):
        h, c = carry
        gates = x_t @ w_ih.T + b_ih + h @ w_hh.T + b_hh
        i, f, g, o = jnp.split(gates, 4, axis=-1)
        i, f, o = jax.nn.sigmoid(i), jax.nn.sigmoid(f), jax.nn.sigmoid(o)
        g = jnp.tanh(g)
        c = f * c + i * g
        h = o * jnp.tanh(c)
        return (h, c), h
    (hn, cn), ys = jax.lax.scan(step, (h0, c0), x_tm)
    return ys, hn, cn


def _forward_ref(params, target, hidden1=None, hidden2=None):
    B, T = target.shape
    H = params["lstm1"]["w_hh"].shape[1]
    e_tm = jnp.take(params["embedding"], target.T, axis=0).astype(jnp.float32)
    zeros = jnp.zeros((B, H), jnp.float32)
    p1, p2 = params["lstm1"], params["lstm2"]
    h01, c01 = (zeros, zeros) if hidden1 is None else (hidden1[0][0], hidden1[1][0])
    y1, h1, c1 = _lstm_ref(e_tm, p1["w_ih"], p1["w_hh"], p1["b_ih"], p1["b_hh"],
                           h01, c01)
    if hidden2 is None:
        y2, h2, c2 = _lstm_ref(y1, p2["w_ih"], p2["w_hh"], p2["b_ih"], p2["b_hh"],
                               zeros, zeros)
    else:
        y2, h2, c2 = _lstm_ref(y1, p1["w_ih"], p1["w_hh"], p1["b_ih"], p1["b_hh"],
                               hidden2[0][0], hidden2[1][0])
    v_tm = y2 @ params["l1"]["w"].T + params["l1"]["b"]
    return jnp.transpose(v_tm, (1, 0, 2)), (h1, c1), (h2, c2)


# ----------------------------------------------------------------------------
# Deterministic parameter init + demo run
# ----------------------------------------------------------------------------
def init_params(key, n_embed, n_hidden, n_vocab):
    ks = jax.random.split(key, 12)
    s = 0.1

    def rn(k, shape):
        return (s * jax.random.normal(k, shape)).astype(jnp.float32)

    return {
        "embedding": rn(ks[0], (n_vocab, n_embed)),
        "lstm1": {"w_ih": rn(ks[1], (4 * n_hidden, n_embed)),
                  "w_hh": rn(ks[2], (4 * n_hidden, n_hidden)),
                  "b_ih": rn(ks[3], (4 * n_hidden,)),
                  "b_hh": rn(ks[4], (4 * n_hidden,))},
        "lstm2": {"w_ih": rn(ks[5], (4 * n_hidden, n_hidden)),
                  "w_hh": rn(ks[6], (4 * n_hidden, n_hidden)),
                  "b_ih": rn(ks[7], (4 * n_hidden,)),
                  "b_hh": rn(ks[8], (4 * n_hidden,))},
        "l1": {"w": rn(ks[9], (n_vocab, n_hidden)),
               "b": rn(ks[10], (n_vocab,))},
    }


if __name__ == "__main__":
    n_embed, n_hidden, n_vocab = 32, 32, 64
    B, T = 2, 8

    key = jax.random.PRNGKey(0)
    kp, kt = jax.random.split(key)
    params = init_params(kp, n_embed, n_hidden, n_vocab)
    target = jax.random.randint(kt, (B, T), 0, n_vocab, dtype=jnp.int32)

    # Pass 1: no initial hidden state.
    v, hidden1, hidden2 = lstm_net_2_forward(params, target, None, None)
    jax.block_until_ready((v, hidden1, hidden2))

    v_ref, (h1r, c1r), (h2r, c2r) = _forward_ref(params, target)
    assert v.shape == (B, T, n_vocab)
    assert hidden1[0].shape == (1, B, n_hidden) and hidden2[1].shape == (1, B, n_hidden)
    assert jnp.allclose(v, v_ref, atol=2e-4, rtol=1e-3)
    assert jnp.allclose(hidden1[0][0], h1r, atol=2e-4, rtol=1e-3)
    assert jnp.allclose(hidden1[1][0], c1r, atol=2e-4, rtol=1e-3)
    assert jnp.allclose(hidden2[0][0], h2r, atol=2e-4, rtol=1e-3)
    assert jnp.allclose(hidden2[1][0], c2r, atol=2e-4, rtol=1e-3)

    # Pass 2: with the hidden states from pass 1 (exercises the module's
    # hidden2-provided branch, including its lstm1-weight quirk).
    v2, hid1b, hid2b = lstm_net_2_forward(params, target, hidden1, hidden2)
    jax.block_until_ready((v2, hid1b, hid2b))
    v2_ref, (h1r2, c1r2), (h2r2, c2r2) = _forward_ref(params, target,
                                                      hidden1, hidden2)
    assert jnp.allclose(v2, v2_ref, atol=2e-4, rtol=1e-3)
    assert jnp.allclose(hid1b[0][0], h1r2, atol=2e-4, rtol=1e-3)
    assert jnp.allclose(hid2b[1][0], c2r2, atol=2e-4, rtol=1e-3)

    print("KERNEL_OK")
</pallas_src>

<mosaic_0001>
module attributes {stable_mosaic.version = 11 : i64} {
  func.func @_fused_kernel(%arg0: i32, %arg1: memref<8x8x32xf32, #tpu.memory_space<vmem>>, %arg2: memref<32x128xf32, #tpu.memory_space<vmem>>, %arg3: memref<1x128xf32, #tpu.memory_space<vmem>>, %arg4: memref<32x128xf32, #tpu.memory_space<vmem>>, %arg5: memref<32x128xf32, #tpu.memory_space<vmem>>, %arg6: memref<32x128xf32, #tpu.memory_space<vmem>>, %arg7: memref<1x128xf32, #tpu.memory_space<vmem>>, %arg8: memref<32x128xf32, #tpu.memory_space<vmem>>, %arg9: memref<1x128xf32, #tpu.memory_space<vmem>>, %arg10: memref<8x32xf32, #tpu.memory_space<vmem>>, %arg11: memref<8x32xf32, #tpu.memory_space<vmem>>, %arg12: memref<8x32xf32, #tpu.memory_space<vmem>>, %arg13: memref<8x32xf32, #tpu.memory_space<vmem>>, %arg14: memref<8x8x128xf32, #tpu.memory_space<vmem>>, %arg15: memref<8x32xf32, #tpu.memory_space<vmem>>, %arg16: memref<8x32xf32, #tpu.memory_space<vmem>>, %arg17: memref<8x32xf32, #tpu.memory_space<vmem>>, %arg18: memref<8x32xf32, #tpu.memory_space<vmem>>, %arg19: memref<8x32xf32, #tpu.memory_space<vmem>>, %arg20: memref<8x32xf32, #tpu.memory_space<vmem>>, %arg21: memref<8x32xf32, #tpu.memory_space<vmem>>, %arg22: memref<8x32xf32, #tpu.memory_space<vmem>>, %arg23: memref<8x8x128xf32, #tpu.memory_space<vmem>>, %arg24: memref<8x8x32xf32, #tpu.memory_space<vmem>>) attributes {dimension_semantics = [#tpu.dimension_semantics<arbitrary>], iteration_bounds = array<i64: 1>, scalar_prefetch = 0 : i64, scratch_operands = 6 : i64, tpu.core_type = #tpu.core_type<tc>, window_params = [{transform_indices = @transform_0, window_bounds = array<i64: 8, 8, 32>}, {pipeline_mode = #tpu.pipeline_mode<synchronous>, transform_indices = @transform_1, window_bounds = array<i64: 32, 128>}, {pipeline_mode = #tpu.pipeline_mode<synchronous>, transform_indices = @transform_2, window_bounds = array<i64: 1, 128>}, {pipeline_mode = #tpu.pipeline_mode<synchronous>, transform_indices = @transform_3, window_bounds = array<i64: 32, 128>}, {pipeline_mode = #tpu.pipeline_mode<synchronous>, transform_indices = @transform_4, window_bounds = array<i64: 32, 128>}, {pipeline_mode = #tpu.pipeline_mode<synchronous>, transform_indices = @transform_5, window_bounds = array<i64: 32, 128>}, {pipeline_mode = #tpu.pipeline_mode<synchronous>, transform_indices = @transform_6, window_bounds = array<i64: 1, 128>}, {pipeline_mode = #tpu.pipeline_mode<synchronous>, transform_indices = @transform_7, window_bounds = array<i64: 32, 128>}, {pipeline_mode = #tpu.pipeline_mode<synchronous>, transform_indices = @transform_8, window_bounds = array<i64: 1, 128>}, {pipeline_mode = #tpu.pipeline_mode<synchronous>, transform_indices = @transform_9, window_bounds = array<i64: 8, 32>}, {pipeline_mode = #tpu.pipeline_mode<synchronous>, transform_indices = @transform_10, window_bounds = array<i64: 8, 32>}, {pipeline_mode = #tpu.pipeline_mode<synchronous>, transform_indices = @transform_11, window_bounds = array<i64: 8, 32>}, {pipeline_mode = #tpu.pipeline_mode<synchronous>, transform_indices = @transform_12, window_bounds = array<i64: 8, 32>}, {transform_indices = @transform_13, window_bounds = array<i64: 8, 8, 128>}, {pipeline_mode = #tpu.pipeline_mode<synchronous>, transform_indices = @transform_14, window_bounds = array<i64: 8, 32>}, {pipeline_mode = #tpu.pipeline_mode<synchronous>, transform_indices = @transform_15, window_bounds = array<i64: 8, 32>}, {pipeline_mode = #tpu.pipeline_mode<synchronous>, transform_indices = @transform_16, window_bounds = array<i64: 8, 32>}, {pipeline_mode = #tpu.pipeline_mode<synchronous>, transform_indices = @transform_17, window_bounds = array<i64: 8, 32>}]} {
    %c0_i32 = arith.constant 0 : i32
    %0 = arith.cmpi eq, %arg0, %c0_i32 : i32
    %1 = arith.extui %0 : i1 to i32
    %c0_i32_0 = arith.constant 0 : i32
    %2 = arith.cmpi ne, %1, %c0_i32_0 : i32
    scf.if %2 {
      %c0_264 = arith.constant 0 : index
      %c0_265 = arith.constant 0 : index
      %604 = vector.load %arg10[%c0_264, %c0_265] : memref<8x32xf32, #tpu.memory_space<vmem>>, vector<8x32xf32>
      %c0_266 = arith.constant 0 : index
      %c0_267 = arith.constant 0 : index
      %605 = vector.load %arg19[%c0_266, %c0_267] : memref<8x32xf32, #tpu.memory_space<vmem>>, vector<8x32xf32>
      tpu.vector_store %arg19[%c0_266, %c0_267], %604 {strides = array<i32>} : memref<8x32xf32, #tpu.memory_space<vmem>>, vector<8x32xf32>,
      %c0_268 = arith.constant 0 : index
      %c0_269 = arith.constant 0 : index
      %606 = vector.load %arg11[%c0_268, %c0_269] : memref<8x32xf32, #tpu.memory_space<vmem>>, vector<8x32xf32>
      %c0_270 = arith.constant 0 : index
      %c0_271 = arith.constant 0 : index
      %607 = vector.load %arg20[%c0_270, %c0_271] : memref<8x32xf32, #tpu.memory_space<vmem>>, vector<8x32xf32>
      tpu.vector_store %arg20[%c0_270, %c0_271], %606 {strides = array<i32>} : memref<8x32xf32, #tpu.memory_space<vmem>>, vector<8x32xf32>,
      %c0_272 = arith.constant 0 : index
      %c0_273 = arith.constant 0 : index
      %608 = vector.load %arg12[%c0_272, %c0_273] : memref<8x32xf32, #tpu.memory_space<vmem>>, vector<8x32xf32>
      %c0_274 = arith.constant 0 : index
      %c0_275 = arith.constant 0 : index
      %609 = vector.load %arg21[%c0_274, %c0_275] : memref<8x32xf32, #tpu.memory_space<vmem>>, vector<8x32xf32>
      tpu.vector_store %arg21[%c0_274, %c0_275], %608 {strides = array<i32>} : memref<8x32xf32, #tpu.memory_space<vmem>>, vector<8x32xf32>,
      %c0_276 = arith.constant 0 : index
      %c0_277 = arith.constant 0 : index
      %610 = vector.load %arg13[%c0_276, %c0_277] : memref<8x32xf32, #tpu.memory_space<vmem>>, vector<8x32xf32>
      %c0_278 = arith.constant 0 : index
      %c0_279 = arith.constant 0 : index
      %611 = vector.load %arg22[%c0_278, %c0_279] : memref<8x32xf32, #tpu.memory_space<vmem>>, vector<8x32xf32>
      tpu.vector_store %arg22[%c0_278, %c0_279], %610 {strides = array<i32>} : memref<8x32xf32, #tpu.memory_space<vmem>>, vector<8x32xf32>,
    } else {
    }
    %c0 = arith.constant 0 : index
    %c0_1 = arith.constant 0 : index
    %c0_2 = arith.constant 0 : index
    %3 = vector.load %arg1[%c0, %c0_1, %c0_2] : memref<8x8x32xf32, #tpu.memory_space<vmem>>, vector<8x8x32xf32>
    %4 = vector.shape_cast %3 : vector<8x8x32xf32> to vector<64x32xf32>
    %c0_3 = arith.constant 0 : index
    %c0_4 = arith.constant 0 : index
    %5 = vector.load %arg2[%c0_3, %c0_4] : memref<32x128xf32, #tpu.memory_space<vmem>>, vector<32x128xf32>
    %cst = arith.constant dense<0.000000e+00> : vector<64x128xf32>
    %6 = tpu.matmul %4, %5, %cst {dimension_numbers = #tpu.dot_dimension_numbers<[1], [0], [0], [1], [0, 0, 1, 1], [], []>} : vector<64x32xf32>, vector<32x128xf32>, vector<64x128xf32> -> vector<64x128xf32>
    %c0_5 = arith.constant 0 : index
    %c0_6 = arith.constant 0 : index
    %7 = vector.load %arg3[%c0_5, %c0_6] : memref<1x128xf32, #tpu.memory_space<vmem>>, vector<1x128xf32>
    %8 = vector.broadcast %7 : vector<1x128xf32> to vector<64x128xf32>
    %9 = arith.addf %6, %8 : vector<64x128xf32>
    %10 = vector.shape_cast %9 : vector<64x128xf32> to vector<8x8x128xf32>
    %c0_7 = arith.constant 0 : index
    %c0_8 = arith.constant 0 : index
    %c0_9 = arith.constant 0 : index
    %11 = vector.load %arg23[%c0_7, %c0_8, %c0_9] : memref<8x8x128xf32, #tpu.memory_space<vmem>>, vector<8x8x128xf32>
    tpu.vector_store %arg23[%c0_7, %c0_8, %c0_9], %10 {strides = array<i32>} : memref<8x8x128xf32, #tpu.memory_space<vmem>>, vector<8x8x128xf32>,
    %c0_10 = arith.constant 0 : index
    %c0_11 = arith.constant 0 : index
    %12 = vector.load %arg4[%c0_10, %c0_11] : memref<32x128xf32, #tpu.memory_space<vmem>>, vector<32x128xf32>
    %c0_12 = arith.constant 0 : index
    %c0_13 = arith.constant 0 : index
    %13 = vector.load %arg5[%c0_12, %c0_13] : memref<32x128xf32, #tpu.memory_space<vmem>>, vector<32x128xf32>
    %c0_14 = arith.constant 0 : index
    %c0_15 = arith.constant 0 : index
    %14 = vector.load %arg6[%c0_14, %c0_15] : memref<32x128xf32, #tpu.memory_space<vmem>>, vector<32x128xf32>
    %c0_16 = arith.constant 0 : index
    %c0_17 = arith.constant 0 : index
    %15 = vector.load %arg7[%c0_16, %c0_17] : memref<1x128xf32, #tpu.memory_space<vmem>>, vector<1x128xf32>
    %c0_i32_18 = arith.constant 0 : i32
    %c0_19 = arith.constant 0 : index
    %c0_20 = arith.constant 0 : index
    %16 = vector.load %arg19[%c0_19, %c0_20] : memref<8x32xf32, #tpu.memory_space<vmem>>, vector<8x32xf32>
    %c0_21 = arith.constant 0 : index
    %c0_22 = arith.constant 0 : index
    %17 = vector.load %arg20[%c0_21, %c0_22] : memref<8x32xf32, #tpu.memory_space<vmem>>, vector<8x32xf32>
    %c0_23 = arith.constant 0 : index
    %c0_24 = arith.constant 0 : index
    %18 = vector.load %arg21[%c0_23, %c0_24] : memref<8x32xf32, #tpu.memory_space<vmem>>, vector<8x32xf32>
    %c0_25 = arith.constant 0 : index
    %c0_26 = arith.constant 0 : index
    %19 = vector.load %arg22[%c0_25, %c0_26] : memref<8x32xf32, #tpu.memory_space<vmem>>, vector<8x32xf32>
    %20 = arith.index_cast %c0_i32_18 : i32 to index
    %c0_27 = arith.constant 0 : index
    %c0_28 = arith.constant 0 : index
    %21 = vector.load %arg23[%20, %c0_27, %c0_28] : memref<8x8x128xf32, #tpu.memory_space<vmem>>, vector<1x8x128xf32>
    %22 = vector.shape_cast %21 : vector<1x8x128xf32> to vector<8x128xf32>
    %cst_29 = arith.constant dense<0.000000e+00> : vector<8x128xf32>
    %23 = tpu.matmul %16, %12, %cst_29 {dimension_numbers = #tpu.dot_dimension_numbers<[1], [0], [0], [1], [0, 0, 1, 1], [], []>} : vector<8x32xf32>, vector<32x128xf32>, vector<8x128xf32> -> vector<8x128xf32>
    %24 = arith.addf %22, %23 : vector<8x128xf32>
    %25 = vector.extract_strided_slice %24 {offsets = [0, 0], sizes = [8, 32], strides = [1, 1]} : vector<8x128xf32> to vector<8x32xf32>
    %26 = arith.negf %25 : vector<8x32xf32>
    %27 = math.exp %26 : vector<8x32xf32>
    %cst_30 = arith.constant 1.000000e+00 : f32
    %28 = vector.broadcast %cst_30 : f32 to vector<8x32xf32>
    %29 = arith.addf %28, %27 : vector<8x32xf32>
    %30 = arith.divf %28, %29 : vector<8x32xf32>
    %31 = vector.extract_strided_slice %24 {offsets = [0, 32], sizes = [8, 32], strides = [1, 1]} : vector<8x128xf32> to vector<8x32xf32>
    %32 = arith.negf %31 : vector<8x32xf32>
    %33 = math.exp %32 : vector<8x32xf32>
    %cst_31 = arith.constant 1.000000e+00 : f32
    %34 = vector.broadcast %cst_31 : f32 to vector<8x32xf32>
    %35 = arith.addf %34, %33 : vector<8x32xf32>
    %36 = arith.divf %34, %35 : vector<8x32xf32>
    %37 = vector.extract_strided_slice %24 {offsets = [0, 64], sizes = [8, 32], strides = [1, 1]} : vector<8x128xf32> to vector<8x32xf32>
    %38 = math.tanh %37 : vector<8x32xf32>
    %39 = vector.extract_strided_slice %24 {offsets = [0, 96], sizes = [8, 32], strides = [1, 1]} : vector<8x128xf32> to vector<8x32xf32>
    %40 = arith.negf %39 : vector<8x32xf32>
    %41 = math.exp %40 : vector<8x32xf32>
    %cst_32 = arith.constant 1.000000e+00 : f32
    %42 = vector.broadcast %cst_32 : f32 to vector<8x32xf32>
    %43 = arith.addf %42, %41 : vector<8x32xf32>
    %44 = arith.divf %42, %43 : vector<8x32xf32>
    %45 = arith.mulf %36, %17 : vector<8x32xf32>
    %46 = arith.mulf %30, %38 : vector<8x32xf32>
    %47 = arith.addf %45, %46 : vector<8x32xf32>
    %48 = math.tanh %47 : vector<8x32xf32>
    %49 = arith.mulf %44, %48 : vector<8x32xf32>
    %cst_33 = arith.constant dense<0.000000e+00> : vector<8x128xf32>
    %50 = tpu.matmul %49, %13, %cst_33 {dimension_numbers = #tpu.dot_dimension_numbers<[1], [0], [0], [1], [0, 0, 1, 1], [], []>} : vector<8x32xf32>, vector<32x128xf32>, vector<8x128xf32> -> vector<8x128xf32>
    %cst_34 = arith.constant dense<0.000000e+00> : vector<8x128xf32>
    %51 = tpu.matmul %18, %14, %cst_34 {dimension_numbers = #tpu.dot_dimension_numbers<[1], [0], [0], [1], [0, 0, 1, 1], [], []>} : vector<8x32xf32>, vector<32x128xf32>, vector<8x128xf32> -> vector<8x128xf32>
    %52 = arith.addf %50, %51 : vector<8x128xf32>
    %53 = vector.broadcast %15 : vector<1x128xf32> to vector<8x128xf32>
    %54 = arith.addf %52, %53 : vector<8x128xf32>
    %55 = vector.extract_strided_slice %54 {offsets = [0, 0], sizes = [8, 32], strides = [1, 1]} : vector<8x128xf32> to vector<8x32xf32>
    %56 = arith.negf %55 : vector<8x32xf32>
    %57 = math.exp %56 : vector<8x32xf32>
    %cst_35 = arith.constant 1.000000e+00 : f32
    %58 = vector.broadcast %cst_35 : f32 to vector<8x32xf32>
    %59 = arith.addf %58, %57 : vector<8x32xf32>
    %60 = arith.divf %58, %59 : vector<8x32xf32>
    %61 = vector.extract_strided_slice %54 {offsets = [0, 32], sizes = [8, 32], strides = [1, 1]} : vector<8x128xf32> to vector<8x32xf32>
    %62 = arith.negf %61 : vector<8x32xf32>
    %63 = math.exp %62 : vector<8x32xf32>
    %cst_36 = arith.constant 1.000000e+00 : f32
    %64 = vector.broadcast %cst_36 : f32 to vector<8x32xf32>
    %65 = arith.addf %64, %63 : vector<8x32xf32>
    %66 = arith.divf %64, %65 : vector<8x32xf32>
    %67 = vector.extract_strided_slice %54 {offsets = [0, 64], sizes = [8, 32], strides = [1, 1]} : vector<8x128xf32> to vector<8x32xf32>
    %68 = math.tanh %67 : vector<8x32xf32>
    %69 = vector.extract_strided_slice %54 {offsets = [0, 96], sizes = [8, 32], strides = [1, 1]} : vector<8x128xf32> to vector<8x32xf32>
    %70 = arith.negf %69 : vector<8x32xf32>
    %71 = math.exp %70 : vector<8x32xf32>
    %cst_37 = arith.constant 1.000000e+00 : f32
    %72 = vector.broadcast %cst_37 : f32 to vector<8x32xf32>
    %73 = arith.addf %72, %71 : vector<8x32xf32>
    %74 = arith.divf %72, %73 : vector<8x32xf32>
    %75 = arith.mulf %66, %19 : vector<8x32xf32>
    %76 = arith.mulf %60, %68 : vector<8x32xf32>
    %77 = arith.addf %75, %76 : vector<8x32xf32>
    %78 = math.tanh %77 : vector<8x32xf32>
    %79 = arith.mulf %74, %78 : vector<8x32xf32>
    %c0_38 = arith.constant 0 : index
    %c0_39 = arith.constant 0 : index
    %80 = vector.load %arg19[%c0_38, %c0_39] : memref<8x32xf32, #tpu.memory_space<vmem>>, vector<8x32xf32>
    tpu.vector_store %arg19[%c0_38, %c0_39], %49 {strides = array<i32>} : memref<8x32xf32, #tpu.memory_space<vmem>>, vector<8x32xf32>,
    %c0_40 = arith.constant 0 : index
    %c0_41 = arith.constant 0 : index
    %81 = vector.load %arg20[%c0_40, %c0_41] : memref<8x32xf32, #tpu.memory_space<vmem>>, vector<8x32xf32>
    tpu.vector_store %arg20[%c0_40, %c0_41], %47 {strides = array<i32>} : memref<8x32xf32, #tpu.memory_space<vmem>>, vector<8x32xf32>,
    %c0_42 = arith.constant 0 : index
    %c0_43 = arith.constant 0 : index
    %82 = vector.load %arg21[%c0_42, %c0_43] : memref<8x32xf32, #tpu.memory_space<vmem>>, vector<8x32xf32>
    tpu.vector_store %arg21[%c0_42, %c0_43], %79 {strides = array<i32>} : memref<8x32xf32, #tpu.memory_space<vmem>>, vector<8x32xf32>,
    %c0_44 = arith.constant 0 : index
    %c0_45 = arith.constant 0 : index
    %83 = vector.load %arg22[%c0_44, %c0_45] : memref<8x32xf32, #tpu.memory_space<vmem>>, vector<8x32xf32>
    tpu.vector_store %arg22[%c0_44, %c0_45], %77 {strides = array<i32>} : memref<8x32xf32, #tpu.memory_space<vmem>>, vector<8x32xf32>,
    %84 = arith.index_cast %c0_i32_18 : i32 to index
    %c0_46 = arith.constant 0 : index
    %c0_47 = arith.constant 0 : index
    %85 = vector.load %arg24[%84, %c0_46, %c0_47] : memref<8x8x32xf32, #tpu.memory_space<vmem>>, vector<1x8x32xf32>
    %86 = vector.shape_cast %85 : vector<1x8x32xf32> to vector<8x32xf32>
    %87 = vector.shape_cast %79 : vector<8x32xf32> to vector<1x8x32xf32>
    tpu.vector_store %arg24[%84, %c0_46, %c0_47], %87 {strides = array<i32>} : memref<8x8x32xf32, #tpu.memory_space<vmem>>, vector<1x8x32xf32>,
    %c1_i32 = arith.constant 1 : i32
    %c0_48 = arith.constant 0 : index
    %c0_49 = arith.constant 0 : index
    %88 = vector.load %arg19[%c0_48, %c0_49] : memref<8x32xf32, #tpu.memory_space<vmem>>, vector<8x32xf32>
    %c0_50 = arith.constant 0 : index
    %c0_51 = arith.constant 0 : index
    %89 = vector.load %arg20[%c0_50, %c0_51] : memref<8x32xf32, #tpu.memory_space<vmem>>, vector<8x32xf32>
    %c0_52 = arith.constant 0 : index
    %c0_53 = arith.constant 0 : index
    %90 = vector.load %arg21[%c0_52, %c0_53] : memref<8x32xf32, #tpu.memory_space<vmem>>, vector<8x32xf32>
    %c0_54 = arith.constant 0 : index
    %c0_55 = arith.constant 0 : index
    %91 = vector.load %arg22[%c0_54, %c0_55] : memref<8x32xf32, #tpu.memory_space<vmem>>, vector<8x32xf32>
    %92 = arith.index_cast %c1_i32 : i32 to index
    %c0_56 = arith.constant 0 : index
    %c0_57 = arith.constant 0 : index
    %93 = vector.load %arg23[%92, %c0_56, %c0_57] : memref<8x8x128xf32, #tpu.memory_space<vmem>>, vector<1x8x128xf32>
    %94 = vector.shape_cast %93 : vector<1x8x128xf32> to vector<8x128xf32>
    %cst_58 = arith.constant dense<0.000000e+00> : vector<8x128xf32>
    %95 = tpu.matmul %88, %12, %cst_58 {dimension_numbers = #tpu.dot_dimension_numbers<[1], [0], [0], [1], [0, 0, 1, 1], [], []>} : vector<8x32xf32>, vector<32x128xf32>, vector<8x128xf32> -> vector<8x128xf32>
    %96 = arith.addf %94, %95 : vector<8x128xf32>
    %97 = vector.extract_strided_slice %96 {offsets = [0, 0], sizes = [8, 32], strides = [1, 1]} : vector<8x128xf32> to vector<8x32xf32>
    %98 = arith.negf %97 : vector<8x32xf32>
    %99 = math.exp %98 : vector<8x32xf32>
    %cst_59 = arith.constant 1.000000e+00 : f32
    %100 = vector.broadcast %cst_59 : f32 to vector<8x32xf32>
    %101 = arith.addf %100, %99 : vector<8x32xf32>
    %102 = arith.divf %100, %101 : vector<8x32xf32>
    %103 = vector.extract_strided_slice %96 {offsets = [0, 32], sizes = [8, 32], strides = [1, 1]} : vector<8x128xf32> to vector<8x32xf32>
    %104 = arith.negf %103 : vector<8x32xf32>
    %105 = math.exp %104 : vector<8x32xf32>
    %cst_60 = arith.constant 1.000000e+00 : f32
    %106 = vector.broadcast %cst_60 : f32 to vector<8x32xf32>
    %107 = arith.addf %106, %105 : vector<8x32xf32>
    %108 = arith.divf %106, %107 : vector<8x32xf32>
    %109 = vector.extract_strided_slice %96 {offsets = [0, 64], sizes = [8, 32], strides = [1, 1]} : vector<8x128xf32> to vector<8x32xf32>
    %110 = math.tanh %109 : vector<8x32xf32>
    %111 = vector.extract_strided_slice %96 {offsets = [0, 96], sizes = [8, 32], strides = [1, 1]} : vector<8x128xf32> to vector<8x32xf32>
    %112 = arith.negf %111 : vector<8x32xf32>
    %113 = math.exp %112 : vector<8x32xf32>
    %cst_61 = arith.constant 1.000000e+00 : f32
    %114 = vector.broadcast %cst_61 : f32 to vector<8x32xf32>
    %115 = arith.addf %114, %113 : vector<8x32xf32>
    %116 = arith.divf %114, %115 : vector<8x32xf32>
    %117 = arith.mulf %108, %89 : vector<8x32xf32>
    %118 = arith.mulf %102, %110 : vector<8x32xf32>
    %119 = arith.addf %117, %118 : vector<8x32xf32>
    %120 = math.tanh %119 : vector<8x32xf32>
    %121 = arith.mulf %116, %120 : vector<8x32xf32>
    %cst_62 = arith.constant dense<0.000000e+00> : vector<8x128xf32>
    %122 = tpu.matmul %121, %13, %cst_62 {dimension_numbers = #tpu.dot_dimension_numbers<[1], [0], [0], [1], [0, 0, 1, 1], [], []>} : vector<8x32xf32>, vector<32x128xf32>, vector<8x128xf32> -> vector<8x128xf32>
    %cst_63 = arith.constant dense<0.000000e+00> : vector<8x128xf32>
    %123 = tpu.matmul %90, %14, %cst_63 {dimension_numbers = #tpu.dot_dimension_numbers<[1], [0], [0], [1], [0, 0, 1, 1], [], []>} : vector<8x32xf32>, vector<32x128xf32>, vector<8x128xf32> -> vector<8x128xf32>
    %124 = arith.addf %122, %123 : vector<8x128xf32>
    %125 = vector.broadcast %15 : vector<1x128xf32> to vector<8x128xf32>
    %126 = arith.addf %124, %125 : vector<8x128xf32>
    %127 = vector.extract_strided_slice %126 {offsets = [0, 0], sizes = [8, 32], strides = [1, 1]} : vector<8x128xf32> to vector<8x32xf32>
    %128 = arith.negf %127 : vector<8x32xf32>
    %129 = math.exp %128 : vector<8x32xf32>
    %cst_64 = arith.constant 1.000000e+00 : f32
    %130 = vector.broadcast %cst_64 : f32 to vector<8x32xf32>
    %131 = arith.addf %130, %129 : vector<8x32xf32>
    %132 = arith.divf %130, %131 : vector<8x32xf32>
    %133 = vector.extract_strided_slice %126 {offsets = [0, 32], sizes = [8, 32], strides = [1, 1]} : vector<8x128xf32> to vector<8x32xf32>
    %134 = arith.negf %133 : vector<8x32xf32>
    %135 = math.exp %134 : vector<8x32xf32>
    %cst_65 = arith.constant 1.000000e+00 : f32
    %136 = vector.broadcast %cst_65 : f32 to vector<8x32xf32>
    %137 = arith.addf %136, %135 : vector<8x32xf32>
    %138 = arith.divf %136, %137 : vector<8x32xf32>
    %139 = vector.extract_strided_slice %126 {offsets = [0, 64], sizes = [8, 32], strides = [1, 1]} : vector<8x128xf32> to vector<8x32xf32>
    %140 = math.tanh %139 : vector<8x32xf32>
    %141 = vector.extract_strided_slice %126 {offsets = [0, 96], sizes = [8, 32], strides = [1, 1]} : vector<8x128xf32> to vector<8x32xf32>
    %142 = arith.negf %141 : vector<8x32xf32>
    %143 = math.exp %142 : vector<8x32xf32>
    %cst_66 = arith.constant 1.000000e+00 : f32
    %144 = vector.broadcast %cst_66 : f32 to vector<8x32xf32>
    %145 = arith.addf %144, %143 : vector<8x32xf32>
    %146 = arith.divf %144, %145 : vector<8x32xf32>
    %147 = arith.mulf %138, %91 : vector<8x32xf32>
    %148 = arith.mulf %132, %140 : vector<8x32xf32>
    %149 = arith.addf %147, %148 : vector<8x32xf32>
    %150 = math.tanh %149 : vector<8x32xf32>
    %151 = arith.mulf %146, %150 : vector<8x32xf32>
    %c0_67 = arith.constant 0 : index
    %c0_68 = arith.constant 0 : index
    %152 = vector.load %arg19[%c0_67, %c0_68] : memref<8x32xf32, #tpu.memory_space<vmem>>, vector<8x32xf32>
    tpu.vector_store %arg19[%c0_67, %c0_68], %121 {strides = array<i32>} : memref<8x32xf32, #tpu.memory_space<vmem>>, vector<8x32xf32>,
    %c0_69 = arith.constant 0 : index
    %c0_70 = arith.constant 0 : index
    %153 = vector.load %arg20[%c0_69, %c0_70] : memref<8x32xf32, #tpu.memory_space<vmem>>, vector<8x32xf32>
    tpu.vector_store %arg20[%c0_69, %c0_70], %119 {strides = array<i32>} : memref<8x32xf32, #tpu.memory_space<vmem>>, vector<8x32xf32>,
    %c0_71 = arith.constant 0 : index
    %c0_72 = arith.constant 0 : index
    %154 = vector.load %arg21[%c0_71, %c0_72] : memref<8x32xf32, #tpu.memory_space<vmem>>, vector<8x32xf32>
    tpu.vector_store %arg21[%c0_71, %c0_72], %151 {strides = array<i32>} : memref<8x32xf32, #tpu.memory_space<vmem>>, vector<8x32xf32>,
    %c0_73 = arith.constant 0 : index
    %c0_74 = arith.constant 0 : index
    %155 = vector.load %arg22[%c0_73, %c0_74] : memref<8x32xf32, #tpu.memory_space<vmem>>, vector<8x32xf32>
    tpu.vector_store %arg22[%c0_73, %c0_74], %149 {strides = array<i32>} : memref<8x32xf32, #tpu.memory_space<vmem>>, vector<8x32xf32>,
    %156 = arith.index_cast %c1_i32 : i32 to index
    %c0_75 = arith.constant 0 : index
    %c0_76 = arith.constant 0 : index
    %157 = vector.load %arg24[%156, %c0_75, %c0_76] : memref<8x8x32xf32, #tpu.memory_space<vmem>>, vector<1x8x32xf32>
    %158 = vector.shape_cast %157 : vector<1x8x32xf32> to vector<8x32xf32>
    %159 = vector.shape_cast %151 : vector<8x32xf32> to vector<1x8x32xf32>
    tpu.vector_store %arg24[%156, %c0_75, %c0_76], %159 {strides = array<i32>} : memref<8x8x32xf32, #tpu.memory_space<vmem>>, vector<1x8x32xf32>,
    %c2_i32 = arith.constant 2 : i32
    %c0_77 = arith.constant 0 : index
    %c0_78 = arith.constant 0 : index
    %160 = vector.load %arg19[%c0_77, %c0_78] : memref<8x32xf32, #tpu.memory_space<vmem>>, vector<8x32xf32>
    %c0_79 = arith.constant 0 : index
    %c0_80 = arith.constant 0 : index
    %161 = vector.load %arg20[%c0_79, %c0_80] : memref<8x32xf32, #tpu.memory_space<vmem>>, vector<8x32xf32>
    %c0_81 = arith.constant 0 : index
    %c0_82 = arith.constant 0 : index
    %162 = vector.load %arg21[%c0_81, %c0_82] : memref<8x32xf32, #tpu.memory_space<vmem>>, vector<8x32xf32>
    %c0_83 = arith.constant 0 : index
    %c0_84 = arith.constant 0 : index
    %163 = vector.load %arg22[%c0_83, %c0_84] : memref<8x32xf32, #tpu.memory_space<vmem>>, vector<8x32xf32>
    %164 = arith.index_cast %c2_i32 : i32 to index
    %c0_85 = arith.constant 0 : index
    %c0_86 = arith.constant 0 : index
    %165 = vector.load %arg23[%164, %c0_85, %c0_86] : memref<8x8x128xf32, #tpu.memory_space<vmem>>, vector<1x8x128xf32>
    %166 = vector.shape_cast %165 : vector<1x8x128xf32> to vector<8x128xf32>
    %cst_87 = arith.constant dense<0.000000e+00> : vector<8x128xf32>
    %167 = tpu.matmul %160, %12, %cst_87 {dimension_numbers = #tpu.dot_dimension_numbers<[1], [0], [0], [1], [0, 0, 1, 1], [], []>} : vector<8x32xf32>, vector<32x128xf32>, vector<8x128xf32> -> vector<8x128xf32>
    %168 = arith.addf %166, %167 : vector<8x128xf32>
    %169 = vector.extract_strided_slice %168 {offsets = [0, 0], sizes = [8, 32], strides = [1, 1]} : vector<8x128xf32> to vector<8x32xf32>
    %170 = arith.negf %169 : vector<8x32xf32>
    %171 = math.exp %170 : vector<8x32xf32>
    %cst_88 = arith.constant 1.000000e+00 : f32
    %172 = vector.broadcast %cst_88 : f32 to vector<8x32xf32>
    %173 = arith.addf %172, %171 : vector<8x32xf32>
    %174 = arith.divf %172, %173 : vector<8x32xf32>
    %175 = vector.extract_strided_slice %168 {offsets = [0, 32], sizes = [8, 32], strides = [1, 1]} : vector<8x128xf32> to vector<8x32xf32>
    %176 = arith.negf %175 : vector<8x32xf32>
    %177 = math.exp %176 : vector<8x32xf32>
    %cst_89 = arith.constant 1.000000e+00 : f32
    %178 = vector.broadcast %cst_89 : f32 to vector<8x32xf32>
    %179 = arith.addf %178, %177 : vector<8x32xf32>
    %180 = arith.divf %178, %179 : vector<8x32xf32>
    %181 = vector.extract_strided_slice %168 {offsets = [0, 64], sizes = [8, 32], strides = [1, 1]} : vector<8x128xf32> to vector<8x32xf32>
    %182 = math.tanh %181 : vector<8x32xf32>
    %183 = vector.extract_strided_slice %168 {offsets = [0, 96], sizes = [8, 32], strides = [1, 1]} : vector<8x128xf32> to vector<8x32xf32>
    %184 = arith.negf %183 : vector<8x32xf32>
    %185 = math.exp %184 : vector<8x32xf32>
    %cst_90 = arith.constant 1.000000e+00 : f32
    %186 = vector.broadcast %cst_90 : f32 to vector<8x32xf32>
    %187 = arith.addf %186, %185 : vector<8x32xf32>
    %188 = arith.divf %186, %187 : vector<8x32xf32>
    %189 = arith.mulf %180, %161 : vector<8x32xf32>
    %190 = arith.mulf %174, %182 : vector<8x32xf32>
    %191 = arith.addf %189, %190 : vector<8x32xf32>
    %192 = math.tanh %191 : vector<8x32xf32>
    %193 = arith.mulf %188, %192 : vector<8x32xf32>
    %cst_91 = arith.constant dense<0.000000e+00> : vector<8x128xf32>
    %194 = tpu.matmul %193, %13, %cst_91 {dimension_numbers = #tpu.dot_dimension_numbers<[1], [0], [0], [1], [0, 0, 1, 1], [], []>} : vector<8x32xf32>, vector<32x128xf32>, vector<8x128xf32> -> vector<8x128xf32>
    %cst_92 = arith.constant dense<0.000000e+00> : vector<8x128xf32>
    %195 = tpu.matmul %162, %14, %cst_92 {dimension_numbers = #tpu.dot_dimension_numbers<[1], [0], [0], [1], [0, 0, 1, 1], [], []>} : vector<8x32xf32>, vector<32x128xf32>, vector<8x128xf32> -> vector<8x128xf32>
    %196 = arith.addf %194, %195 : vector<8x128xf32>
    %197 = vector.broadcast %15 : vector<1x128xf32> to vector<8x128xf32>
    %198 = arith.addf %196, %197 : vector<8x128xf32>
    %199 = vector.extract_strided_slice %198 {offsets = [0, 0], sizes = [8, 32], strides = [1, 1]} : vector<8x128xf32> to vector<8x32xf32>
    %200 = arith.negf %199 : vector<8x32xf32>
    %201 = math.exp %200 : vector<8x32xf32>
    %cst_93 = arith.constant 1.000000e+00 : f32
    %202 = vector.broadcast %cst_93 : f32 to vector<8x32xf32>
    %203 = arith.addf %202, %201 : vector<8x32xf32>
    %204 = arith.divf %202, %203 : vector<8x32xf32>
    %205 = vector.extract_strided_slice %198 {offsets = [0, 32], sizes = [8, 32], strides = [1, 1]} : vector<8x128xf32> to vector<8x32xf32>
    %206 = arith.negf %205 : vector<8x32xf32>
    %207 = math.exp %206 : vector<8x32xf32>
    %cst_94 = arith.constant 1.000000e+00 : f32
    %208 = vector.broadcast %cst_94 : f32 to vector<8x32xf32>
    %209 = arith.addf %208, %207 : vector<8x32xf32>
    %210 = arith.divf %208, %209 : vector<8x32xf32>
    %211 = vector.extract_strided_slice %198 {offsets = [0, 64], sizes = [8, 32], strides = [1, 1]} : vector<8x128xf32> to vector<8x32xf32>
    %212 = math.tanh %211 : vector<8x32xf32>
    %213 = vector.extract_strided_slice %198 {offsets = [0, 96], sizes = [8, 32], strides = [1, 1]} : vector<8x128xf32> to vector<8x32xf32>
    %214 = arith.negf %213 : vector<8x32xf32>
    %215 = math.exp %214 : vector<8x32xf32>
    %cst_95 = arith.constant 1.000000e+00 : f32
    %216 = vector.broadcast %cst_95 : f32 to vector<8x32xf32>
    %217 = arith.addf %216, %215 : vector<8x32xf32>
    %218 = arith.divf %216, %217 : vector<8x32xf32>
    %219 = arith.mulf %210, %163 : vector<8x32xf32>
    %220 = arith.mulf %204, %212 : vector<8x32xf32>
    %221 = arith.addf %219, %220 : vector<8x32xf32>
    %222 = math.tanh %221 : vector<8x32xf32>
    %223 = arith.mulf %218, %222 : vector<8x32xf32>
    %c0_96 = arith.constant 0 : index
    %c0_97 = arith.constant 0 : index
    %224 = vector.load %arg19[%c0_96, %c0_97] : memref<8x32xf32, #tpu.memory_space<vmem>>, vector<8x32xf32>
    tpu.vector_store %arg19[%c0_96, %c0_97], %193 {strides = array<i32>} : memref<8x32xf32, #tpu.memory_space<vmem>>, vector<8x32xf32>,
    %c0_98 = arith.constant 0 : index
    %c0_99 = arith.constant 0 : index
    %225 = vector.load %arg20[%c0_98, %c0_99] : memref<8x32xf32, #tpu.memory_space<vmem>>, vector<8x32xf32>
    tpu.vector_store %arg20[%c0_98, %c0_99], %191 {strides = array<i32>} : memref<8x32xf32, #tpu.memory_space<vmem>>, vector<8x32xf32>,
    %c0_100 = arith.constant 0 : index
    %c0_101 = arith.constant 0 : index
    %226 = vector.load %arg21[%c0_100, %c0_101] : memref<8x32xf32, #tpu.memory_space<vmem>>, vector<8x32xf32>
    tpu.vector_store %arg21[%c0_100, %c0_101], %223 {strides = array<i32>} : memref<8x32xf32, #tpu.memory_space<vmem>>, vector<8x32xf32>,
    %c0_102 = arith.constant 0 : index
    %c0_103 = arith.constant 0 : index
    %227 = vector.load %arg22[%c0_102, %c0_103] : memref<8x32xf32, #tpu.memory_space<vmem>>, vector<8x32xf32>
    tpu.vector_store %arg22[%c0_102, %c0_103], %221 {strides = array<i32>} : memref<8x32xf32, #tpu.memory_space<vmem>>, vector<8x32xf32>,
    %228 = arith.index_cast %c2_i32 : i32 to index
    %c0_104 = arith.constant 0 : index
    %c0_105 = arith.constant 0 : index
    %229 = vector.load %arg24[%228, %c0_104, %c0_105] : memref<8x8x32xf32, #tpu.memory_space<vmem>>, vector<1x8x32xf32>
    %230 = vector.shape_cast %229 : vector<1x8x32xf32> to vector<8x32xf32>
    %231 = vector.shape_cast %223 : vector<8x32xf32> to vector<1x8x32xf32>
    tpu.vector_store %arg24[%228, %c0_104, %c0_105], %231 {strides = array<i32>} : memref<8x8x32xf32, #tpu.memory_space<vmem>>, vector<1x8x32xf32>,
    %c3_i32 = arith.constant 3 : i32
    %c0_106 = arith.constant 0 : index
    %c0_107 = arith.constant 0 : index
    %232 = vector.load %arg19[%c0_106, %c0_107] : memref<8x32xf32, #tpu.memory_space<vmem>>, vector<8x32xf32>
    %c0_108 = arith.constant 0 : index
    %c0_109 = arith.constant 0 : index
    %233 = vector.load %arg20[%c0_108, %c0_109] : memref<8x32xf32, #tpu.memory_space<vmem>>, vector<8x32xf32>
    %c0_110 = arith.constant 0 : index
    %c0_111 = arith.constant 0 : index
    %234 = vector.load %arg21[%c0_110, %c0_111] : memref<8x32xf32, #tpu.memory_space<vmem>>, vector<8x32xf32>
    %c0_112 = arith.constant 0 : index
    %c0_113 = arith.constant 0 : index
    %235 = vector.load %arg22[%c0_112, %c0_113] : memref<8x32xf32, #tpu.memory_space<vmem>>, vector<8x32xf32>
    %236 = arith.index_cast %c3_i32 : i32 to index
    %c0_114 = arith.constant 0 : index
    %c0_115 = arith.constant 0 : index
    %237 = vector.load %arg23[%236, %c0_114, %c0_115] : memref<8x8x128xf32, #tpu.memory_space<vmem>>, vector<1x8x128xf32>
    %238 = vector.shape_cast %237 : vector<1x8x128xf32> to vector<8x128xf32>
    %cst_116 = arith.constant dense<0.000000e+00> : vector<8x128xf32>
    %239 = tpu.matmul %232, %12, %cst_116 {dimension_numbers = #tpu.dot_dimension_numbers<[1], [0], [0], [1], [0, 0, 1, 1], [], []>} : vector<8x32xf32>, vector<32x128xf32>, vector<8x128xf32> -> vector<8x128xf32>
    %240 = arith.addf %238, %239 : vector<8x128xf32>
    %241 = vector.extract_strided_slice %240 {offsets = [0, 0], sizes = [8, 32], strides = [1, 1]} : vector<8x128xf32> to vector<8x32xf32>
    %242 = arith.negf %241 : vector<8x32xf32>
    %243 = math.exp %242 : vector<8x32xf32>
    %cst_117 = arith.constant 1.000000e+00 : f32
    %244 = vector.broadcast %cst_117 : f32 to vector<8x32xf32>
    %245 = arith.addf %244, %243 : vector<8x32xf32>
    %246 = arith.divf %244, %245 : vector<8x32xf32>
    %247 = vector.extract_strided_slice %240 {offsets = [0, 32], sizes = [8, 32], strides = [1, 1]} : vector<8x128xf32> to vector<8x32xf32>
    %248 = arith.negf %247 : vector<8x32xf32>
    %249 = math.exp %248 : vector<8x32xf32>
    %cst_118 = arith.constant 1.000000e+00 : f32
    %250 = vector.broadcast %cst_118 : f32 to vector<8x32xf32>
    %251 = arith.addf %250, %249 : vector<8x32xf32>
    %252 = arith.divf %250, %251 : vector<8x32xf32>
    %253 = vector.extract_strided_slice %240 {offsets = [0, 64], sizes = [8, 32], strides = [1, 1]} : vector<8x128xf32> to vector<8x32xf32>
    %254 = math.tanh %253 : vector<8x32xf32>
    %255 = vector.extract_strided_slice %240 {offsets = [0, 96], sizes = [8, 32], strides = [1, 1]} : vector<8x128xf32> to vector<8x32xf32>
    %256 = arith.negf %255 : vector<8x32xf32>
    %257 = math.exp %256 : vector<8x32xf32>
    %cst_119 = arith.constant 1.000000e+00 : f32
    %258 = vector.broadcast %cst_119 : f32 to vector<8x32xf32>
    %259 = arith.addf %258, %257 : vector<8x32xf32>
    %260 = arith.divf %258, %259 : vector<8x32xf32>
    %261 = arith.mulf %252, %233 : vector<8x32xf32>
    %262 = arith.mulf %246, %254 : vector<8x32xf32>
    %263 = arith.addf %261, %262 : vector<8x32xf32>
    %264 = math.tanh %263 : vector<8x32xf32>
    %265 = arith.mulf %260, %264 : vector<8x32xf32>
    %cst_120 = arith.constant dense<0.000000e+00> : vector<8x128xf32>
    %266 = tpu.matmul %265, %13, %cst_120 {dimension_numbers = #tpu.dot_dimension_numbers<[1], [0], [0], [1], [0, 0, 1, 1], [], []>} : vector<8x32xf32>, vector<32x128xf32>, vector<8x128xf32> -> vector<8x128xf32>
    %cst_121 = arith.constant dense<0.000000e+00> : vector<8x128xf32>
    %267 = tpu.matmul %234, %14, %cst_121 {dimension_numbers = #tpu.dot_dimension_numbers<[1], [0], [0], [1], [0, 0, 1, 1], [], []>} : vector<8x32xf32>, vector<32x128xf32>, vector<8x128xf32> -> vector<8x128xf32>
    %268 = arith.addf %266, %267 : vector<8x128xf32>
    %269 = vector.broadcast %15 : vector<1x128xf32> to vector<8x128xf32>
    %270 = arith.addf %268, %269 : vector<8x128xf32>
    %271 = vector.extract_strided_slice %270 {offsets = [0, 0], sizes = [8, 32], strides = [1, 1]} : vector<8x128xf32> to vector<8x32xf32>
    %272 = arith.negf %271 : vector<8x32xf32>
    %273 = math.exp %272 : vector<8x32xf32>
    %cst_122 = arith.constant 1.000000e+00 : f32
    %274 = vector.broadcast %cst_122 : f32 to vector<8x32xf32>
    %275 = arith.addf %274, %273 : vector<8x32xf32>
    %276 = arith.divf %274, %275 : vector<8x32xf32>
    %277 = vector.extract_strided_slice %270 {offsets = [0, 32], sizes = [8, 32], strides = [1, 1]} : vector<8x128xf32> to vector<8x32xf32>
    %278 = arith.negf %277 : vector<8x32xf32>
    %279 = math.exp %278 : vector<8x32xf32>
    %cst_123 = arith.constant 1.000000e+00 : f32
    %280 = vector.broadcast %cst_123 : f32 to vector<8x32xf32>
    %281 = arith.addf %280, %279 : vector<8x32xf32>
    %282 = arith.divf %280, %281 : vector<8x32xf32>
    %283 = vector.extract_strided_slice %270 {offsets = [0, 64], sizes = [8, 32], strides = [1, 1]} : vector<8x128xf32> to vector<8x32xf32>
    %284 = math.tanh %283 : vector<8x32xf32>
    %285 = vector.extract_strided_slice %270 {offsets = [0, 96], sizes = [8, 32], strides = [1, 1]} : vector<8x128xf32> to vector<8x32xf32>
    %286 = arith.negf %285 : vector<8x32xf32>
    %287 = math.exp %286 : vector<8x32xf32>
    %cst_124 = arith.constant 1.000000e+00 : f32
    %288 = vector.broadcast %cst_124 : f32 to vector<8x32xf32>
    %289 = arith.addf %288, %287 : vector<8x32xf32>
    %290 = arith.divf %288, %289 : vector<8x32xf32>
    %291 = arith.mulf %282, %235 : vector<8x32xf32>
    %292 = arith.mulf %276, %284 : vector<8x32xf32>
    %293 = arith.addf %291, %292 : vector<8x32xf32>
    %294 = math.tanh %293 : vector<8x32xf32>
    %295 = arith.mulf %290, %294 : vector<8x32xf32>
    %c0_125 = arith.constant 0 : index
    %c0_126 = arith.constant 0 : index
    %296 = vector.load %arg19[%c0_125, %c0_126] : memref<8x32xf32, #tpu.memory_space<vmem>>, vector<8x32xf32>
    tpu.vector_store %arg19[%c0_125, %c0_126], %265 {strides = array<i32>} : memref<8x32xf32, #tpu.memory_space<vmem>>, vector<8x32xf32>,
    %c0_127 = arith.constant 0 : index
    %c0_128 = arith.constant 0 : index
    %297 = vector.load %arg20[%c0_127, %c0_128] : memref<8x32xf32, #tpu.memory_space<vmem>>, vector<8x32xf32>
    tpu.vector_store %arg20[%c0_127, %c0_128], %263 {strides = array<i32>} : memref<8x32xf32, #tpu.memory_space<vmem>>, vector<8x32xf32>,
    %c0_129 = arith.constant 0 : index
    %c0_130 = arith.constant 0 : index
    %298 = vector.load %arg21[%c0_129, %c0_130] : memref<8x32xf32, #tpu.memory_space<vmem>>, vector<8x32xf32>
    tpu.vector_store %arg21[%c0_129, %c0_130], %295 {strides = array<i32>} : memref<8x32xf32, #tpu.memory_space<vmem>>, vector<8x32xf32>,
    %c0_131 = arith.constant 0 : index
    %c0_132 = arith.constant 0 : index
    %299 = vector.load %arg22[%c0_131, %c0_132] : memref<8x32xf32, #tpu.memory_space<vmem>>, vector<8x32xf32>
    tpu.vector_store %arg22[%c0_131, %c0_132], %293 {strides = array<i32>} : memref<8x32xf32, #tpu.memory_space<vmem>>, vector<8x32xf32>,
    %300 = arith.index_cast %c3_i32 : i32 to index
    %c0_133 = arith.constant 0 : index
    %c0_134 = arith.constant 0 : index
    %301 = vector.load %arg24[%300, %c0_133, %c0_134] : memref<8x8x32xf32, #tpu.memory_space<vmem>>, vector<1x8x32xf32>
    %302 = vector.shape_cast %301 : vector<1x8x32xf32> to vector<8x32xf32>
    %303 = vector.shape_cast %295 : vector<8x32xf32> to vector<1x8x32xf32>
    tpu.vector_store %arg24[%300, %c0_133, %c0_134], %303 {strides = array<i32>} : memref<8x8x32xf32, #tpu.memory_space<vmem>>, vector<1x8x32xf32>,
    %c4_i32 = arith.constant 4 : i32
    %c0_135 = arith.constant 0 : index
    %c0_136 = arith.constant 0 : index
    %304 = vector.load %arg19[%c0_135, %c0_136] : memref<8x32xf32, #tpu.memory_space<vmem>>, vector<8x32xf32>
    %c0_137 = arith.constant 0 : index
    %c0_138 = arith.constant 0 : index
    %305 = vector.load %arg20[%c0_137, %c0_138] : memref<8x32xf32, #tpu.memory_space<vmem>>, vector<8x32xf32>
    %c0_139 = arith.constant 0 : index
    %c0_140 = arith.constant 0 : index
    %306 = vector.load %arg21[%c0_139, %c0_140] : memref<8x32xf32, #tpu.memory_space<vmem>>, vector<8x32xf32>
    %c0_141 = arith.constant 0 : index
    %c0_142 = arith.constant 0 : index
    %307 = vector.load %arg22[%c0_141, %c0_142] : memref<8x32xf32, #tpu.memory_space<vmem>>, vector<8x32xf32>
    %308 = arith.index_cast %c4_i32 : i32 to index
    %c0_143 = arith.constant 0 : index
    %c0_144 = arith.constant 0 : index
    %309 = vector.load %arg23[%308, %c0_143, %c0_144] : memref<8x8x128xf32, #tpu.memory_space<vmem>>, vector<1x8x128xf32>
    %310 = vector.shape_cast %309 : vector<1x8x128xf32> to vector<8x128xf32>
    %cst_145 = arith.constant dense<0.000000e+00> : vector<8x128xf32>
    %311 = tpu.matmul %304, %12, %cst_145 {dimension_numbers = #tpu.dot_dimension_numbers<[1], [0], [0], [1], [0, 0, 1, 1], [], []>} : vector<8x32xf32>, vector<32x128xf32>, vector<8x128xf32> -> vector<8x128xf32>
    %312 = arith.addf %310, %311 : vector<8x128xf32>
    %313 = vector.extract_strided_slice %312 {offsets = [0, 0], sizes = [8, 32], strides = [1, 1]} : vector<8x128xf32> to vector<8x32xf32>
    %314 = arith.negf %313 : vector<8x32xf32>
    %315 = math.exp %314 : vector<8x32xf32>
    %cst_146 = arith.constant 1.000000e+00 : f32
    %316 = vector.broadcast %cst_146 : f32 to vector<8x32xf32>
    %317 = arith.addf %316, %315 : vector<8x32xf32>
    %318 = arith.divf %316, %317 : vector<8x32xf32>
    %319 = vector.extract_strided_slice %312 {offsets = [0, 32], sizes = [8, 32], strides = [1, 1]} : vector<8x128xf32> to vector<8x32xf32>
    %320 = arith.negf %319 : vector<8x32xf32>
    %321 = math.exp %320 : vector<8x32xf32>
    %cst_147 = arith.constant 1.000000e+00 : f32
    %322 = vector.broadcast %cst_147 : f32 to vector<8x32xf32>
    %323 = arith.addf %322, %321 : vector<8x32xf32>
    %324 = arith.divf %322, %323 : vector<8x32xf32>
    %325 = vector.extract_strided_slice %312 {offsets = [0, 64], sizes = [8, 32], strides = [1, 1]} : vector<8x128xf32> to vector<8x32xf32>
    %326 = math.tanh %325 : vector<8x32xf32>
    %327 = vector.extract_strided_slice %312 {offsets = [0, 96], sizes = [8, 32], strides = [1, 1]} : vector<8x128xf32> to vector<8x32xf32>
    %328 = arith.negf %327 : vector<8x32xf32>
    %329 = math.exp %328 : vector<8x32xf32>
    %cst_148 = arith.constant 1.000000e+00 : f32
    %330 = vector.broadcast %cst_148 : f32 to vector<8x32xf32>
    %331 = arith.addf %330, %329 : vector<8x32xf32>
    %332 = arith.divf %330, %331 : vector<8x32xf32>
    %333 = arith.mulf %324, %305 : vector<8x32xf32>
    %334 = arith.mulf %318, %326 : vector<8x32xf32>
    %335 = arith.addf %333, %334 : vector<8x32xf32>
    %336 = math.tanh %335 : vector<8x32xf32>
    %337 = arith.mulf %332, %336 : vector<8x32xf32>
    %cst_149 = arith.constant dense<0.000000e+00> : vector<8x128xf32>
    %338 = tpu.matmul %337, %13, %cst_149 {dimension_numbers = #tpu.dot_dimension_numbers<[1], [0], [0], [1], [0, 0, 1, 1], [], []>} : vector<8x32xf32>, vector<32x128xf32>, vector<8x128xf32> -> vector<8x128xf32>
    %cst_150 = arith.constant dense<0.000000e+00> : vector<8x128xf32>
    %339 = tpu.matmul %306, %14, %cst_150 {dimension_numbers = #tpu.dot_dimension_numbers<[1], [0], [0], [1], [0, 0, 1, 1], [], []>} : vector<8x32xf32>, vector<32x128xf32>, vector<8x128xf32> -> vector<8x128xf32>
    %340 = arith.addf %338, %339 : vector<8x128xf32>
    %341 = vector.broadcast %15 : vector<1x128xf32> to vector<8x128xf32>
    %342 = arith.addf %340, %341 : vector<8x128xf32>
    %343 = vector.extract_strided_slice %342 {offsets = [0, 0], sizes = [8, 32], strides = [1, 1]} : vector<8x128xf32> to vector<8x32xf32>
    %344 = arith.negf %343 : vector<8x32xf32>
    %345 = math.exp %344 : vector<8x32xf32>
    %cst_151 = arith.constant 1.000000e+00 : f32
    %346 = vector.broadcast %cst_151 : f32 to vector<8x32xf32>
    %347 = arith.addf %346, %345 : vector<8x32xf32>
    %348 = arith.divf %346, %347 : vector<8x32xf32>
    %349 = vector.extract_strided_slice %342 {offsets = [0, 32], sizes = [8, 32], strides = [1, 1]} : vector<8x128xf32> to vector<8x32xf32>
    %350 = arith.negf %349 : vector<8x32xf32>
    %351 = math.exp %350 : vector<8x32xf32>
    %cst_152 = arith.constant 1.000000e+00 : f32
    %352 = vector.broadcast %cst_152 : f32 to vector<8x32xf32>
    %353 = arith.addf %352, %351 : vector<8x32xf32>
    %354 = arith.divf %352, %353 : vector<8x32xf32>
    %355 = vector.extract_strided_slice %342 {offsets = [0, 64], sizes = [8, 32], strides = [1, 1]} : vector<8x128xf32> to vector<8x32xf32>
    %356 = math.tanh %355 : vector<8x32xf32>
    %357 = vector.extract_strided_slice %342 {offsets = [0, 96], sizes = [8, 32], strides = [1, 1]} : vector<8x128xf32> to vector<8x32xf32>
    %358 = arith.negf %357 : vector<8x32xf32>
    %359 = math.exp %358 : vector<8x32xf32>
    %cst_153 = arith.constant 1.000000e+00 : f32
    %360 = vector.broadcast %cst_153 : f32 to vector<8x32xf32>
    %361 = arith.addf %360, %359 : vector<8x32xf32>
    %362 = arith.divf %360, %361 : vector<8x32xf32>
    %363 = arith.mulf %354, %307 : vector<8x32xf32>
    %364 = arith.mulf %348, %356 : vector<8x32xf32>
    %365 = arith.addf %363, %364 : vector<8x32xf32>
    %366 = math.tanh %365 : vector<8x32xf32>
    %367 = arith.mulf %362, %366 : vector<8x32xf32>
    %c0_154 = arith.constant 0 : index
    %c0_155 = arith.constant 0 : index
    %368 = vector.load %arg19[%c0_154, %c0_155] : memref<8x32xf32, #tpu.memory_space<vmem>>, vector<8x32xf32>
    tpu.vector_store %arg19[%c0_154, %c0_155], %337 {strides = array<i32>} : memref<8x32xf32, #tpu.memory_space<vmem>>, vector<8x32xf32>,
    %c0_156 = arith.constant 0 : index
    %c0_157 = arith.constant 0 : index
    %369 = vector.load %arg20[%c0_156, %c0_157] : memref<8x32xf32, #tpu.memory_space<vmem>>, vector<8x32xf32>
    tpu.vector_store %arg20[%c0_156, %c0_157], %335 {strides = array<i32>} : memref<8x32xf32, #tpu.memory_space<vmem>>, vector<8x32xf32>,
    %c0_158 = arith.constant 0 : index
    %c0_159 = arith.constant 0 : index
    %370 = vector.load %arg21[%c0_158, %c0_159] : memref<8x32xf32, #tpu.memory_space<vmem>>, vector<8x32xf32>
    tpu.vector_store %arg21[%c0_158, %c0_159], %367 {strides = array<i32>} : memref<8x32xf32, #tpu.memory_space<vmem>>, vector<8x32xf32>,
    %c0_160 = arith.constant 0 : index
    %c0_161 = arith.constant 0 : index
    %371 = vector.load %arg22[%c0_160, %c0_161] : memref<8x32xf32, #tpu.memory_space<vmem>>, vector<8x32xf32>
    tpu.vector_store %arg22[%c0_160, %c0_161], %365 {strides = array<i32>} : memref<8x32xf32, #tpu.memory_space<vmem>>, vector<8x32xf32>,
    %372 = arith.index_cast %c4_i32 : i32 to index
    %c0_162 = arith.constant 0 : index
    %c0_163 = arith.constant 0 : index
    %373 = vector.load %arg24[%372, %c0_162, %c0_163] : memref<8x8x32xf32, #tpu.memory_space<vmem>>, vector<1x8x32xf32>
    %374 = vector.shape_cast %373 : vector<1x8x32xf32> to vector<8x32xf32>
    %375 = vector.shape_cast %367 : vector<8x32xf32> to vector<1x8x32xf32>
    tpu.vector_store %arg24[%372, %c0_162, %c0_163], %375 {strides = array<i32>} : memref<8x8x32xf32, #tpu.memory_space<vmem>>, vector<1x8x32xf32>,
    %c5_i32 = arith.constant 5 : i32
    %c0_164 = arith.constant 0 : index
    %c0_165 = arith.constant 0 : index
    %376 = vector.load %arg19[%c0_164, %c0_165] : memref<8x32xf32, #tpu.memory_space<vmem>>, vector<8x32xf32>
    %c0_166 = arith.constant 0 : index
    %c0_167 = arith.constant 0 : index
    %377 = vector.load %arg20[%c0_166, %c0_167] : memref<8x32xf32, #tpu.memory_space<vmem>>, vector<8x32xf32>
    %c0_168 = arith.constant 0 : index
    %c0_169 = arith.constant 0 : index
    %378 = vector.load %arg21[%c0_168, %c0_169] : memref<8x32xf32, #tpu.memory_space<vmem>>, vector<8x32xf32>
    %c0_170 = arith.constant 0 : index
    %c0_171 = arith.constant 0 : index
    %379 = vector.load %arg22[%c0_170, %c0_171] : memref<8x32xf32, #tpu.memory_space<vmem>>, vector<8x32xf32>
    %380 = arith.index_cast %c5_i32 : i32 to index
    %c0_172 = arith.constant 0 : index
    %c0_173 = arith.constant 0 : index
    %381 = vector.load %arg23[%380, %c0_172, %c0_173] : memref<8x8x128xf32, #tpu.memory_space<vmem>>, vector<1x8x128xf32>
    %382 = vector.shape_cast %381 : vector<1x8x128xf32> to vector<8x128xf32>
    %cst_174 = arith.constant dense<0.000000e+00> : vector<8x128xf32>
    %383 = tpu.matmul %376, %12, %cst_174 {dimension_numbers = #tpu.dot_dimension_numbers<[1], [0], [0], [1], [0, 0, 1, 1], [], []>} : vector<8x32xf32>, vector<32x128xf32>, vector<8x128xf32> -> vector<8x128xf32>
    %384 = arith.addf %382, %383 : vector<8x128xf32>
    %385 = vector.extract_strided_slice %384 {offsets = [0, 0], sizes = [8, 32], strides = [1, 1]} : vector<8x128xf32> to vector<8x32xf32>
    %386 = arith.negf %385 : vector<8x32xf32>
    %387 = math.exp %386 : vector<8x32xf32>
    %cst_175 = arith.constant 1.000000e+00 : f32
    %388 = vector.broadcast %cst_175 : f32 to vector<8x32xf32>
    %389 = arith.addf %388, %387 : vector<8x32xf32>
    %390 = arith.divf %388, %389 : vector<8x32xf32>
    %391 = vector.extract_strided_slice %384 {offsets = [0, 32], sizes = [8, 32], strides = [1, 1]} : vector<8x128xf32> to vector<8x32xf32>
    %392 = arith.negf %391 : vector<8x32xf32>
    %393 = math.exp %392 : vector<8x32xf32>
    %cst_176 = arith.constant 1.000000e+00 : f32
    %394 = vector.broadcast %cst_176 : f32 to vector<8x32xf32>
    %395 = arith.addf %394, %393 : vector<8x32xf32>
    %396 = arith.divf %394, %395 : vector<8x32xf32>
    %397 = vector.extract_strided_slice %384 {offsets = [0, 64], sizes = [8, 32], strides = [1, 1]} : vector<8x128xf32> to vector<8x32xf32>
    %398 = math.tanh %397 : vector<8x32xf32>
    %399 = vector.extract_strided_slice %384 {offsets = [0, 96], sizes = [8, 32], strides = [1, 1]} : vector<8x128xf32> to vector<8x32xf32>
    %400 = arith.negf %399 : vector<8x32xf32>
    %401 = math.exp %400 : vector<8x32xf32>
    %cst_177 = arith.constant 1.000000e+00 : f32
    %402 = vector.broadcast %cst_177 : f32 to vector<8x32xf32>
    %403 = arith.addf %402, %401 : vector<8x32xf32>
    %404 = arith.divf %402, %403 : vector<8x32xf32>
    %405 = arith.mulf %396, %377 : vector<8x32xf32>
    %406 = arith.mulf %390, %398 : vector<8x32xf32>
    %407 = arith.addf %405, %406 : vector<8x32xf32>
    %408 = math.tanh %407 : vector<8x32xf32>
    %409 = arith.mulf %404, %408 : vector<8x32xf32>
    %cst_178 = arith.constant dense<0.000000e+00> : vector<8x128xf32>
    %410 = tpu.matmul %409, %13, %cst_178 {dimension_numbers = #tpu.dot_dimension_numbers<[1], [0], [0], [1], [0, 0, 1, 1], [], []>} : vector<8x32xf32>, vector<32x128xf32>, vector<8x128xf32> -> vector<8x128xf32>
    %cst_179 = arith.constant dense<0.000000e+00> : vector<8x128xf32>
    %411 = tpu.matmul %378, %14, %cst_179 {dimension_numbers = #tpu.dot_dimension_numbers<[1], [0], [0], [1], [0, 0, 1, 1], [], []>} : vector<8x32xf32>, vector<32x128xf32>, vector<8x128xf32> -> vector<8x128xf32>
    %412 = arith.addf %410, %411 : vector<8x128xf32>
    %413 = vector.broadcast %15 : vector<1x128xf32> to vector<8x128xf32>
    %414 = arith.addf %412, %413 : vector<8x128xf32>
    %415 = vector.extract_strided_slice %414 {offsets = [0, 0], sizes = [8, 32], strides = [1, 1]} : vector<8x128xf32> to vector<8x32xf32>
    %416 = arith.negf %415 : vector<8x32xf32>
    %417 = math.exp %416 : vector<8x32xf32>
    %cst_180 = arith.constant 1.000000e+00 : f32
    %418 = vector.broadcast %cst_180 : f32 to vector<8x32xf32>
    %419 = arith.addf %418, %417 : vector<8x32xf32>
    %420 = arith.divf %418, %419 : vector<8x32xf32>
    %421 = vector.extract_strided_slice %414 {offsets = [0, 32], sizes = [8, 32], strides = [1, 1]} : vector<8x128xf32> to vector<8x32xf32>
    %422 = arith.negf %421 : vector<8x32xf32>
    %423 = math.exp %422 : vector<8x32xf32>
    %cst_181 = arith.constant 1.000000e+00 : f32
    %424 = vector.broadcast %cst_181 : f32 to vector<8x32xf32>
    %425 = arith.addf %424, %423 : vector<8x32xf32>
    %426 = arith.divf %424, %425 : vector<8x32xf32>
    %427 = vector.extract_strided_slice %414 {offsets = [0, 64], sizes = [8, 32], strides = [1, 1]} : vector<8x128xf32> to vector<8x32xf32>
    %428 = math.tanh %427 : vector<8x32xf32>
    %429 = vector.extract_strided_slice %414 {offsets = [0, 96], sizes = [8, 32], strides = [1, 1]} : vector<8x128xf32> to vector<8x32xf32>
    %430 = arith.negf %429 : vector<8x32xf32>
    %431 = math.exp %430 : vector<8x32xf32>
    %cst_182 = arith.constant 1.000000e+00 : f32
    %432 = vector.broadcast %cst_182 : f32 to vector<8x32xf32>
    %433 = arith.addf %432, %431 : vector<8x32xf32>
    %434 = arith.divf %432, %433 : vector<8x32xf32>
    %435 = arith.mulf %426, %379 : vector<8x32xf32>
    %436 = arith.mulf %420, %428 : vector<8x32xf32>
    %437 = arith.addf %435, %436 : vector<8x32xf32>
    %438 = math.tanh %437 : vector<8x32xf32>
    %439 = arith.mulf %434, %438 : vector<8x32xf32>
    %c0_183 = arith.constant 0 : index
    %c0_184 = arith.constant 0 : index
    %440 = vector.load %arg19[%c0_183, %c0_184] : memref<8x32xf32, #tpu.memory_space<vmem>>, vector<8x32xf32>
    tpu.vector_store %arg19[%c0_183, %c0_184], %409 {strides = array<i32>} : memref<8x32xf32, #tpu.memory_space<vmem>>, vector<8x32xf32>,
    %c0_185 = arith.constant 0 : index
    %c0_186 = arith.constant 0 : index
    %441 = vector.load %arg20[%c0_185, %c0_186] : memref<8x32xf32, #tpu.memory_space<vmem>>, vector<8x32xf32>
    tpu.vector_store %arg20[%c0_185, %c0_186], %407 {strides = array<i32>} : memref<8x32xf32, #tpu.memory_space<vmem>>, vector<8x32xf32>,
    %c0_187 = arith.constant 0 : index
    %c0_188 = arith.constant 0 : index
    %442 = vector.load %arg21[%c0_187, %c0_188] : memref<8x32xf32, #tpu.memory_space<vmem>>, vector<8x32xf32>
    tpu.vector_store %arg21[%c0_187, %c0_188], %439 {strides = array<i32>} : memref<8x32xf32, #tpu.memory_space<vmem>>, vector<8x32xf32>,
    %c0_189 = arith.constant 0 : index
    %c0_190 = arith.constant 0 : index
    %443 = vector.load %arg22[%c0_189, %c0_190] : memref<8x32xf32, #tpu.memory_space<vmem>>, vector<8x32xf32>
    tpu.vector_store %arg22[%c0_189, %c0_190], %437 {strides = array<i32>} : memref<8x32xf32, #tpu.memory_space<vmem>>, vector<8x32xf32>,
    %444 = arith.index_cast %c5_i32 : i32 to index
    %c0_191 = arith.constant 0 : index
    %c0_192 = arith.constant 0 : index
    %445 = vector.load %arg24[%444, %c0_191, %c0_192] : memref<8x8x32xf32, #tpu.memory_space<vmem>>, vector<1x8x32xf32>
    %446 = vector.shape_cast %445 : vector<1x8x32xf32> to vector<8x32xf32>
    %447 = vector.shape_cast %439 : vector<8x32xf32> to vector<1x8x32xf32>
    tpu.vector_store %arg24[%444, %c0_191, %c0_192], %447 {strides = array<i32>} : memref<8x8x32xf32, #tpu.memory_space<vmem>>, vector<1x8x32xf32>,
    %c6_i32 = arith.constant 6 : i32
    %c0_193 = arith.constant 0 : index
    %c0_194 = arith.constant 0 : index
    %448 = vector.load %arg19[%c0_193, %c0_194] : memref<8x32xf32, #tpu.memory_space<vmem>>, vector<8x32xf32>
    %c0_195 = arith.constant 0 : index
    %c0_196 = arith.constant 0 : index
    %449 = vector.load %arg20[%c0_195, %c0_196] : memref<8x32xf32, #tpu.memory_space<vmem>>, vector<8x32xf32>
    %c0_197 = arith.constant 0 : index
    %c0_198 = arith.constant 0 : index
    %450 = vector.load %arg21[%c0_197, %c0_198] : memref<8x32xf32, #tpu.memory_space<vmem>>, vector<8x32xf32>
    %c0_199 = arith.constant 0 : index
    %c0_200 = arith.constant 0 : index
    %451 = vector.load %arg22[%c0_199, %c0_200] : memref<8x32xf32, #tpu.memory_space<vmem>>, vector<8x32xf32>
    %452 = arith.index_cast %c6_i32 : i32 to index
    %c0_201 = arith.constant 0 : index
    %c0_202 = arith.constant 0 : index
    %453 = vector.load %arg23[%452, %c0_201, %c0_202] : memref<8x8x128xf32, #tpu.memory_space<vmem>>, vector<1x8x128xf32>
    %454 = vector.shape_cast %453 : vector<1x8x128xf32> to vector<8x128xf32>
    %cst_203 = arith.constant dense<0.000000e+00> : vector<8x128xf32>
    %455 = tpu.matmul %448, %12, %cst_203 {dimension_numbers = #tpu.dot_dimension_numbers<[1], [0], [0], [1], [0, 0, 1, 1], [], []>} : vector<8x32xf32>, vector<32x128xf32>, vector<8x128xf32> -> vector<8x128xf32>
    %456 = arith.addf %454, %455 : vector<8x128xf32>
    %457 = vector.extract_strided_slice %456 {offsets = [0, 0], sizes = [8, 32], strides = [1, 1]} : vector<8x128xf32> to vector<8x32xf32>
    %458 = arith.negf %457 : vector<8x32xf32>
    %459 = math.exp %458 : vector<8x32xf32>
    %cst_204 = arith.constant 1.000000e+00 : f32
    %460 = vector.broadcast %cst_204 : f32 to vector<8x32xf32>
    %461 = arith.addf %460, %459 : vector<8x32xf32>
    %462 = arith.divf %460, %461 : vector<8x32xf32>
    %463 = vector.extract_strided_slice %456 {offsets = [0, 32], sizes = [8, 32], strides = [1, 1]} : vector<8x128xf32> to vector<8x32xf32>
    %464 = arith.negf %463 : vector<8x32xf32>
    %465 = math.exp %464 : vector<8x32xf32>
    %cst_205 = arith.constant 1.000000e+00 : f32
    %466 = vector.broadcast %cst_205 : f32 to vector<8x32xf32>
    %467 = arith.addf %466, %465 : vector<8x32xf32>
    %468 = arith.divf %466, %467 : vector<8x32xf32>
    %469 = vector.extract_strided_slice %456 {offsets = [0, 64], sizes = [8, 32], strides = [1, 1]} : vector<8x128xf32> to vector<8x32xf32>
    %470 = math.tanh %469 : vector<8x32xf32>
    %471 = vector.extract_strided_slice %456 {offsets = [0, 96], sizes = [8, 32], strides = [1, 1]} : vector<8x128xf32> to vector<8x32xf32>
    %472 = arith.negf %471 : vector<8x32xf32>
    %473 = math.exp %472 : vector<8x32xf32>
    %cst_206 = arith.constant 1.000000e+00 : f32
    %474 = vector.broadcast %cst_206 : f32 to vector<8x32xf32>
    %475 = arith.addf %474, %473 : vector<8x32xf32>
    %476 = arith.divf %474, %475 : vector<8x32xf32>
    %477 = arith.mulf %468, %449 : vector<8x32xf32>
    %478 = arith.mulf %462, %470 : vector<8x32xf32>
    %479 = arith.addf %477, %478 : vector<8x32xf32>
    %480 = math.tanh %479 : vector<8x32xf32>
    %481 = arith.mulf %476, %480 : vector<8x32xf32>
    %cst_207 = arith.constant dense<0.000000e+00> : vector<8x128xf32>
    %482 = tpu.matmul %481, %13, %cst_207 {dimension_numbers = #tpu.dot_dimension_numbers<[1], [0], [0], [1], [0, 0, 1, 1], [], []>} : vector<8x32xf32>, vector<32x128xf32>, vector<8x128xf32> -> vector<8x128xf32>
    %cst_208 = arith.constant dense<0.000000e+00> : vector<8x128xf32>
    %483 = tpu.matmul %450, %14, %cst_208 {dimension_numbers = #tpu.dot_dimension_numbers<[1], [0], [0], [1], [0, 0, 1, 1], [], []>} : vector<8x32xf32>, vector<32x128xf32>, vector<8x128xf32> -> vector<8x128xf32>
    %484 = arith.addf %482, %483 : vector<8x128xf32>
    %485 = vector.broadcast %15 : vector<1x128xf32> to vector<8x128xf32>
    %486 = arith.addf %484, %485 : vector<8x128xf32>
    %487 = vector.extract_strided_slice %486 {offsets = [0, 0], sizes = [8, 32], strides = [1, 1]} : vector<8x128xf32> to vector<8x32xf32>
    %488 = arith.negf %487 : vector<8x32xf32>
    %489 = math.exp %488 : vector<8x32xf32>
    %cst_209 = arith.constant 1.000000e+00 : f32
    %490 = vector.broadcast %cst_209 : f32 to vector<8x32xf32>
    %491 = arith.addf %490, %489 : vector<8x32xf32>
    %492 = arith.divf %490, %491 : vector<8x32xf32>
    %493 = vector.extract_strided_slice %486 {offsets = [0, 32], sizes = [8, 32], strides = [1, 1]} : vector<8x128xf32> to vector<8x32xf32>
    %494 = arith.negf %493 : vector<8x32xf32>
    %495 = math.exp %494 : vector<8x32xf32>
    %cst_210 = arith.constant 1.000000e+00 : f32
    %496 = vector.broadcast %cst_210 : f32 to vector<8x32xf32>
    %497 = arith.addf %496, %495 : vector<8x32xf32>
    %498 = arith.divf %496, %497 : vector<8x32xf32>
    %499 = vector.extract_strided_slice %486 {offsets = [0, 64], sizes = [8, 32], strides = [1, 1]} : vector<8x128xf32> to vector<8x32xf32>
    %500 = math.tanh %499 : vector<8x32xf32>
    %501 = vector.extract_strided_slice %486 {offsets = [0, 96], sizes = [8, 32], strides = [1, 1]} : vector<8x128xf32> to vector<8x32xf32>
    %502 = arith.negf %501 : vector<8x32xf32>
    %503 = math.exp %502 : vector<8x32xf32>
    %cst_211 = arith.constant 1.000000e+00 : f32
    %504 = vector.broadcast %cst_211 : f32 to vector<8x32xf32>
    %505 = arith.addf %504, %503 : vector<8x32xf32>
    %506 = arith.divf %504, %505 : vector<8x32xf32>
    %507 = arith.mulf %498, %451 : vector<8x32xf32>
    %508 = arith.mulf %492, %500 : vector<8x32xf32>
    %509 = arith.addf %507, %508 : vector<8x32xf32>
    %510 = math.tanh %509 : vector<8x32xf32>
    %511 = arith.mulf %506, %510 : vector<8x32xf32>
    %c0_212 = arith.constant 0 : index
    %c0_213 = arith.constant 0 : index
    %512 = vector.load %arg19[%c0_212, %c0_213] : memref<8x32xf32, #tpu.memory_space<vmem>>, vector<8x32xf32>
    tpu.vector_store %arg19[%c0_212, %c0_213], %481 {strides = array<i32>} : memref<8x32xf32, #tpu.memory_space<vmem>>, vector<8x32xf32>,
    %c0_214 = arith.constant 0 : index
    %c0_215 = arith.constant 0 : index
    %513 = vector.load %arg20[%c0_214, %c0_215] : memref<8x32xf32, #tpu.memory_space<vmem>>, vector<8x32xf32>
    tpu.vector_store %arg20[%c0_214, %c0_215], %479 {strides = array<i32>} : memref<8x32xf32, #tpu.memory_space<vmem>>, vector<8x32xf32>,
    %c0_216 = arith.constant 0 : index
    %c0_217 = arith.constant 0 : index
    %514 = vector.load %arg21[%c0_216, %c0_217] : memref<8x32xf32, #tpu.memory_space<vmem>>, vector<8x32xf32>
    tpu.vector_store %arg21[%c0_216, %c0_217], %511 {strides = array<i32>} : memref<8x32xf32, #tpu.memory_space<vmem>>, vector<8x32xf32>,
    %c0_218 = arith.constant 0 : index
    %c0_219 = arith.constant 0 : index
    %515 = vector.load %arg22[%c0_218, %c0_219] : memref<8x32xf32, #tpu.memory_space<vmem>>, vector<8x32xf32>
    tpu.vector_store %arg22[%c0_218, %c0_219], %509 {strides = array<i32>} : memref<8x32xf32, #tpu.memory_space<vmem>>, vector<8x32xf32>,
    %516 = arith.index_cast %c6_i32 : i32 to index
    %c0_220 = arith.constant 0 : index
    %c0_221 = arith.constant 0 : index
    %517 = vector.load %arg24[%516, %c0_220, %c0_221] : memref<8x8x32xf32, #tpu.memory_space<vmem>>, vector<1x8x32xf32>
    %518 = vector.shape_cast %517 : vector<1x8x32xf32> to vector<8x32xf32>
    %519 = vector.shape_cast %511 : vector<8x32xf32> to vector<1x8x32xf32>
    tpu.vector_store %arg24[%516, %c0_220, %c0_221], %519 {strides = array<i32>} : memref<8x8x32xf32, #tpu.memory_space<vmem>>, vector<1x8x32xf32>,
    %c7_i32 = arith.constant 7 : i32
    %c0_222 = arith.constant 0 : index
    %c0_223 = arith.constant 0 : index
    %520 = vector.load %arg19[%c0_222, %c0_223] : memref<8x32xf32, #tpu.memory_space<vmem>>, vector<8x32xf32>
    %c0_224 = arith.constant 0 : index
    %c0_225 = arith.constant 0 : index
    %521 = vector.load %arg20[%c0_224, %c0_225] : memref<8x32xf32, #tpu.memory_space<vmem>>, vector<8x32xf32>
    %c0_226 = arith.constant 0 : index
    %c0_227 = arith.constant 0 : index
    %522 = vector.load %arg21[%c0_226, %c0_227] : memref<8x32xf32, #tpu.memory_space<vmem>>, vector<8x32xf32>
    %c0_228 = arith.constant 0 : index
    %c0_229 = arith.constant 0 : index
    %523 = vector.load %arg22[%c0_228, %c0_229] : memref<8x32xf32, #tpu.memory_space<vmem>>, vector<8x32xf32>
    %524 = arith.index_cast %c7_i32 : i32 to index
    %c0_230 = arith.constant 0 : index
    %c0_231 = arith.constant 0 : index
    %525 = vector.load %arg23[%524, %c0_230, %c0_231] : memref<8x8x128xf32, #tpu.memory_space<vmem>>, vector<1x8x128xf32>
    %526 = vector.shape_cast %525 : vector<1x8x128xf32> to vector<8x128xf32>
    %cst_232 = arith.constant dense<0.000000e+00> : vector<8x128xf32>
    %527 = tpu.matmul %520, %12, %cst_232 {dimension_numbers = #tpu.dot_dimension_numbers<[1], [0], [0], [1], [0, 0, 1, 1], [], []>} : vector<8x32xf32>, vector<32x128xf32>, vector<8x128xf32> -> vector<8x128xf32>
    %528 = arith.addf %526, %527 : vector<8x128xf32>
    %529 = vector.extract_strided_slice %528 {offsets = [0, 0], sizes = [8, 32], strides = [1, 1]} : vector<8x128xf32> to vector<8x32xf32>
    %530 = arith.negf %529 : vector<8x32xf32>
    %531 = math.exp %530 : vector<8x32xf32>
    %cst_233 = arith.constant 1.000000e+00 : f32
    %532 = vector.broadcast %cst_233 : f32 to vector<8x32xf32>
    %533 = arith.addf %532, %531 : vector<8x32xf32>
    %534 = arith.divf %532, %533 : vector<8x32xf32>
    %535 = vector.extract_strided_slice %528 {offsets = [0, 32], sizes = [8, 32], strides = [1, 1]} : vector<8x128xf32> to vector<8x32xf32>
    %536 = arith.negf %535 : vector<8x32xf32>
    %537 = math.exp %536 : vector<8x32xf32>
    %cst_234 = arith.constant 1.000000e+00 : f32
    %538 = vector.broadcast %cst_234 : f32 to vector<8x32xf32>
    %539 = arith.addf %538, %537 : vector<8x32xf32>
    %540 = arith.divf %538, %539 : vector<8x32xf32>
    %541 = vector.extract_strided_slice %528 {offsets = [0, 64], sizes = [8, 32], strides = [1, 1]} : vector<8x128xf32> to vector<8x32xf32>
    %542 = math.tanh %541 : vector<8x32xf32>
    %543 = vector.extract_strided_slice %528 {offsets = [0, 96], sizes = [8, 32], strides = [1, 1]} : vector<8x128xf32> to vector<8x32xf32>
    %544 = arith.negf %543 : vector<8x32xf32>
    %545 = math.exp %544 : vector<8x32xf32>
    %cst_235 = arith.constant 1.000000e+00 : f32
    %546 = vector.broadcast %cst_235 : f32 to vector<8x32xf32>
    %547 = arith.addf %546, %545 : vector<8x32xf32>
    %548 = arith.divf %546, %547 : vector<8x32xf32>
    %549 = arith.mulf %540, %521 : vector<8x32xf32>
    %550 = arith.mulf %534, %542 : vector<8x32xf32>
    %551 = arith.addf %549, %550 : vector<8x32xf32>
    %552 = math.tanh %551 : vector<8x32xf32>
    %553 = arith.mulf %548, %552 : vector<8x32xf32>
    %cst_236 = arith.constant dense<0.000000e+00> : vector<8x128xf32>
    %554 = tpu.matmul %553, %13, %cst_236 {dimension_numbers = #tpu.dot_dimension_numbers<[1], [0], [0], [1], [0, 0, 1, 1], [], []>} : vector<8x32xf32>, vector<32x128xf32>, vector<8x128xf32> -> vector<8x128xf32>
    %cst_237 = arith.constant dense<0.000000e+00> : vector<8x128xf32>
    %555 = tpu.matmul %522, %14, %cst_237 {dimension_numbers = #tpu.dot_dimension_numbers<[1], [0], [0], [1], [0, 0, 1, 1], [], []>} : vector<8x32xf32>, vector<32x128xf32>, vector<8x128xf32> -> vector<8x128xf32>
    %556 = arith.addf %554, %555 : vector<8x128xf32>
    %557 = vector.broadcast %15 : vector<1x128xf32> to vector<8x128xf32>
    %558 = arith.addf %556, %557 : vector<8x128xf32>
    %559 = vector.extract_strided_slice %558 {offsets = [0, 0], sizes = [8, 32], strides = [1, 1]} : vector<8x128xf32> to vector<8x32xf32>
    %560 = arith.negf %559 : vector<8x32xf32>
    %561 = math.exp %560 : vector<8x32xf32>
    %cst_238 = arith.constant 1.000000e+00 : f32
    %562 = vector.broadcast %cst_238 : f32 to vector<8x32xf32>
    %563 = arith.addf %562, %561 : vector<8x32xf32>
    %564 = arith.divf %562, %563 : vector<8x32xf32>
    %565 = vector.extract_strided_slice %558 {offsets = [0, 32], sizes = [8, 32], strides = [1, 1]} : vector<8x128xf32> to vector<8x32xf32>
    %566 = arith.negf %565 : vector<8x32xf32>
    %567 = math.exp %566 : vector<8x32xf32>
    %cst_239 = arith.constant 1.000000e+00 : f32
    %568 = vector.broadcast %cst_239 : f32 to vector<8x32xf32>
    %569 = arith.addf %568, %567 : vector<8x32xf32>
    %570 = arith.divf %568, %569 : vector<8x32xf32>
    %571 = vector.extract_strided_slice %558 {offsets = [0, 64], sizes = [8, 32], strides = [1, 1]} : vector<8x128xf32> to vector<8x32xf32>
    %572 = math.tanh %571 : vector<8x32xf32>
    %573 = vector.extract_strided_slice %558 {offsets = [0, 96], sizes = [8, 32], strides = [1, 1]} : vector<8x128xf32> to vector<8x32xf32>
    %574 = arith.negf %573 : vector<8x32xf32>
    %575 = math.exp %574 : vector<8x32xf32>
    %cst_240 = arith.constant 1.000000e+00 : f32
    %576 = vector.broadcast %cst_240 : f32 to vector<8x32xf32>
    %577 = arith.addf %576, %575 : vector<8x32xf32>
    %578 = arith.divf %576, %577 : vector<8x32xf32>
    %579 = arith.mulf %570, %523 : vector<8x32xf32>
    %580 = arith.mulf %564, %572 : vector<8x32xf32>
    %581 = arith.addf %579, %580 : vector<8x32xf32>
    %582 = math.tanh %581 : vector<8x32xf32>
    %583 = arith.mulf %578, %582 : vector<8x32xf32>
    %c0_241 = arith.constant 0 : index
    %c0_242 = arith.constant 0 : index
    %584 = vector.load %arg19[%c0_241, %c0_242] : memref<8x32xf32, #tpu.memory_space<vmem>>, vector<8x32xf32>
    tpu.vector_store %arg19[%c0_241, %c0_242], %553 {strides = array<i32>} : memref<8x32xf32, #tpu.memory_space<vmem>>, vector<8x32xf32>,
    %c0_243 = arith.constant 0 : index
    %c0_244 = arith.constant 0 : index
    %585 = vector.load %arg20[%c0_243, %c0_244] : memref<8x32xf32, #tpu.memory_space<vmem>>, vector<8x32xf32>
    tpu.vector_store %arg20[%c0_243, %c0_244], %551 {strides = array<i32>} : memref<8x32xf32, #tpu.memory_space<vmem>>, vector<8x32xf32>,
    %c0_245 = arith.constant 0 : index
    %c0_246 = arith.constant 0 : index
    %586 = vector.load %arg21[%c0_245, %c0_246] : memref<8x32xf32, #tpu.memory_space<vmem>>, vector<8x32xf32>
    tpu.vector_store %arg21[%c0_245, %c0_246], %583 {strides = array<i32>} : memref<8x32xf32, #tpu.memory_space<vmem>>, vector<8x32xf32>,
    %c0_247 = arith.constant 0 : index
    %c0_248 = arith.constant 0 : index
    %587 = vector.load %arg22[%c0_247, %c0_248] : memref<8x32xf32, #tpu.memory_space<vmem>>, vector<8x32xf32>
    tpu.vector_store %arg22[%c0_247, %c0_248], %581 {strides = array<i32>} : memref<8x32xf32, #tpu.memory_space<vmem>>, vector<8x32xf32>,
    %588 = arith.index_cast %c7_i32 : i32 to index
    %c0_249 = arith.constant 0 : index
    %c0_250 = arith.constant 0 : index
    %589 = vector.load %arg24[%588, %c0_249, %c0_250] : memref<8x8x32xf32, #tpu.memory_space<vmem>>, vector<1x8x32xf32>
    %590 = vector.shape_cast %589 : vector<1x8x32xf32> to vector<8x32xf32>
    %591 = vector.shape_cast %583 : vector<8x32xf32> to vector<1x8x32xf32>
    tpu.vector_store %arg24[%588, %c0_249, %c0_250], %591 {strides = array<i32>} : memref<8x8x32xf32, #tpu.memory_space<vmem>>, vector<1x8x32xf32>,
    %c8_i32 = arith.constant 8 : i32
    %c0_251 = arith.constant 0 : index
    %c0_252 = arith.constant 0 : index
    %c0_253 = arith.constant 0 : index
    %592 = vector.load %arg24[%c0_251, %c0_252, %c0_253] : memref<8x8x32xf32, #tpu.memory_space<vmem>>, vector<8x8x32xf32>
    %593 = vector.shape_cast %592 : vector<8x8x32xf32> to vector<64x32xf32>
    %c0_254 = arith.constant 0 : index
    %c0_255 = arith.constant 0 : index
    %594 = vector.load %arg8[%c0_254, %c0_255] : memref<32x128xf32, #tpu.memory_space<vmem>>, vector<32x128xf32>
    %cst_256 = arith.constant dense<0.000000e+00> : vector<64x128xf32>
    %595 = tpu.matmul %593, %594, %cst_256 {dimension_numbers = #tpu.dot_dimension_numbers<[1], [0], [0], [1], [0, 0, 1, 1], [], []>} : vector<64x32xf32>, vector<32x128xf32>, vector<64x128xf32> -> vector<64x128xf32>
    %c0_257 = arith.constant 0 : index
    %c0_258 = arith.constant 0 : index
    %596 = vector.load %arg9[%c0_257, %c0_258] : memref<1x128xf32, #tpu.memory_space<vmem>>, vector<1x128xf32>
    %597 = vector.broadcast %596 : vector<1x128xf32> to vector<64x128xf32>
    %598 = arith.addf %595, %597 : vector<64x128xf32>
    %599 = vector.shape_cast %598 : vector<64x128xf32> to vector<8x8x128xf32>
    %c0_259 = arith.constant 0 : index
    %c0_260 = arith.constant 0 : index
    %c0_261 = arith.constant 0 : index
    %600 = vector.load %arg14[%c0_259, %c0_260, %c0_261] : memref<8x8x128xf32, #tpu.memory_space<vmem>>, vector<8x8x128xf32>
    tpu.vector_store %arg14[%c0_259, %c0_260, %c0_261], %599 {strides = array<i32>} : memref<8x8x128xf32, #tpu.memory_space<vmem>>, vector<8x8x128xf32>,
    %c0_i32_262 = arith.constant 0 : i32
    %601 = arith.cmpi eq, %arg0, %c0_i32_262 : i32
    %602 = arith.extui %601 : i1 to i32
    %c0_i32_263 = arith.constant 0 : i32
    %603 = arith.cmpi ne, %602, %c0_i32_263 : i32
    scf.if %603 {
      %c0_264 = arith.constant 0 : index
      %c0_265 = arith.constant 0 : index
      %604 = vector.load %arg19[%c0_264, %c0_265] : memref<8x32xf32, #tpu.memory_space<vmem>>, vector<8x32xf32>
      %c0_266 = arith.constant 0 : index
      %c0_267 = arith.constant 0 : index
      %605 = vector.load %arg15[%c0_266, %c0_267] : memref<8x32xf32, #tpu.memory_space<vmem>>, vector<8x32xf32>
      tpu.vector_store %arg15[%c0_266, %c0_267], %604 {strides = array<i32>} : memref<8x32xf32, #tpu.memory_space<vmem>>, vector<8x32xf32>,
      %c0_268 = arith.constant 0 : index
      %c0_269 = arith.constant 0 : index
      %606 = vector.load %arg20[%c0_268, %c0_269] : memref<8x32xf32, #tpu.memory_space<vmem>>, vector<8x32xf32>
      %c0_270 = arith.constant 0 : index
      %c0_271 = arith.constant 0 : index
      %607 = vector.load %arg16[%c0_270, %c0_271] : memref<8x32xf32, #tpu.memory_space<vmem>>, vector<8x32xf32>
      tpu.vector_store %arg16[%c0_270, %c0_271], %606 {strides = array<i32>} : memref<8x32xf32, #tpu.memory_space<vmem>>, vector<8x32xf32>,
      %c0_272 = arith.constant 0 : index
      %c0_273 = arith.constant 0 : index
      %608 = vector.load %arg21[%c0_272, %c0_273] : memref<8x32xf32, #tpu.memory_space<vmem>>, vector<8x32xf32>
      %c0_274 = arith.constant 0 : index
      %c0_275 = arith.constant 0 : index
      %609 = vector.load %arg17[%c0_274, %c0_275] : memref<8x32xf32, #tpu.memory_space<vmem>>, vector<8x32xf32>
      tpu.vector_store %arg17[%c0_274, %c0_275], %608 {strides = array<i32>} : memref<8x32xf32, #tpu.memory_space<vmem>>, vector<8x32xf32>,
      %c0_276 = arith.constant 0 : index
      %c0_277 = arith.constant 0 : index
      %610 = vector.load %arg22[%c0_276, %c0_277] : memref<8x32xf32, #tpu.memory_space<vmem>>, vector<8x32xf32>
      %c0_278 = arith.constant 0 : index
      %c0_279 = arith.constant 0 : index
      %611 = vector.load %arg18[%c0_278, %c0_279] : memref<8x32xf32, #tpu.memory_space<vmem>>, vector<8x32xf32>
      tpu.vector_store %arg18[%c0_278, %c0_279], %610 {strides = array<i32>} : memref<8x32xf32, #tpu.memory_space<vmem>>, vector<8x32xf32>,
    } else {
    }
    return
  }
  func.func @transform_0(%arg0: i32) -> (i32, i32, i32) {
    %c0_i32 = arith.constant 0 : i32
    %c0_i32_0 = arith.constant 0 : i32
    %c0_i32_1 = arith.constant 0 : i32
    return %arg0, %c0_i32, %c0_i32_0 : i32, i32, i32
  }
  func.func @transform_1(%arg0: i32) -> (i32, i32) {
    %c0_i32 = arith.constant 0 : i32
    %c0_i32_0 = arith.constant 0 : i32
    %c0_i32_1 = arith.constant 0 : i32
    return %c0_i32, %c0_i32_0 : i32, i32
  }
  func.func @transform_2(%arg0: i32) -> (i32, i32) {
    %c0_i32 = arith.constant 0 : i32
    %c0_i32_0 = arith.constant 0 : i32
    %c0_i32_1 = arith.constant 0 : i32
    return %c0_i32, %c0_i32_0 : i32, i32
  }
  func.func @transform_3(%arg0: i32) -> (i32, i32) {
    %c0_i32 = arith.constant 0 : i32
    %c0_i32_0 = arith.constant 0 : i32
    %c0_i32_1 = arith.constant 0 : i32
    return %c0_i32, %c0_i32_0 : i32, i32
  }
  func.func @transform_4(%arg0: i32) -> (i32, i32) {
    %c0_i32 = arith.constant 0 : i32
    %c0_i32_0 = arith.constant 0 : i32
    %c0_i32_1 = arith.constant 0 : i32
    return %c0_i32, %c0_i32_0 : i32, i32
  }
  func.func @transform_5(%arg0: i32) -> (i32, i32) {
    %c0_i32 = arith.constant 0 : i32
    %c0_i32_0 = arith.constant 0 : i32
    %c0_i32_1 = arith.constant 0 : i32
    return %c0_i32, %c0_i32_0 : i32, i32
  }
  func.func @transform_6(%arg0: i32) -> (i32, i32) {
    %c0_i32 = arith.constant 0 : i32
    %c0_i32_0 = arith.constant 0 : i32
    %c0_i32_1 = arith.constant 0 : i32
    return %c0_i32, %c0_i32_0 : i32, i32
  }
  func.func @transform_7(%arg0: i32) -> (i32, i32) {
    %c0_i32 = arith.constant 0 : i32
    %c0_i32_0 = arith.constant 0 : i32
    %c0_i32_1 = arith.constant 0 : i32
    return %c0_i32, %c0_i32_0 : i32, i32
  }
  func.func @transform_8(%arg0: i32) -> (i32, i32) {
    %c0_i32 = arith.constant 0 : i32
    %c0_i32_0 = arith.constant 0 : i32
    %c0_i32_1 = arith.constant 0 : i32
    return %c0_i32, %c0_i32_0 : i32, i32
  }
  func.func @transform_9(%arg0: i32) -> (i32, i32) {
    %c0_i32 = arith.constant 0 : i32
    %c0_i32_0 = arith.constant 0 : i32
    %c0_i32_1 = arith.constant 0 : i32
    return %c0_i32, %c0_i32_0 : i32, i32
  }
  func.func @transform_10(%arg0: i32) -> (i32, i32) {
    %c0_i32 = arith.constant 0 : i32
    %c0_i32_0 = arith.constant 0 : i32
    %c0_i32_1 = arith.constant 0 : i32
    return %c0_i32, %c0_i32_0 : i32, i32
  }
  func.func @transform_11(%arg0: i32) -> (i32, i32) {
    %c0_i32 = arith.constant 0 : i32
    %c0_i32_0 = arith.constant 0 : i32
    %c0_i32_1 = arith.constant 0 : i32
    return %c0_i32, %c0_i32_0 : i32, i32
  }
  func.func @transform_12(%arg0: i32) -> (i32, i32) {
    %c0_i32 = arith.constant 0 : i32
    %c0_i32_0 = arith.constant 0 : i32
    %c0_i32_1 = arith.constant 0 : i32
    return %c0_i32, %c0_i32_0 : i32, i32
  }
  func.func @transform_13(%arg0: i32) -> (i32, i32, i32) {
    %c0_i32 = arith.constant 0 : i32
    %c0_i32_0 = arith.constant 0 : i32
    %c0_i32_1 = arith.constant 0 : i32
    return %arg0, %c0_i32, %c0_i32_0 : i32, i32, i32
  }
  func.func @transform_14(%arg0: i32) -> (i32, i32) {
    %c0_i32 = arith.constant 0 : i32
    %c0_i32_0 = arith.constant 0 : i32
    %c0_i32_1 = arith.constant 0 : i32
    return %c0_i32, %c0_i32_0 : i32, i32
  }
  func.func @transform_15(%arg0: i32) -> (i32, i32) {
    %c0_i32 = arith.constant 0 : i32
    %c0_i32_0 = arith.constant 0 : i32
    %c0_i32_1 = arith.constant 0 : i32
    return %c0_i32, %c0_i32_0 : i32, i32
  }
  func.func @transform_16(%arg0: i32) -> (i32, i32) {
    %c0_i32 = arith.constant 0 : i32
    %c0_i32_0 = arith.constant 0 : i32
    %c0_i32_1 = arith.constant 0 : i32
    return %c0_i32, %c0_i32_0 : i32, i32
  }
  func.func @transform_17(%arg0: i32) -> (i32, i32) {
    %c0_i32 = arith.constant 0 : i32
    %c0_i32_0 = arith.constant 0 : i32
    %c0_i32_1 = arith.constant 0 : i32
    return %c0_i32, %c0_i32_0 : i32, i32
  }
}

</mosaic_0001>

<llo_original>
// kernel: tpu_custom_call.1
$region0: #{tpu_custom_call.1}
  #allocation0 [shape = 'u32[]', space=smem, size = 0x4, offset = 0x4, fixed_abs, tag = 'smem constant byte address 0x4 - core index']
  #allocation1 [shape = 'u32[144,128]{1,0:T(1,128)}', space=vmem, size = 0x12000, scoped, tag = 'internal scratch']
  #allocation2 [shape = 'f32[8,32]{1,0:T(8,128)}', space=vmem, size = 0x1000, scoped, tag = 'scratch operand']
  #allocation3 [shape = 'f32[8,32]{1,0:T(8,128)}', space=vmem, size = 0x1000, scoped, tag = 'scratch operand']
  #allocation4 [shape = 'f32[8,32]{1,0:T(8,128)}', space=vmem, size = 0x1000, scoped, tag = 'scratch operand']
  #allocation5 [shape = 'f32[8,32]{1,0:T(8,128)}', space=vmem, size = 0x1000, scoped, tag = 'scratch operand']
  #allocation6 [shape = 'f32[8,8,128]{2,1,0:T(8,128)}', space=vmem, size = 0x8000, scoped, tag = 'scratch operand']
  #allocation7 [shape = 'f32[8,8,32]{2,1,0:T(8,128)}', space=vmem, size = 0x8000, scoped, tag = 'scratch operand']
  %s0 = inlined_call_operand.hbm [shape: f32[8,8,32], index: 0, kind: input, shape index: {}]
  %s1 = inlined_call_operand.hbm [shape: f32[32,128], index: 1, kind: input, shape index: {}]
  %s2 = inlined_call_operand.vmem [shape: f32[1,128], index: 2, kind: input, shape index: {}]
  %s3 = inlined_call_operand.hbm [shape: f32[32,128], index: 3, kind: input, shape index: {}]
  %s4 = inlined_call_operand.hbm [shape: f32[32,128], index: 4, kind: input, shape index: {}]
  %s5 = inlined_call_operand.hbm [shape: f32[32,128], index: 5, kind: input, shape index: {}]
  %s6 = inlined_call_operand.vmem [shape: f32[1,128], index: 6, kind: input, shape index: {}]
  %s7 = inlined_call_operand.hbm [shape: f32[32,128], index: 7, kind: input, shape index: {}]
  %s8 = inlined_call_operand.hbm [shape: f32[1,128], index: 8, kind: input, shape index: {}]
  %s9 = inlined_call_operand.vmem [shape: f32[8,32], index: 9, kind: input, shape index: {}]
  %s10 = inlined_call_operand.vmem [shape: f32[8,32], index: 10, kind: input, shape index: {}]
  %s11 = inlined_call_operand.vmem [shape: f32[8,32], index: 11, kind: input, shape index: {}]
  %s12 = inlined_call_operand.vmem [shape: f32[8,32], index: 12, kind: input, shape index: {}]
  %s13 = inlined_call_operand.hbm [shape: f32[8,8,128], index: 13, kind: output, shape index: {0}]
  %s14 = inlined_call_operand.hbm [shape: f32[8,32], index: 14, kind: output, shape index: {1}]
  %s15 = inlined_call_operand.hbm [shape: f32[8,32], index: 15, kind: output, shape index: {2}]
  %s16 = inlined_call_operand.hbm [shape: f32[8,32], index: 16, kind: output, shape index: {3}]
  %s17 = inlined_call_operand.hbm [shape: f32[8,32], index: 17, kind: output, shape index: {4}]
  %18 = xla_tuple %s13, %s14, %s15, %s16, %s17
  %s19 = sld [smem:[#allocation0]]
  $region130: #{tpu_custom_call.1} parent=0
    _
  %s21 = ssub.s32 1, %s19
  %s22 = scalar_select 0, %s21, %s19
  $region1: #{tpu_custom_call.1} parent=0
    #allocation8 [shape = 'u8[32768]{0}', space=vmem, size = 0x8000, scoped, tag = 'input window, operand 0, single buffered']
    #allocation9 [shape = 's32[1]{0}', space=sflag, size = 0x4, scoped, tag = 'scoped memory for tpu_custom_call.1']
    #allocation10 [shape = 's32[1]{0}', space=sflag, size = 0x4, scoped, tag = 'scoped memory for tpu_custom_call.1']
    #allocation11 [shape = 'u8[16384]{0}', space=vmem, size = 0x4000, scoped, tag = 'input window, operand 1, single buffered']
    #allocation12 [shape = 's32[1]{0}', space=sflag, size = 0x4, scoped, tag = 'scoped memory for tpu_custom_call.1']
    #allocation13 [shape = 'u8[16384]{0}', space=vmem, size = 0x4000, scoped, tag = 'input window, operand 3, single buffered']
    #allocation14 [shape = 'u8[16384]{0}', space=vmem, size = 0x4000, scoped, tag = 'input window, operand 4, single buffered']
    #allocation15 [shape = 's32[1]{0}', space=sflag, size = 0x4, scoped, tag = 'scoped memory for tpu_custom_call.1']
    #allocation16 [shape = 'u8[16384]{0}', space=vmem, size = 0x4000, scoped, tag = 'input window, operand 5, single buffered']
    #allocation17 [shape = 'u8[16384]{0}', space=vmem, size = 0x4000, scoped, tag = 'input window, operand 7, single buffered']
    #allocation18 [shape = 's32[1]{0}', space=sflag, size = 0x4, scoped, tag = 'scoped memory for tpu_custom_call.1']
    #allocation19 [shape = 'u8[512]{0}', space=vmem, size = 0x400, scoped, tag = 'input window, operand 8, single buffered']
    #allocation20 [shape = 'u8[32768]{0}', space=vmem, size = 0x8000, scoped, tag = 'output window, operand 0, single buffered']
    #allocation21 [shape = 'u8[4096]{0}', space=vmem, size = 0x1000, scoped, tag = 'output window, operand 1, single buffered']
    #allocation22 [shape = 's32[1]{0}', space=sflag, size = 0x4, scoped, tag = 'scoped memory for tpu_custom_call.1']
    #allocation23 [shape = 'u8[4096]{0}', space=vmem, size = 0x1000, scoped, tag = 'output window, operand 2, single buffered']
    #allocation24 [shape = 'u8[4096]{0}', space=vmem, size = 0x1000, scoped, tag = 'output window, operand 3, single buffered']
    #allocation25 [shape = 's32[1]{0}', space=sflag, size = 0x4, scoped, tag = 'scoped memory for tpu_custom_call.1']
    #allocation26 [shape = 'u8[4096]{0}', space=vmem, size = 0x1000, scoped, tag = 'output window, operand 4, single buffered']
    %23 = vsyncpa [#allocation9], 0
    %24 = vsyncpa [#allocation12], 0
    %25 = vsyncpa [#allocation15], 0
    %26 = vsyncpa [#allocation18], 0
    %27 = vsyncpa [#allocation10], 0
    %28 = vsyncpa [#allocation22], 0
    %29 = vsyncpa [#allocation25], 0
    // Predicated region
    $region2: #{tpu_custom_call.1} parent=1 // pred_check
      _
    $region3: #{tpu_custom_call.1} parent=1 // pred_check_branch
      %31 = sbr.rel (0) target = $region5
    $region4: #{tpu_custom_call.1} parent=1 // pred_region
      %s33 = ssub.s32 1024, 1024
      %34 = vsyncadd [#allocation9], %s33
      %s35 = sshll.u32 [#allocation8], 4
      %s36 = int_to_ptr.vmem [resolvable:$true] %s35
      %41 = dma.hbm_to_vmem [thread:$0]  %s0, 1024, %s36, [#allocation9], 128, 128, 8
    $region5: #{tpu_custom_call.1} parent=1 // pred_fallthru
      _
    // Predicated region
    $region6: #{tpu_custom_call.1} parent=1 // pred_check
      _
    $region7: #{tpu_custom_call.1} parent=1 // pred_check_branch
      %43 = sbr.rel (0) target = $region9
    $region8: #{tpu_custom_call.1} parent=1 // pred_region
      %s45 = ssub.s32 512, 512
      %46 = vsyncadd [#allocation12], %s45
      %s47 = sshll.u32 [#allocation11], 4
      %s48 = int_to_ptr.vmem [resolvable:$true] %s47
      %53 = dma.hbm_to_vmem [thread:$0]  %s1, 512, %s48, [#allocation12], 128, 128, 8
    $region9: #{tpu_custom_call.1} parent=1 // pred_fallthru
      _
    // Predicated region
    $region10: #{tpu_custom_call.1} parent=1 // pred_check
      _
    $region11: #{tpu_custom_call.1} parent=1 // pred_check_branch
      %55 = sbr.rel (0) target = $region13
    $region12: #{tpu_custom_call.1} parent=1 // pred_region
      _
    $region13: #{tpu_custom_call.1} parent=1 // pred_fallthru
      _
    // Predicated region
    $region14: #{tpu_custom_call.1} parent=1 // pred_check
      _
    $region15: #{tpu_custom_call.1} parent=1 // pred_check_branch
      %57 = sbr.rel (0) target = $region17
    $region16: #{tpu_custom_call.1} parent=1 // pred_region
      %s59 = ssub.s32 512, 512
      %60 = vsyncadd [#allocation12], %s59
      %s61 = sshll.u32 [#allocation13], 4
      %s62 = int_to_ptr.vmem [resolvable:$true] %s61
      %67 = dma.hbm_to_vmem [thread:$0]  %s3, 512, %s62, [#allocation12], 128, 128, 8
    $region17: #{tpu_custom_call.1} parent=1 // pred_fallthru
      _
    // Predicated region
    $region18: #{tpu_custom_call.1} parent=1 // pred_check
      _
    $region19: #{tpu_custom_call.1} parent=1 // pred_check_branch
      %69 = sbr.rel (0) target = $region21
    $region20: #{tpu_custom_call.1} parent=1 // pred_region
      %s71 = ssub.s32 512, 512
      %72 = vsyncadd [#allocation15], %s71
      %s73 = sshll.u32 [#allocation14], 4
      %s74 = int_to_ptr.vmem [resolvable:$true] %s73
      %79 = dma.hbm_to_vmem [thread:$0]  %s4, 512, %s74, [#allocation15], 128, 128, 8
    $region21: #{tpu_custom_call.1} parent=1 // pred_fallthru
      _
    // Predicated region
    $region22: #{tpu_custom_call.1} parent=1 // pred_check
      _
    $region23: #{tpu_custom_call.1} parent=1 // pred_check_branch
      %81 = sbr.rel (0) target = $region25
    $region24: #{tpu_custom_call.1} parent=1 // pred_region
      %s83 = ssub.s32 512, 512
      %84 = vsyncadd [#allocation15], %s83
      %s85 = sshll.u32 [#allocation16], 4
      %s86 = int_to_ptr.vmem [resolvable:$true] %s85
      %91 = dma.hbm_to_vmem [thread:$0]  %s5, 512, %s86, [#allocation15], 128, 128, 8
    $region25: #{tpu_custom_call.1} parent=1 // pred_fallthru
      _
    // Predicated region
    $region26: #{tpu_custom_call.1} parent=1 // pred_check
      _
    $region27: #{tpu_custom_call.1} parent=1 // pred_check_branch
      %93 = sbr.rel (0) target = $region29
    $region28: #{tpu_custom_call.1} parent=1 // pred_region
      _
    $region29: #{tpu_custom_call.1} parent=1 // pred_fallthru
      _
    // Predicated region
    $region30: #{tpu_custom_call.1} parent=1 // pred_check
      _
    $region31: #{tpu_custom_call.1} parent=1 // pred_check_branch
      %95 = sbr.rel (0) target = $region33
    $region32: #{tpu_custom_call.1} parent=1 // pred_region
      %s97 = ssub.s32 512, 512
      %98 = vsyncadd [#allocation18], %s97
      %s99 = sshll.u32 [#allocation17], 4
      %s100 = int_to_ptr.vmem [resolvable:$true] %s99
      %105 = dma.hbm_to_vmem [thread:$0]  %s7, 512, %s100, [#allocation18], 128, 128, 8
    $region33: #{tpu_custom_call.1} parent=1 // pred_fallthru
      _
    // Predicated region
    $region34: #{tpu_custom_call.1} parent=1 // pred_check
      _
    $region35: #{tpu_custom_call.1} parent=1 // pred_check_branch
      %107 = sbr.rel (0) target = $region37
    $region36: #{tpu_custom_call.1} parent=1 // pred_region
      %s109 = ssub.s32 16, 16
      %110 = vsyncadd [#allocation18], %s109
      %s112 = sshll.u32 [#allocation19], 4
      %s113 = int_to_ptr.vmem [resolvable:$true] %s112
      %115 = dma.hbm_to_vmem [thread:$0]  %s8, 16, %s113, [#allocation18]
    $region37: #{tpu_custom_call.1} parent=1 // pred_fallthru
      _
    // Predicated region
    $region38: #{tpu_custom_call.1} parent=1 // pred_check
      _
    $region39: #{tpu_custom_call.1} parent=1 // pred_check_branch
      %117 = sbr.rel (0) target = $region41
    $region40: #{tpu_custom_call.1} parent=1 // pred_region
      _
    $region41: #{tpu_custom_call.1} parent=1 // pred_fallthru
      _
    // Predicated region
    $region42: #{tpu_custom_call.1} parent=1 // pred_check
      _
    $region43: #{tpu_custom_call.1} parent=1 // pred_check_branch
      %119 = sbr.rel (0) target = $region45
    $region44: #{tpu_custom_call.1} parent=1 // pred_region
      _
    $region45: #{tpu_custom_call.1} parent=1 // pred_fallthru
      _
    // Predicated region
    $region46: #{tpu_custom_call.1} parent=1 // pred_check
      _
    $region47: #{tpu_custom_call.1} parent=1 // pred_check_branch
      %121 = sbr.rel (0) target = $region49
    $region48: #{tpu_custom_call.1} parent=1 // pred_region
      _
    $region49: #{tpu_custom_call.1} parent=1 // pred_fallthru
      _
    // Predicated region
    $region50: #{tpu_custom_call.1} parent=1 // pred_check
      _
    $region51: #{tpu_custom_call.1} parent=1 // pred_check_branch
      %123 = sbr.rel (0) target = $region53
    $region52: #{tpu_custom_call.1} parent=1 // pred_region
      _
    $region53: #{tpu_custom_call.1} parent=1 // pred_fallthru
      _
    // Predicated region
    $region54: #{tpu_custom_call.1} parent=1 // pred_check
      _
    $region55: #{tpu_custom_call.1} parent=1 // pred_check_branch
      %125 = sbr.rel (0) target = $region57
    $region56: #{tpu_custom_call.1} parent=1 // pred_region
      %126 = dma.done [#allocation9], 1024
    $region57: #{tpu_custom_call.1} parent=1 // pred_fallthru
      _
    // Predicated region
    $region58: #{tpu_custom_call.1} parent=1 // pred_check
      _
    $region59: #{tpu_custom_call.1} parent=1 // pred_check_branch
      %128 = sbr.rel (0) target = $region61
    $region60: #{tpu_custom_call.1} parent=1 // pred_region
      %129 = dma.done [#allocation12], 512
    $region61: #{tpu_custom_call.1} parent=1 // pred_fallthru
      _
    // Predicated region
    $region62: #{tpu_custom_call.1} parent=1 // pred_check
      _
    $region63: #{tpu_custom_call.1} parent=1 // pred_check_branch
      %131 = sbr.rel (0) target = $region65
    $region64: #{tpu_custom_call.1} parent=1 // pred_region
      %132 = dma.done [#allocation12], 512
    $region65: #{tpu_custom_call.1} parent=1 // pred_fallthru
      _
    // Predicated region
    $region66: #{tpu_custom_call.1} parent=1 // pred_check
      _
    $region67: #{tpu_custom_call.1} parent=1 // pred_check_branch
      %134 = sbr.rel (0) target = $region69
    $region68: #{tpu_custom_call.1} parent=1 // pred_region
      %135 = dma.done [#allocation15], 512
    $region69: #{tpu_custom_call.1} parent=1 // pred_fallthru
      _
    // Predicated region
    $region70: #{tpu_custom_call.1} parent=1 // pred_check
      _
    $region71: #{tpu_custom_call.1} parent=1 // pred_check_branch
      %137 = sbr.rel (0) target = $region73
    $region72: #{tpu_custom_call.1} parent=1 // pred_region
      %138 = dma.done [#allocation15], 512
    $region73: #{tpu_custom_call.1} parent=1 // pred_fallthru
      _
    // Predicated region
    $region74: #{tpu_custom_call.1} parent=1 // pred_check
      _
    $region75: #{tpu_custom_call.1} parent=1 // pred_check_branch
      %140 = sbr.rel (0) target = $region77
    $region76: #{tpu_custom_call.1} parent=1 // pred_region
      %141 = dma.done [#allocation18], 512
    $region77: #{tpu_custom_call.1} parent=1 // pred_fallthru
      _
    // Predicated region
    $region78: #{tpu_custom_call.1} parent=1 // pred_check
      _
    $region79: #{tpu_custom_call.1} parent=1 // pred_check_branch
      %143 = sbr.rel (0) target = $region81
    $region80: #{tpu_custom_call.1} parent=1 // pred_region
      %144 = dma.done [#allocation18], 16
    $region81: #{tpu_custom_call.1} parent=1 // pred_fallthru
      _
    %p145 = scmp.eq.s32.totalorder 0, 0
    // Predicated region
    $region82: #{tpu_custom_call.1} parent=1 // pred_check
      %p146 = pneg %p145
    $region83: #{tpu_custom_call.1} parent=1 // pred_check_branch
      %148 = sbr.rel (%p146) target = $region85
    $region84: #{tpu_custom_call.1} parent=1 // pred_region
      %v149 = vld [vmem:[%s9] sm:$0xff]
      %vm150 = vcmask 261120
      %151 = vst.msk [vmem:[#allocation2] sm:$0xff] %vm150, %v149
      %v152 = vld [vmem:[%s10] sm:$0xff]
      %153 = vst.msk [vmem:[#allocation3] sm:$0xff] %vm150, %v152
      %v154 = vld [vmem:[%s11] sm:$0xff]
      %155 = vst.msk [vmem:[#allocation4] sm:$0xff] %vm150, %v154
      %v156 = vld [vmem:[%s12] sm:$0xff]
      %157 = vst.msk [vmem:[#allocation5] sm:$0xff] %vm150, %v156
    $region85: #{tpu_custom_call.1} parent=1 // pred_fallthru
      _
    %v158 = vld [vmem:[#allocation8] sm:$0xff]
    %v159 = vld [vmem:[#allocation8 + $0x8] sm:$0xff]
    %v160 = vld [vmem:[#allocation8 + $0x10] sm:$0xff]
    %v161 = vld [vmem:[#allocation8 + $0x18] sm:$0xff]
    %v162 = vld [vmem:[#allocation8 + $0x20] sm:$0xff]
    %v163 = vld [vmem:[#allocation8 + $0x28] sm:$0xff]
    %v164 = vld [vmem:[#allocation8 + $0x30] sm:$0xff]
    %v165 = vld [vmem:[#allocation8 + $0x38] sm:$0xff]
    %v166 = vld [vmem:[#allocation11] sm:$0xff]
    %v167 = vld [vmem:[#allocation11 + $0x8] sm:$0xff]
    %v168 = vld [vmem:[#allocation11 + $0x10] sm:$0xff]
    %v169 = vld [vmem:[#allocation11 + $0x18] sm:$0xff]
    %v170 = vld [vmem:[%s2] sm:$0x1]
    %v172 = vlaneseq
    %v173 = vshrl.u32 %v172, 7
    %v174 = vsub.s32 0, %v173
    %v175 = vrot.slane %v170, %v174
    %vm177 = vcmask 261120
    %v179 = vsel %vm177, %v158, 0
    %v182 = vsel %vm177, %v159, 0
    %v185 = vsel %vm177, %v160, 0
    %v188 = vsel %vm177, %v161, 0
    %v191 = vsel %vm177, %v162, 0
    %v194 = vsel %vm177, %v163, 0
    %v197 = vsel %vm177, %v164, 0
    %v200 = vsel %vm177, %v165, 0
    %202 = vmatprep.subr.mxu0 0.0
    %203 = vmatpush1.msra.mxu0 %v166
    %204 = vmatprep.subr.mxu0 0.0
    %205 = vmatpush1.msra.mxu0 %v167
    %206 = vmatprep.subr.mxu0 0.0
    %207 = vmatpush1.msra.mxu0 %v168
    %208 = vmatprep.subr.mxu0 0.0
    %209 = vmatpush1.msra.mxu0 %v169
    %210 = vmatprep.subr.mxu0 0.0
    %211 = vmatpush1.msra.mxu0 0.0
    %212 = vmatprep.subr.mxu0 0.0
    %213 = vmatpush1.msra.mxu0 0.0
    %214 = vmatprep.subr.mxu0 0.0
    %215 = vmatpush1.msra.mxu0 0.0
    %216 = vmatprep.subr.mxu0 0.0
    %217 = vmatpush1.msra.mxu0 0.0
    %218 = vmatprep.subr.mxu0 0.0
    %219 = vmatpush1.msra.mxu0 0.0
    %220 = vmatprep.subr.mxu0 0.0
    %221 = vmatpush1.msra.mxu0 0.0
    %222 = vmatprep.subr.mxu0 0.0
    %223 = vmatpush1.msra.mxu0 0.0
    %224 = vmatprep.subr.mxu0 0.0
    %225 = vmatpush1.msra.mxu0 0.0
    %226 = vmatprep.subr.mxu0 0.0
    %227 = vmatpush1.msra.mxu0 0.0
    %228 = vmatprep.subr.mxu0 0.0
    %229 = vmatpush1.msra.mxu0 0.0
    %230 = vmatprep.subr.mxu0 0.0
    %231 = vmatpush1.msra.mxu0 0.0
    %232 = vmatprep.subr.mxu0 0.0
    %233 = vmatpush1.msra.mxu0 0.0
    %234 = vmatprep.subr.mxu0 0.0
    %235 = vmatpush1.msra.mxu0 0.0
    %236 = vmatprep.subr.mxu0 0.0
    %237 = vmatpush1.msra.mxu0 0.0
    %238 = vmatprep.subr.mxu0 0.0
    %239 = vmatpush1.msra.mxu0 0.0
    %240 = vmatprep.subr.mxu0 0.0
    %241 = vmatpush1.msra.mxu0 0.0
    %242 = vmatprep.subr.mxu0 0.0
    %243 = vmatpush1.msra.mxu0 0.0
    %244 = vmatprep.subr.mxu0 0.0
    %245 = vmatpush1.msra.mxu0 0.0
    %246 = vmatprep.subr.mxu0 0.0
    %247 = vmatpush1.msra.mxu0 0.0
    %248 = vmatprep.subr.mxu0 0.0
    %249 = vmatpush1.msra.mxu0 0.0
    %250 = vmatprep.subr.mxu0 0.0
    %251 = vmatpush1.msra.mxu0 0.0
    %252 = vmatprep.subr.mxu0 0.0
    %253 = vmatpush1.msra.mxu0 0.0
    %254 = vmatprep.subr.mxu0 0.0
    %255 = vmatpush1.msra.mxu0 0.0
    %256 = vmatprep.subr.mxu0 0.0
    %257 = vmatpush1.msra.mxu0 0.0
    %258 = vmatprep.subr.mxu0 0.0
    %259 = vmatpush1.msra.mxu0 0.0
    %260 = vmatprep.subr.mxu0 0.0
    %261 = vmatpush1.msra.mxu0 0.0
    %262 = vmatprep.subr.mxu0 0.0
    %263 = vmatpush1.msra.mxu0 0.0
    %264 = vmatprep.subr.mxu0 0.0
    %265 = vmatpush1.msra.mxu0 0.0
    %266 = vmatprep.mubr.f32.mxu0 0.0
    %267 = vmatmul.mubr.f32.gmra.mrb[0].mxu0 %v179
    %v268 = vpop.f32.mrb[0].mxu0
    %v269 = vadd.f32 %v175, %v268
    %v270 = vpop.f32.mrb[0].mxu0
    %271 = vmatprep.mubr.f32.mxu0 0.0
    %272 = vmatmul.mubr.f32.gmra.mrb[0].mxu0 %v182
    %v273 = vpop.f32.mrb[0].mxu0
    %v274 = vadd.f32 %v175, %v273
    %v275 = vpop.f32.mrb[0].mxu0
    %276 = vmatprep.mubr.f32.mxu0 0.0
    %277 = vmatmul.mubr.f32.gmra.mrb[0].mxu0 %v185
    %v278 = vpop.f32.mrb[0].mxu0
    %v279 = vadd.f32 %v175, %v278
    %v280 = vpop.f32.mrb[0].mxu0
    %281 = vmatprep.mubr.f32.mxu0 0.0
    %282 = vmatmul.mubr.f32.gmra.mrb[0].mxu0 %v188
    %v283 = vpop.f32.mrb[0].mxu0
    %v284 = vadd.f32 %v175, %v283
    %v285 = vpop.f32.mrb[0].mxu0
    %286 = vmatprep.mubr.f32.mxu0 0.0
    %287 = vmatmul.mubr.f32.gmra.mrb[0].mxu0 %v191
    %v288 = vpop.f32.mrb[0].mxu0
    %v289 = vadd.f32 %v175, %v288
    %v290 = vpop.f32.mrb[0].mxu0
    %291 = vmatprep.mubr.f32.mxu0 0.0
    %292 = vmatmul.mubr.f32.gmra.mrb[0].mxu0 %v194
    %v293 = vpop.f32.mrb[0].mxu0
    %v294 = vadd.f32 %v175, %v293
    %v295 = vpop.f32.mrb[0].mxu0
    %296 = vmatprep.mubr.f32.mxu0 0.0
    %297 = vmatmul.mubr.f32.gmra.mrb[0].mxu0 %v197
    %v298 = vpop.f32.mrb[0].mxu0
    %v299 = vadd.f32 %v175, %v298
    %v300 = vpop.f32.mrb[0].mxu0
    %301 = vmatprep.mubr.f32.mxu0 0.0
    %302 = vmatmul.mubr.f32.gmra.mrb[0].mxu0 %v200
    %v303 = vpop.f32.mrb[0].mxu0
    %v304 = vadd.f32 %v175, %v303
    %v305 = vpop.f32.mrb[0].mxu0
    %306 = vdwg.mxu0
    %307 = vst [vmem:[#allocation6] sm:$0xff] %v269
    %308 = vst [vmem:[#allocation6 + $0x8] sm:$0xff] %v274
    %309 = vst [vmem:[#allocation6 + $0x10] sm:$0xff] %v279
    %310 = vst [vmem:[#allocation6 + $0x18] sm:$0xff] %v284
    %311 = vst [vmem:[#allocation6 + $0x20] sm:$0xff] %v289
    %312 = vst [vmem:[#allocation6 + $0x28] sm:$0xff] %v294
    %313 = vst [vmem:[#allocation6 + $0x30] sm:$0xff] %v299
    %314 = vst [vmem:[#allocation6 + $0x38] sm:$0xff] %v304
    %v315 = vld [vmem:[#allocation13] sm:$0xff]
    %v316 = vld [vmem:[#allocation13 + $0x8] sm:$0xff]
    %v317 = vld [vmem:[#allocation13 + $0x10] sm:$0xff]
    %v318 = vld [vmem:[#allocation13 + $0x18] sm:$0xff]
    %v319 = vld [vmem:[#allocation14] sm:$0xff]
    %v320 = vld [vmem:[#allocation14 + $0x8] sm:$0xff]
    %v321 = vld [vmem:[#allocation14 + $0x10] sm:$0xff]
    %v322 = vld [vmem:[#allocation14 + $0x18] sm:$0xff]
    %v323 = vld [vmem:[#allocation16] sm:$0xff]
    %v324 = vld [vmem:[#allocation16 + $0x8] sm:$0xff]
    %v325 = vld [vmem:[#allocation16 + $0x10] sm:$0xff]
    %v326 = vld [vmem:[#allocation16 + $0x18] sm:$0xff]
    %v327 = vld [vmem:[%s6] sm:$0x1]
    %v328 = vld [vmem:[#allocation2] sm:$0xff]
    %v329 = vld [vmem:[#allocation3] sm:$0xff]
    %v330 = vld [vmem:[#allocation4] sm:$0xff]
    %v331 = vld [vmem:[#allocation5] sm:$0xff]
    %v332 = vld [vmem:[#allocation6] sm:$0xff]
    %v334 = vsel %vm177, %v328, 0
    %336 = vmatprep.subr.mxu0 0.0
    %337 = vmatpush1.msra.mxu0 %v315
    %338 = vmatprep.subr.mxu0 0.0
    %339 = vmatpush1.msra.mxu0 %v316
    %340 = vmatprep.subr.mxu0 0.0
    %341 = vmatpush1.msra.mxu0 %v317
    %342 = vmatprep.subr.mxu0 0.0
    %343 = vmatpush1.msra.mxu0 %v318
    %344 = vmatprep.subr.mxu0 0.0
    %345 = vmatpush1.msra.mxu0 0.0
    %346 = vmatprep.subr.mxu0 0.0
    %347 = vmatpush1.msra.mxu0 0.0
    %348 = vmatprep.subr.mxu0 0.0
    %349 = vmatpush1.msra.mxu0 0.0
    %350 = vmatprep.subr.mxu0 0.0
    %351 = vmatpush1.msra.mxu0 0.0
    %352 = vmatprep.subr.mxu0 0.0
    %353 = vmatpush1.msra.mxu0 0.0
    %354 = vmatprep.subr.mxu0 0.0
    %355 = vmatpush1.msra.mxu0 0.0
    %356 = vmatprep.subr.mxu0 0.0
    %357 = vmatpush1.msra.mxu0 0.0
    %358 = vmatprep.subr.mxu0 0.0
    %359 = vmatpush1.msra.mxu0 0.0
    %360 = vmatprep.subr.mxu0 0.0
    %361 = vmatpush1.msra.mxu0 0.0
    %362 = vmatprep.subr.mxu0 0.0
    %363 = vmatpush1.msra.mxu0 0.0
    %364 = vmatprep.subr.mxu0 0.0
    %365 = vmatpush1.msra.mxu0 0.0
    %366 = vmatprep.subr.mxu0 0.0
    %367 = vmatpush1.msra.mxu0 0.0
    %368 = vmatprep.subr.mxu0 0.0
    %369 = vmatpush1.msra.mxu0 0.0
    %370 = vmatprep.subr.mxu0 0.0
    %371 = vmatpush1.msra.mxu0 0.0
    %372 = vmatprep.subr.mxu0 0.0
    %373 = vmatpush1.msra.mxu0 0.0
    %374 = vmatprep.subr.mxu0 0.0
    %375 = vmatpush1.msra.mxu0 0.0
    %376 = vmatprep.subr.mxu0 0.0
    %377 = vmatpush1.msra.mxu0 0.0
    %378 = vmatprep.subr.mxu0 0.0
    %379 = vmatpush1.msra.mxu0 0.0
    %380 = vmatprep.subr.mxu0 0.0
    %381 = vmatpush1.msra.mxu0 0.0
    %382 = vmatprep.subr.mxu0 0.0
    %383 = vmatpush1.msra.mxu0 0.0
    %384 = vmatprep.subr.mxu0 0.0
    %385 = vmatpush1.msra.mxu0 0.0
    %386 = vmatprep.subr.mxu0 0.0
    %387 = vmatpush1.msra.mxu0 0.0
    %388 = vmatprep.subr.mxu0 0.0
    %389 = vmatpush1.msra.mxu0 0.0
    %390 = vmatprep.subr.mxu0 0.0
    %391 = vmatpush1.msra.mxu0 0.0
    %392 = vmatprep.subr.mxu0 0.0
    %393 = vmatpush1.msra.mxu0 0.0
    %394 = vmatprep.subr.mxu0 0.0
    %395 = vmatpush1.msra.mxu0 0.0
    %396 = vmatprep.subr.mxu0 0.0
    %397 = vmatpush1.msra.mxu0 0.0
    %398 = vmatprep.subr.mxu0 0.0
    %399 = vmatpush1.msra.mxu0 0.0
    %400 = vmatprep.mubr.f32.mxu0 0.0
    %401 = vmatmul.mubr.f32.gmra.mrb[0].mxu0 %v334
    %v402 = vpop.f32.mrb[0].mxu0
    %v403 = vadd.f32 0.0, %v402
    %v404 = vpop.f32.mrb[0].mxu0
    %405 = vdwg.mxu0
    %v406 = vadd.f32 %v332, %v403
    %v407 = vxor.u32 %v406, 2147483648
    %v408 = vmul.f32 %v407, 1.442695
    %v409 = vpow.pop %v408
    %v410 = vadd.f32 %v409, 1.0
    %v411 = vrcp.pop %v410
    %v412 = vmul.f32 1.0, %v411
    %v413 = vtanh.pop %v406
    %415 = vrot.lane.b32.xlu0 %v329, 32
    %v416 = vpop.permute.xlu0 %415
    %v418 = vmul.f32 %v412, %v416
    %420 = vrot.lane.b32.xlu0 %v413, 64
    %v421 = vpop.permute.xlu0 %420
    %v423 = vmul.f32 %v412, %v421
    %425 = vrot.lane.b32.xlu0 %v423, 32
    %v426 = vpop.permute.xlu0 %425
    %v428 = vadd.f32 %v418, %v426
    %v429 = vtanh.pop %v428
    %431 = vrot.lane.b32.xlu0 %v429, 64
    %v432 = vpop.permute.xlu0 %431
    %v434 = vmul.f32 %v412, %v432
    %v436 = vsel %vm177, %v330, 0
    %438 = vmatprep.subr.mxu0 0.0
    %439 = vmatpush1.msra.mxu0 %v323
    %440 = vmatprep.subr.mxu0 0.0
    %441 = vmatpush1.msra.mxu0 %v324
    %442 = vmatprep.subr.mxu0 0.0
    %443 = vmatpush1.msra.mxu0 %v325
    %444 = vmatprep.subr.mxu0 0.0
    %445 = vmatpush1.msra.mxu0 %v326
    %446 = vmatprep.subr.mxu0 0.0
    %447 = vmatpush1.msra.mxu0 0.0
    %448 = vmatprep.subr.mxu0 0.0
    %449 = vmatpush1.msra.mxu0 0.0
    %450 = vmatprep.subr.mxu0 0.0
    %451 = vmatpush1.msra.mxu0 0.0
    %452 = vmatprep.subr.mxu0 0.0
    %453 = vmatpush1.msra.mxu0 0.0
    %454 = vmatprep.subr.mxu0 0.0
    %455 = vmatpush1.msra.mxu0 0.0
    %456 = vmatprep.subr.mxu0 0.0
    %457 = vmatpush1.msra.mxu0 0.0
    %458 = vmatprep.subr.mxu0 0.0
    %459 = vmatpush1.msra.mxu0 0.0
    %460 = vmatprep.subr.mxu0 0.0
    %461 = vmatpush1.msra.mxu0 0.0
    %462 = vmatprep.subr.mxu0 0.0
    %463 = vmatpush1.msra.mxu0 0.0
    %464 = vmatprep.subr.mxu0 0.0
    %465 = vmatpush1.msra.mxu0 0.0
    %466 = vmatprep.subr.mxu0 0.0
    %467 = vmatpush1.msra.mxu0 0.0
    %468 = vmatprep.subr.mxu0 0.0
    %469 = vmatpush1.msra.mxu0 0.0
    %470 = vmatprep.subr.mxu0 0.0
    %471 = vmatpush1.msra.mxu0 0.0
    %472 = vmatprep.subr.mxu0 0.0
    %473 = vmatpush1.msra.mxu0 0.0
    %474 = vmatprep.subr.mxu0 0.0
    %475 = vmatpush1.msra.mxu0 0.0
    %476 = vmatprep.subr.mxu0 0.0
    %477 = vmatpush1.msra.mxu0 0.0
    %478 = vmatprep.subr.mxu0 0.0
    %479 = vmatpush1.msra.mxu0 0.0
    %480 = vmatprep.subr.mxu0 0.0
    %481 = vmatpush1.msra.mxu0 0.0
    %482 = vmatprep.subr.mxu0 0.0
    %483 = vmatpush1.msra.mxu0 0.0
    %484 = vmatprep.subr.mxu0 0.0
    %485 = vmatpush1.msra.mxu0 0.0
    %486 = vmatprep.subr.mxu0 0.0
    %487 = vmatpush1.msra.mxu0 0.0
    %488 = vmatprep.subr.mxu0 0.0
    %489 = vmatpush1.msra.mxu0 0.0
    %490 = vmatprep.subr.mxu0 0.0
    %491 = vmatpush1.msra.mxu0 0.0
    %492 = vmatprep.subr.mxu0 0.0
    %493 = vmatpush1.msra.mxu0 0.0
    %494 = vmatprep.subr.mxu0 0.0
    %495 = vmatpush1.msra.mxu0 0.0
    %496 = vmatprep.subr.mxu0 0.0
    %497 = vmatpush1.msra.mxu0 0.0
    %498 = vmatprep.subr.mxu0 0.0
    %499 = vmatpush1.msra.mxu0 0.0
    %500 = vmatprep.subr.mxu0 0.0
    %501 = vmatpush1.msra.mxu0 0.0
    %502 = vmatprep.mubr.f32.mxu0 0.0
    %503 = vmatmul.mubr.f32.gmra.mrb[0].mxu0 %v436
    %v504 = vpop.f32.mrb[0].mxu0
    %v505 = vadd.f32 0.0, %v504
    %v506 = vpop.f32.mrb[0].mxu0
    %507 = vdwg.mxu0
    %509 = vrot.lane.b32.xlu0 %v434, 32
    %v510 = vpop.permute.xlu0 %509
    %v511 = vsel %vm177, %v510, 0
    %513 = vmatprep.subr.mxu0 0.0
    %514 = vmatpush1.msra.mxu0 %v319
    %515 = vmatprep.subr.mxu0 0.0
    %516 = vmatpush1.msra.mxu0 %v320
    %517 = vmatprep.subr.mxu0 0.0
    %518 = vmatpush1.msra.mxu0 %v321
    %519 = vmatprep.subr.mxu0 0.0
    %520 = vmatpush1.msra.mxu0 %v322
    %521 = vmatprep.subr.mxu0 0.0
    %522 = vmatpush1.msra.mxu0 0.0
    %523 = vmatprep.subr.mxu0 0.0
    %524 = vmatpush1.msra.mxu0 0.0
    %525 = vmatprep.subr.mxu0 0.0
    %526 = vmatpush1.msra.mxu0 0.0
    %527 = vmatprep.subr.mxu0 0.0
    %528 = vmatpush1.msra.mxu0 0.0
    %529 = vmatprep.subr.mxu0 0.0
    %530 = vmatpush1.msra.mxu0 0.0
    %531 = vmatprep.subr.mxu0 0.0
    %532 = vmatpush1.msra.mxu0 0.0
    %533 = vmatprep.subr.mxu0 0.0
    %534 = vmatpush1.msra.mxu0 0.0
    %535 = vmatprep.subr.mxu0 0.0
    %536 = vmatpush1.msra.mxu0 0.0
    %537 = vmatprep.subr.mxu0 0.0
    %538 = vmatpush1.msra.mxu0 0.0
    %539 = vmatprep.subr.mxu0 0.0
    %540 = vmatpush1.msra.mxu0 0.0
    %541 = vmatprep.subr.mxu0 0.0
    %542 = vmatpush1.msra.mxu0 0.0
    %543 = vmatprep.subr.mxu0 0.0
    %544 = vmatpush1.msra.mxu0 0.0
    %545 = vmatprep.subr.mxu0 0.0
    %546 = vmatpush1.msra.mxu0 0.0
    %547 = vmatprep.subr.mxu0 0.0
    %548 = vmatpush1.msra.mxu0 0.0
    %549 = vmatprep.subr.mxu0 0.0
    %550 = vmatpush1.msra.mxu0 0.0
    %551 = vmatprep.subr.mxu0 0.0
    %552 = vmatpush1.msra.mxu0 0.0
    %553 = vmatprep.subr.mxu0 0.0
    %554 = vmatpush1.msra.mxu0 0.0
    %555 = vmatprep.subr.mxu0 0.0
    %556 = vmatpush1.msra.mxu0 0.0
    %557 = vmatprep.subr.mxu0 0.0
    %558 = vmatpush1.msra.mxu0 0.0
    %559 = vmatprep.subr.mxu0 0.0
    %560 = vmatpush1.msra.mxu0 0.0
    %561 = vmatprep.subr.mxu0 0.0
    %562 = vmatpush1.msra.mxu0 0.0
    %563 = vmatprep.subr.mxu0 0.0
    %564 = vmatpush1.msra.mxu0 0.0
    %565 = vmatprep.subr.mxu0 0.0
    %566 = vmatpush1.msra.mxu0 0.0
    %567 = vmatprep.subr.mxu0 0.0
    %568 = vmatpush1.msra.mxu0 0.0
    %569 = vmatprep.subr.mxu0 0.0
    %570 = vmatpush1.msra.mxu0 0.0
    %571 = vmatprep.subr.mxu0 0.0
    %572 = vmatpush1.msra.mxu0 0.0
    %573 = vmatprep.subr.mxu0 0.0
    %574 = vmatpush1.msra.mxu0 0.0
    %575 = vmatprep.subr.mxu0 0.0
    %576 = vmatpush1.msra.mxu0 0.0
    %577 = vmatprep.mubr.f32.mxu0 0.0
    %578 = vmatmul.mubr.f32.gmra.mrb[0].mxu0 %v511
    %v579 = vpop.f32.mrb[0].mxu0
    %v580 = vadd.f32 %v505, %v579
    %v581 = vpop.f32.mrb[0].mxu0
    %582 = vdwg.mxu0
    %v584 = vlaneseq
    %v585 = vshrl.u32 %v584, 7
    %v586 = vsub.s32 0, %v585
    %v587 = vrot.slane %v327, %v586
    %v589 = vadd.f32 %v580, %v587
    %v590 = vxor.u32 %v589, 2147483648
    %v591 = vmul.f32 %v590, 1.442695
    %v592 = vpow.pop %v591
    %v593 = vadd.f32 %v592, 1.0
    %v594 = vrcp.pop %v593
    %v595 = vmul.f32 1.0, %v594
    %v596 = vtanh.pop %v589
    %598 = vrot.lane.b32.xlu0 %v331, 32
    %v599 = vpop.permute.xlu0 %598
    %v601 = vmul.f32 %v595, %v599
    %603 = vrot.lane.b32.xlu0 %v596, 64
    %v604 = vpop.permute.xlu0 %603
    %v606 = vmul.f32 %v595, %v604
    %608 = vrot.lane.b32.xlu0 %v606, 32
    %v609 = vpop.permute.xlu0 %608
    %v611 = vadd.f32 %v601, %v609
    %v612 = vtanh.pop %v611
    %614 = vrot.lane.b32.xlu0 %v612, 64
    %v615 = vpop.permute.xlu0 %614
    %v617 = vmul.f32 %v595, %v615
    %619 = vst.msk [vmem:[#allocation2] sm:$0xff] %vm177, %v510
    %621 = vrot.lane.b32.xlu0 %v428, 96
    %v622 = vpop.permute.xlu0 %621
    %624 = vst.msk [vmem:[#allocation3] sm:$0xff] %vm177, %v622
    %626 = vrot.lane.b32.xlu0 %v617, 32
    %v627 = vpop.permute.xlu0 %626
    %629 = vst.msk [vmem:[#allocation4] sm:$0xff] %vm177, %v627
    %631 = vrot.lane.b32.xlu0 %v611, 96
    %v632 = vpop.permute.xlu0 %631
    %634 = vst.msk [vmem:[#allocation5] sm:$0xff] %vm177, %v632
    %635 = vst.msk [vmem:[#allocation7] sm:$0xff] %vm177, %v627
    %v636 = vld [vmem:[#allocation2] sm:$0xff]
    %v637 = vld [vmem:[#allocation3] sm:$0xff]
    %v638 = vld [vmem:[#allocation4] sm:$0xff]
    %v639 = vld [vmem:[#allocation5] sm:$0xff]
    %s640 = scalar_lea.vmem [#allocation6], 8
    %v641 = vld [vmem:[%s640] sm:$0xff]
    %v643 = vsel %vm177, %v636, 0
    %645 = vmatprep.subr.mxu0 0.0
    %646 = vmatpush1.msra.mxu0 %v315
    %647 = vmatprep.subr.mxu0 0.0
    %648 = vmatpush1.msra.mxu0 %v316
    %649 = vmatprep.subr.mxu0 0.0
    %650 = vmatpush1.msra.mxu0 %v317
    %651 = vmatprep.subr.mxu0 0.0
    %652 = vmatpush1.msra.mxu0 %v318
    %653 = vmatprep.subr.mxu0 0.0
    %654 = vmatpush1.msra.mxu0 0.0
    %655 = vmatprep.subr.mxu0 0.0
    %656 = vmatpush1.msra.mxu0 0.0
    %657 = vmatprep.subr.mxu0 0.0
    %658 = vmatpush1.msra.mxu0 0.0
    %659 = vmatprep.subr.mxu0 0.0
    %660 = vmatpush1.msra.mxu0 0.0
    %661 = vmatprep.subr.mxu0 0.0
    %662 = vmatpush1.msra.mxu0 0.0
    %663 = vmatprep.subr.mxu0 0.0
    %664 = vmatpush1.msra.mxu0 0.0
    %665 = vmatprep.subr.mxu0 0.0
    %666 = vmatpush1.msra.mxu0 0.0
    %667 = vmatprep.subr.mxu0 0.0
    %668 = vmatpush1.msra.mxu0 0.0
    %669 = vmatprep.subr.mxu0 0.0
    %670 = vmatpush1.msra.mxu0 0.0
    %671 = vmatprep.subr.mxu0 0.0
    %672 = vmatpush1.msra.mxu0 0.0
    %673 = vmatprep.subr.mxu0 0.0
    %674 = vmatpush1.msra.mxu0 0.0
    %675 = vmatprep.subr.mxu0 0.0
    %676 = vmatpush1.msra.mxu0 0.0
    %677 = vmatprep.subr.mxu0 0.0
    %678 = vmatpush1.msra.mxu0 0.0
    %679 = vmatprep.subr.mxu0 0.0
    %680 = vmatpush1.msra.mxu0 0.0
    %681 = vmatprep.subr.mxu0 0.0
    %682 = vmatpush1.msra.mxu0 0.0
    %683 = vmatprep.subr.mxu0 0.0
    %684 = vmatpush1.msra.mxu0 0.0
    %685 = vmatprep.subr.mxu0 0.0
    %686 = vmatpush1.msra.mxu0 0.0
    %687 = vmatprep.subr.mxu0 0.0
    %688 = vmatpush1.msra.mxu0 0.0
    %689 = vmatprep.subr.mxu0 0.0
    %690 = vmatpush1.msra.mxu0 0.0
    %691 = vmatprep.subr.mxu0 0.0
    %692 = vmatpush1.msra.mxu0 0.0
    %693 = vmatprep.subr.mxu0 0.0
    %694 = vmatpush1.msra.mxu0 0.0
    %695 = vmatprep.subr.mxu0 0.0
    %696 = vmatpush1.msra.mxu0 0.0
    %697 = vmatprep.subr.mxu0 0.0
    %698 = vmatpush1.msra.mxu0 0.0
    %699 = vmatprep.subr.mxu0 0.0
    %700 = vmatpush1.msra.mxu0 0.0
    %701 = vmatprep.subr.mxu0 0.0
    %702 = vmatpush1.msra.mxu0 0.0
    %703 = vmatprep.subr.mxu0 0.0
    %704 = vmatpush1.msra.mxu0 0.0
    %705 = vmatprep.subr.mxu0 0.0
    %706 = vmatpush1.msra.mxu0 0.0
    %707 = vmatprep.subr.mxu0 0.0
    %708 = vmatpush1.msra.mxu0 0.0
    %709 = vmatprep.mubr.f32.mxu0 0.0
    %710 = vmatmul.mubr.f32.gmra.mrb[0].mxu0 %v643
    %v711 = vpop.f32.mrb[0].mxu0
    %v712 = vadd.f32 0.0, %v711
    %v713 = vpop.f32.mrb[0].mxu0
    %714 = vdwg.mxu0
    %v715 = vadd.f32 %v641, %v712
    %v716 = vxor.u32 %v715, 2147483648
    %v717 = vmul.f32 %v716, 1.442695
    %v718 = vpow.pop %v717
    %v719 = vadd.f32 %v718, 1.0
    %v720 = vrcp.pop %v719
    %v721 = vmul.f32 1.0, %v720
    %v722 = vtanh.pop %v715
    %724 = vrot.lane.b32.xlu0 %v637, 32
    %v725 = vpop.permute.xlu0 %724
    %v727 = vmul.f32 %v721, %v725
    %729 = vrot.lane.b32.xlu0 %v722, 64
    %v730 = vpop.permute.xlu0 %729
    %v732 = vmul.f32 %v721, %v730
    %734 = vrot.lane.b32.xlu0 %v732, 32
    %v735 = vpop.permute.xlu0 %734
    %v737 = vadd.f32 %v727, %v735
    %v738 = vtanh.pop %v737
    %740 = vrot.lane.b32.xlu0 %v738, 64
    %v741 = vpop.permute.xlu0 %740
    %v743 = vmul.f32 %v721, %v741
    %v745 = vsel %vm177, %v638, 0
    %747 = vmatprep.subr.mxu0 0.0
    %748 = vmatpush1.msra.mxu0 %v323
    %749 = vmatprep.subr.mxu0 0.0
    %750 = vmatpush1.msra.mxu0 %v324
    %751 = vmatprep.subr.mxu0 0.0
    %752 = vmatpush1.msra.mxu0 %v325
    %753 = vmatprep.subr.mxu0 0.0
    %754 = vmatpush1.msra.mxu0 %v326
    %755 = vmatprep.subr.mxu0 0.0
    %756 = vmatpush1.msra.mxu0 0.0
    %757 = vmatprep.subr.mxu0 0.0
    %758 = vmatpush1.msra.mxu0 0.0
    %759 = vmatprep.subr.mxu0 0.0
    %760 = vmatpush1.msra.mxu0 0.0
    %761 = vmatprep.subr.mxu0 0.0
    %762 = vmatpush1.msra.mxu0 0.0
    %763 = vmatprep.subr.mxu0 0.0
    %764 = vmatpush1.msra.mxu0 0.0
    %765 = vmatprep.subr.mxu0 0.0
    %766 = vmatpush1.msra.mxu0 0.0
    %767 = vmatprep.subr.mxu0 0.0
    %768 = vmatpush1.msra.mxu0 0.0
    %769 = vmatprep.subr.mxu0 0.0
    %770 = vmatpush1.msra.mxu0 0.0
    %771 = vmatprep.subr.mxu0 0.0
    %772 = vmatpush1.msra.mxu0 0.0
    %773 = vmatprep.subr.mxu0 0.0
    %774 = vmatpush1.msra.mxu0 0.0
    %775 = vmatprep.subr.mxu0 0.0
    %776 = vmatpush1.msra.mxu0 0.0
    %777 = vmatprep.subr.mxu0 0.0
    %778 = vmatpush1.msra.mxu0 0.0
    %779 = vmatprep.subr.mxu0 0.0
    %780 = vmatpush1.msra.mxu0 0.0
    %781 = vmatprep.subr.mxu0 0.0
    %782 = vmatpush1.msra.mxu0 0.0
    %783 = vmatprep.subr.mxu0 0.0
    %784 = vmatpush1.msra.mxu0 0.0
    %785 = vmatprep.subr.mxu0 0.0
    %786 = vmatpush1.msra.mxu0 0.0
    %787 = vmatprep.subr.mxu0 0.0
    %788 = vmatpush1.msra.mxu0 0.0
    %789 = vmatprep.subr.mxu0 0.0
    %790 = vmatpush1.msra.mxu0 0.0
    %791 = vmatprep.subr.mxu0 0.0
    %792 = vmatpush1.msra.mxu0 0.0
    %793 = vmatprep.subr.mxu0 0.0
    %794 = vmatpush1.msra.mxu0 0.0
    %795 = vmatprep.subr.mxu0 0.0
    %796 = vmatpush1.msra.mxu0 0.0
    %797 = vmatprep.subr.mxu0 0.0
    %798 = vmatpush1.msra.mxu0 0.0
    %799 = vmatprep.subr.mxu0 0.0
    %800 = vmatpush1.msra.mxu0 0.0
    %801 = vmatprep.subr.mxu0 0.0
    %802 = vmatpush1.msra.mxu0 0.0
    %803 = vmatprep.subr.mxu0 0.0
    %804 = vmatpush1.msra.mxu0 0.0
    %805 = vmatprep.subr.mxu0 0.0
    %806 = vmatpush1.msra.mxu0 0.0
    %807 = vmatprep.subr.mxu0 0.0
    %808 = vmatpush1.msra.mxu0 0.0
    %809 = vmatprep.subr.mxu0 0.0
    %810 = vmatpush1.msra.mxu0 0.0
    %811 = vmatprep.mubr.f32.mxu0 0.0
    %812 = vmatmul.mubr.f32.gmra.mrb[0].mxu0 %v745
    %v813 = vpop.f32.mrb[0].mxu0
    %v814 = vadd.f32 0.0, %v813
    %v815 = vpop.f32.mrb[0].mxu0
    %816 = vdwg.mxu0
    %818 = vrot.lane.b32.xlu0 %v743, 32
    %v819 = vpop.permute.xlu0 %818
    %v820 = vsel %vm177, %v819, 0
    %822 = vmatprep.subr.mxu0 0.0
    %823 = vmatpush1.msra.mxu0 %v319
    %824 = vmatprep.subr.mxu0 0.0
    %825 = vmatpush1.msra.mxu0 %v320
    %826 = vmatprep.subr.mxu0 0.0
    %827 = vmatpush1.msra.mxu0 %v321
    %828 = vmatprep.subr.mxu0 0.0
    %829 = vmatpush1.msra.mxu0 %v322
    %830 = vmatprep.subr.mxu0 0.0
    %831 = vmatpush1.msra.mxu0 0.0
    %832 = vmatprep.subr.mxu0 0.0
    %833 = vmatpush1.msra.mxu0 0.0
    %834 = vmatprep.subr.mxu0 0.0
    %835 = vmatpush1.msra.mxu0 0.0
    %836 = vmatprep.subr.mxu0 0.0
    %837 = vmatpush1.msra.mxu0 0.0
    %838 = vmatprep.subr.mxu0 0.0
    %839 = vmatpush1.msra.mxu0 0.0
    %840 = vmatprep.subr.mxu0 0.0
    %841 = vmatpush1.msra.mxu0 0.0
    %842 = vmatprep.subr.mxu0 0.0
    %843 = vmatpush1.msra.mxu0 0.0
    %844 = vmatprep.subr.mxu0 0.0
    %845 = vmatpush1.msra.mxu0 0.0
    %846 = vmatprep.subr.mxu0 0.0
    %847 = vmatpush1.msra.mxu0 0.0
    %848 = vmatprep.subr.mxu0 0.0
    %849 = vmatpush1.msra.mxu0 0.0
    %850 = vmatprep.subr.mxu0 0.0
    %851 = vmatpush1.msra.mxu0 0.0
    %852 = vmatprep.subr.mxu0 0.0
    %853 = vmatpush1.msra.mxu0 0.0
    %854 = vmatprep.subr.mxu0 0.0
    %855 = vmatpush1.msra.mxu0 0.0
    %856 = vmatprep.subr.mxu0 0.0
    %857 = vmatpush1.msra.mxu0 0.0
    %858 = vmatprep.subr.mxu0 0.0
    %859 = vmatpush1.msra.mxu0 0.0
    %860 = vmatprep.subr.mxu0 0.0
    %861 = vmatpush1.msra.mxu0 0.0
    %862 = vmatprep.subr.mxu0 0.0
    %863 = vmatpush1.msra.mxu0 0.0
    %864 = vmatprep.subr.mxu0 0.0
    %865 = vmatpush1.msra.mxu0 0.0
    %866 = vmatprep.subr.mxu0 0.0
    %867 = vmatpush1.msra.mxu0 0.0
    %868 = vmatprep.subr.mxu0 0.0
    %869 = vmatpush1.msra.mxu0 0.0
    %870 = vmatprep.subr.mxu0 0.0
    %871 = vmatpush1.msra.mxu0 0.0
    %872 = vmatprep.subr.mxu0 0.0
    %873 = vmatpush1.msra.mxu0 0.0
    %874 = vmatprep.subr.mxu0 0.0
    %875 = vmatpush1.msra.mxu0 0.0
    %876 = vmatprep.subr.mxu0 0.0
    %877 = vmatpush1.msra.mxu0 0.0
    %878 = vmatprep.subr.mxu0 0.0
    %879 = vmatpush1.msra.mxu0 0.0
    %880 = vmatprep.subr.mxu0 0.0
    %881 = vmatpush1.msra.mxu0 0.0
    %882 = vmatprep.subr.mxu0 0.0
    %883 = vmatpush1.msra.mxu0 0.0
    %884 = vmatprep.subr.mxu0 0.0
    %885 = vmatpush1.msra.mxu0 0.0
    %886 = vmatprep.mubr.f32.mxu0 0.0
    %887 = vmatmul.mubr.f32.gmra.mrb[0].mxu0 %v820
    %v888 = vpop.f32.mrb[0].mxu0
    %v889 = vadd.f32 %v814, %v888
    %v890 = vpop.f32.mrb[0].mxu0
    %891 = vdwg.mxu0
    %v892 = vadd.f32 %v889, %v587
    %v893 = vxor.u32 %v892, 2147483648
    %v894 = vmul.f32 %v893, 1.442695
    %v895 = vpow.pop %v894
    %v896 = vadd.f32 %v895, 1.0
    %v897 = vrcp.pop %v896
    %v898 = vmul.f32 1.0, %v897
    %v899 = vtanh.pop %v892
    %901 = vrot.lane.b32.xlu0 %v639, 32
    %v902 = vpop.permute.xlu0 %901
    %v904 = vmul.f32 %v898, %v902
    %906 = vrot.lane.b32.xlu0 %v899, 64
    %v907 = vpop.permute.xlu0 %906
    %v909 = vmul.f32 %v898, %v907
    %911 = vrot.lane.b32.xlu0 %v909, 32
    %v912 = vpop.permute.xlu0 %911
    %v914 = vadd.f32 %v904, %v912
    %v915 = vtanh.pop %v914
    %917 = vrot.lane.b32.xlu0 %v915, 64
    %v918 = vpop.permute.xlu0 %917
    %v920 = vmul.f32 %v898, %v918
    %922 = vst.msk [vmem:[#allocation2] sm:$0xff] %vm177, %v819
    %924 = vrot.lane.b32.xlu0 %v737, 96
    %v925 = vpop.permute.xlu0 %924
    %927 = vst.msk [vmem:[#allocation3] sm:$0xff] %vm177, %v925
    %929 = vrot.lane.b32.xlu0 %v920, 32
    %v930 = vpop.permute.xlu0 %929
    %932 = vst.msk [vmem:[#allocation4] sm:$0xff] %vm177, %v930
    %934 = vrot.lane.b32.xlu0 %v914, 96
    %v935 = vpop.permute.xlu0 %934
    %937 = vst.msk [vmem:[#allocation5] sm:$0xff] %vm177, %v935
    %s938 = scalar_lea.vmem [#allocation7], 8
    %939 = vst.msk [vmem:[%s938] sm:$0xff] %vm177, %v930
    %v940 = vld [vmem:[#allocation2] sm:$0xff]
    %v941 = vld [vmem:[#allocation3] sm:$0xff]
    %v942 = vld [vmem:[#allocation4] sm:$0xff]
    %v943 = vld [vmem:[#allocation5] sm:$0xff]
    %s944 = scalar_lea.vmem [#allocation6], 16
    %v945 = vld [vmem:[%s944] sm:$0xff]
    %v947 = vsel %vm177, %v940, 0
    %949 = vmatprep.subr.mxu0 0.0
    %950 = vmatpush1.msra.mxu0 %v315
    %951 = vmatprep.subr.mxu0 0.0
    %952 = vmatpush1.msra.mxu0 %v316
    %953 = vmatprep.subr.mxu0 0.0
    %954 = vmatpush1.msra.mxu0 %v317
    %955 = vmatprep.subr.mxu0 0.0
    %956 = vmatpush1.msra.mxu0 %v318
    %957 = vmatprep.subr.mxu0 0.0
    %958 = vmatpush1.msra.mxu0 0.0
    %959 = vmatprep.subr.mxu0 0.0
    %960 = vmatpush1.msra.mxu0 0.0
    %961 = vmatprep.subr.mxu0 0.0
    %962 = vmatpush1.msra.mxu0 0.0
    %963 = vmatprep.subr.mxu0 0.0
    %964 = vmatpush1.msra.mxu0 0.0
    %965 = vmatprep.subr.mxu0 0.0
    %966 = vmatpush1.msra.mxu0 0.0
    %967 = vmatprep.subr.mxu0 0.0
    %968 = vmatpush1.msra.mxu0 0.0
    %969 = vmatprep.subr.mxu0 0.0
    %970 = vmatpush1.msra.mxu0 0.0
    %971 = vmatprep.subr.mxu0 0.0
    %972 = vmatpush1.msra.mxu0 0.0
    %973 = vmatprep.subr.mxu0 0.0
    %974 = vmatpush1.msra.mxu0 0.0
    %975 = vmatprep.subr.mxu0 0.0
    %976 = vmatpush1.msra.mxu0 0.0
    %977 = vmatprep.subr.mxu0 0.0
    %978 = vmatpush1.msra.mxu0 0.0
    %979 = vmatprep.subr.mxu0 0.0
    %980 = vmatpush1.msra.mxu0 0.0
    %981 = vmatprep.subr.mxu0 0.0
    %982 = vmatpush1.msra.mxu0 0.0
    %983 = vmatprep.subr.mxu0 0.0
    %984 = vmatpush1.msra.mxu0 0.0
    %985 = vmatprep.subr.mxu0 0.0
    %986 = vmatpush1.msra.mxu0 0.0
    %987 = vmatprep.subr.mxu0 0.0
    %988 = vmatpush1.msra.mxu0 0.0
    %989 = vmatprep.subr.mxu0 0.0
    %990 = vmatpush1.msra.mxu0 0.0
    %991 = vmatprep.subr.mxu0 0.0
    %992 = vmatpush1.msra.mxu0 0.0
    %993 = vmatprep.subr.mxu0 0.0
    %994 = vmatpush1.msra.mxu0 0.0
    %995 = vmatprep.subr.mxu0 0.0
    %996 = vmatpush1.msra.mxu0 0.0
    %997 = vmatprep.subr.mxu0 0.0
    %998 = vmatpush1.msra.mxu0 0.0
    %999 = vmatprep.subr.mxu0 0.0
    %1000 = vmatpush1.msra.mxu0 0.0
    %1001 = vmatprep.subr.mxu0 0.0
    %1002 = vmatpush1.msra.mxu0 0.0
    %1003 = vmatprep.subr.mxu0 0.0
    %1004 = vmatpush1.msra.mxu0 0.0
    %1005 = vmatprep.subr.mxu0 0.0
    %1006 = vmatpush1.msra.mxu0 0.0
    %1007 = vmatprep.subr.mxu0 0.0
    %1008 = vmatpush1.msra.mxu0 0.0
    %1009 = vmatprep.subr.mxu0 0.0
    %1010 = vmatpush1.msra.mxu0 0.0
    %1011 = vmatprep.subr.mxu0 0.0
    %1012 = vmatpush1.msra.mxu0 0.0
    %1013 = vmatprep.mubr.f32.mxu0 0.0
    %1014 = vmatmul.mubr.f32.gmra.mrb[0].mxu0 %v947
    %v1015 = vpop.f32.mrb[0].mxu0
    %v1016 = vadd.f32 0.0, %v1015
    %v1017 = vpop.f32.mrb[0].mxu0
    %1018 = vdwg.mxu0
    %v1019 = vadd.f32 %v945, %v1016
    %v1020 = vxor.u32 %v1019, 2147483648
    %v1021 = vmul.f32 %v1020, 1.442695
    %v1022 = vpow.pop %v1021
    %v1023 = vadd.f32 %v1022, 1.0
    %v1024 = vrcp.pop %v1023
    %v1025 = vmul.f32 1.0, %v1024
    %v1026 = vtanh.pop %v1019
    %1028 = vrot.lane.b32.xlu0 %v941, 32
    %v1029 = vpop.permute.xlu0 %1028
    %v1031 = vmul.f32 %v1025, %v1029
    %1033 = vrot.lane.b32.xlu0 %v1026, 64
    %v1034 = vpop.permute.xlu0 %1033
    %v1036 = vmul.f32 %v1025, %v1034
    %1038 = vrot.lane.b32.xlu0 %v1036, 32
    %v1039 = vpop.permute.xlu0 %1038
    %v1041 = vadd.f32 %v1031, %v1039
    %v1042 = vtanh.pop %v1041
    %1044 = vrot.lane.b32.xlu0 %v1042, 64
    %v1045 = vpop.permute.xlu0 %1044
    %v1047 = vmul.f32 %v1025, %v1045
    %v1049 = vsel %vm177, %v942, 0
    %1051 = vmatprep.subr.mxu0 0.0
    %1052 = vmatpush1.msra.mxu0 %v323
    %1053 = vmatprep.subr.mxu0 0.0
    %1054 = vmatpush1.msra.mxu0 %v324
    %1055 = vmatprep.subr.mxu0 0.0
    %1056 = vmatpush1.msra.mxu0 %v325
    %1057 = vmatprep.subr.mxu0 0.0
    %1058 = vmatpush1.msra.mxu0 %v326
    %1059 = vmatprep.subr.mxu0 0.0
    %1060 = vmatpush1.msra.mxu0 0.0
    %1061 = vmatprep.subr.mxu0 0.0
    %1062 = vmatpush1.msra.mxu0 0.0
    %1063 = vmatprep.subr.mxu0 0.0
    %1064 = vmatpush1.msra.mxu0 0.0
    %1065 = vmatprep.subr.mxu0 0.0
    %1066 = vmatpush1.msra.mxu0 0.0
    %1067 = vmatprep.subr.mxu0 0.0
    %1068 = vmatpush1.msra.mxu0 0.0
    %1069 = vmatprep.subr.mxu0 0.0
    %1070 = vmatpush1.msra.mxu0 0.0
    %1071 = vmatprep.subr.mxu0 0.0
    %1072 = vmatpush1.msra.mxu0 0.0
    %1073 = vmatprep.subr.mxu0 0.0
    %1074 = vmatpush1.msra.mxu0 0.0
    %1075 = vmatprep.subr.mxu0 0.0
    %1076 = vmatpush1.msra.mxu0 0.0
    %1077 = vmatprep.subr.mxu0 0.0
    %1078 = vmatpush1.msra.mxu0 0.0
    %1079 = vmatprep.subr.mxu0 0.0
    %1080 = vmatpush1.msra.mxu0 0.0
    %1081 = vmatprep.subr.mxu0 0.0
    %1082 = vmatpush1.msra.mxu0 0.0
    %1083 = vmatprep.subr.mxu0 0.0
    %1084 = vmatpush1.msra.mxu0 0.0
    %1085 = vmatprep.subr.mxu0 0.0
    %1086 = vmatpush1.msra.mxu0 0.0
    %1087 = vmatprep.subr.mxu0 0.0
    %1088 = vmatpush1.msra.mxu0 0.0
    %1089 = vmatprep.subr.mxu0 0.0
    %1090 = vmatpush1.msra.mxu0 0.0
    %1091 = vmatprep.subr.mxu0 0.0
    %1092 = vmatpush1.msra.mxu0 0.0
    %1093 = vmatprep.subr.mxu0 0.0
    %1094 = vmatpush1.msra.mxu0 0.0
    %1095 = vmatprep.subr.mxu0 0.0
    %1096 = vmatpush1.msra.mxu0 0.0
    %1097 = vmatprep.subr.mxu0 0.0
    %1098 = vmatpush1.msra.mxu0 0.0
    %1099 = vmatprep.subr.mxu0 0.0
    %1100 = vmatpush1.msra.mxu0 0.0
    %1101 = vmatprep.subr.mxu0 0.0
    %1102 = vmatpush1.msra.mxu0 0.0
    %1103 = vmatprep.subr.mxu0 0.0
    %1104 = vmatpush1.msra.mxu0 0.0
    %1105 = vmatprep.subr.mxu0 0.0
    %1106 = vmatpush1.msra.mxu0 0.0
    %1107 = vmatprep.subr.mxu0 0.0
    %1108 = vmatpush1.msra.mxu0 0.0
    %1109 = vmatprep.subr.mxu0 0.0
    %1110 = vmatpush1.msra.mxu0 0.0
    %1111 = vmatprep.subr.mxu0 0.0
    %1112 = vmatpush1.msra.mxu0 0.0
    %1113 = vmatprep.subr.mxu0 0.0
    %1114 = vmatpush1.msra.mxu0 0.0
    %1115 = vmatprep.mubr.f32.mxu0 0.0
    %1116 = vmatmul.mubr.f32.gmra.mrb[0].mxu0 %v1049
    %v1117 = vpop.f32.mrb[0].mxu0
    %v1118 = vadd.f32 0.0, %v1117
    %v1119 = vpop.f32.mrb[0].mxu0
    %1120 = vdwg.mxu0
    %1122 = vrot.lane.b32.xlu0 %v1047, 32
    %v1123 = vpop.permute.xlu0 %1122
    %v1124 = vsel %vm177, %v1123, 0
    %1126 = vmatprep.subr.mxu0 0.0
    %1127 = vmatpush1.msra.mxu0 %v319
    %1128 = vmatprep.subr.mxu0 0.0
    %1129 = vmatpush1.msra.mxu0 %v320
    %1130 = vmatprep.subr.mxu0 0.0
    %1131 = vmatpush1.msra.mxu0 %v321
    %1132 = vmatprep.subr.mxu0 0.0
    %1133 = vmatpush1.msra.mxu0 %v322
    %1134 = vmatprep.subr.mxu0 0.0
    %1135 = vmatpush1.msra.mxu0 0.0
    %1136 = vmatprep.subr.mxu0 0.0
    %1137 = vmatpush1.msra.mxu0 0.0
    %1138 = vmatprep.subr.mxu0 0.0
    %1139 = vmatpush1.msra.mxu0 0.0
    %1140 = vmatprep.subr.mxu0 0.0
    %1141 = vmatpush1.msra.mxu0 0.0
    %1142 = vmatprep.subr.mxu0 0.0
    %1143 = vmatpush1.msra.mxu0 0.0
    %1144 = vmatprep.subr.mxu0 0.0
    %1145 = vmatpush1.msra.mxu0 0.0
    %1146 = vmatprep.subr.mxu0 0.0
    %1147 = vmatpush1.msra.mxu0 0.0
    %1148 = vmatprep.subr.mxu0 0.0
    %1149 = vmatpush1.msra.mxu0 0.0
    %1150 = vmatprep.subr.mxu0 0.0
    %1151 = vmatpush1.msra.mxu0 0.0
    %1152 = vmatprep.subr.mxu0 0.0
    %1153 = vmatpush1.msra.mxu0 0.0
    %1154 = vmatprep.subr.mxu0 0.0
    %1155 = vmatpush1.msra.mxu0 0.0
    %1156 = vmatprep.subr.mxu0 0.0
    %1157 = vmatpush1.msra.mxu0 0.0
    %1158 = vmatprep.subr.mxu0 0.0
    %1159 = vmatpush1.msra.mxu0 0.0
    %1160 = vmatprep.subr.mxu0 0.0
    %1161 = vmatpush1.msra.mxu0 0.0
    %1162 = vmatprep.subr.mxu0 0.0
    %1163 = vmatpush1.msra.mxu0 0.0
    %1164 = vmatprep.subr.mxu0 0.0
    %1165 = vmatpush1.msra.mxu0 0.0
    %1166 = vmatprep.subr.mxu0 0.0
    %1167 = vmatpush1.msra.mxu0 0.0
    %1168 = vmatprep.subr.mxu0 0.0
    %1169 = vmatpush1.msra.mxu0 0.0
    %1170 = vmatprep.subr.mxu0 0.0
    %1171 = vmatpush1.msra.mxu0 0.0
    %1172 = vmatprep.subr.mxu0 0.0
    %1173 = vmatpush1.msra.mxu0 0.0
    %1174 = vmatprep.subr.mxu0 0.0
    %1175 = vmatpush1.msra.mxu0 0.0
    %1176 = vmatprep.subr.mxu0 0.0
    %1177 = vmatpush1.msra.mxu0 0.0
    %1178 = vmatprep.subr.mxu0 0.0
    %1179 = vmatpush1.msra.mxu0 0.0
    %1180 = vmatprep.subr.mxu0 0.0
    %1181 = vmatpush1.msra.mxu0 0.0
    %1182 = vmatprep.subr.mxu0 0.0
    %1183 = vmatpush1.msra.mxu0 0.0
    %1184 = vmatprep.subr.mxu0 0.0
    %1185 = vmatpush1.msra.mxu0 0.0
    %1186 = vmatprep.subr.mxu0 0.0
    %1187 = vmatpush1.msra.mxu0 0.0
    %1188 = vmatprep.subr.mxu0 0.0
    %1189 = vmatpush1.msra.mxu0 0.0
    %1190 = vmatprep.mubr.f32.mxu0 0.0
    %1191 = vmatmul.mubr.f32.gmra.mrb[0].mxu0 %v1124
    %v1192 = vpop.f32.mrb[0].mxu0
    %v1193 = vadd.f32 %v1118, %v1192
    %v1194 = vpop.f32.mrb[0].mxu0
    %1195 = vdwg.mxu0
    %v1196 = vadd.f32 %v1193, %v587
    %v1197 = vxor.u32 %v1196, 2147483648
    %v1198 = vmul.f32 %v1197, 1.442695
    %v1199 = vpow.pop %v1198
    %v1200 = vadd.f32 %v1199, 1.0
    %v1201 = vrcp.pop %v1200
    %v1202 = vmul.f32 1.0, %v1201
    %v1203 = vtanh.pop %v1196
    %1205 = vrot.lane.b32.xlu0 %v943, 32
    %v1206 = vpop.permute.xlu0 %1205
    %v1208 = vmul.f32 %v1202, %v1206
    %1210 = vrot.lane.b32.xlu0 %v1203, 64
    %v1211 = vpop.permute.xlu0 %1210
    %v1213 = vmul.f32 %v1202, %v1211
    %1215 = vrot.lane.b32.xlu0 %v1213, 32
    %v1216 = vpop.permute.xlu0 %1215
    %v1218 = vadd.f32 %v1208, %v1216
    %v1219 = vtanh.pop %v1218
    %1221 = vrot.lane.b32.xlu0 %v1219, 64
    %v1222 = vpop.permute.xlu0 %1221
    %v1224 = vmul.f32 %v1202, %v1222
    %1226 = vst.msk [vmem:[#allocation2] sm:$0xff] %vm177, %v1123
    %1228 = vrot.lane.b32.xlu0 %v1041, 96
    %v1229 = vpop.permute.xlu0 %1228
    %1231 = vst.msk [vmem:[#allocation3] sm:$0xff] %vm177, %v1229
    %1233 = vrot.lane.b32.xlu0 %v1224, 32
    %v1234 = vpop.permute.xlu0 %1233
    %1236 = vst.msk [vmem:[#allocation4] sm:$0xff] %vm177, %v1234
    %1238 = vrot.lane.b32.xlu0 %v1218, 96
    %v1239 = vpop.permute.xlu0 %1238
    %1241 = vst.msk [vmem:[#allocation5] sm:$0xff] %vm177, %v1239
    %s1242 = scalar_lea.vmem [#allocation7], 16
    %1243 = vst.msk [vmem:[%s1242] sm:$0xff] %vm177, %v1234
    %v1244 = vld [vmem:[#allocation2] sm:$0xff]
    %v1245 = vld [vmem:[#allocation3] sm:$0xff]
    %v1246 = vld [vmem:[#allocation4] sm:$0xff]
    %v1247 = vld [vmem:[#allocation5] sm:$0xff]
    %s1248 = scalar_lea.vmem [#allocation6], 24
    %v1249 = vld [vmem:[%s1248] sm:$0xff]
    %v1251 = vsel %vm177, %v1244, 0
    %1253 = vmatprep.subr.mxu0 0.0
    %1254 = vmatpush1.msra.mxu0 %v315
    %1255 = vmatprep.subr.mxu0 0.0
    %1256 = vmatpush1.msra.mxu0 %v316
    %1257 = vmatprep.subr.mxu0 0.0
    %1258 = vmatpush1.msra.mxu0 %v317
    %1259 = vmatprep.subr.mxu0 0.0
    %1260 = vmatpush1.msra.mxu0 %v318
    %1261 = vmatprep.subr.mxu0 0.0
    %1262 = vmatpush1.msra.mxu0 0.0
    %1263 = vmatprep.subr.mxu0 0.0
    %1264 = vmatpush1.msra.mxu0 0.0
    %1265 = vmatprep.subr.mxu0 0.0
    %1266 = vmatpush1.msra.mxu0 0.0
    %1267 = vmatprep.subr.mxu0 0.0
    %1268 = vmatpush1.msra.mxu0 0.0
    %1269 = vmatprep.subr.mxu0 0.0
    %1270 = vmatpush1.msra.mxu0 0.0
    %1271 = vmatprep.subr.mxu0 0.0
    %1272 = vmatpush1.msra.mxu0 0.0
    %1273 = vmatprep.subr.mxu0 0.0
    %1274 = vmatpush1.msra.mxu0 0.0
    %1275 = vmatprep.subr.mxu0 0.0
    %1276 = vmatpush1.msra.mxu0 0.0
    %1277 = vmatprep.subr.mxu0 0.0
    %1278 = vmatpush1.msra.mxu0 0.0
    %1279 = vmatprep.subr.mxu0 0.0
    %1280 = vmatpush1.msra.mxu0 0.0
    %1281 = vmatprep.subr.mxu0 0.0
    %1282 = vmatpush1.msra.mxu0 0.0
    %1283 = vmatprep.subr.mxu0 0.0
    %1284 = vmatpush1.msra.mxu0 0.0
    %1285 = vmatprep.subr.mxu0 0.0
    %1286 = vmatpush1.msra.mxu0 0.0
    %1287 = vmatprep.subr.mxu0 0.0
    %1288 = vmatpush1.msra.mxu0 0.0
    %1289 = vmatprep.subr.mxu0 0.0
    %1290 = vmatpush1.msra.mxu0 0.0
    %1291 = vmatprep.subr.mxu0 0.0
    %1292 = vmatpush1.msra.mxu0 0.0
    %1293 = vmatprep.subr.mxu0 0.0
    %1294 = vmatpush1.msra.mxu0 0.0
    %1295 = vmatprep.subr.mxu0 0.0
    %1296 = vmatpush1.msra.mxu0 0.0
    %1297 = vmatprep.subr.mxu0 0.0
    %1298 = vmatpush1.msra.mxu0 0.0
    %1299 = vmatprep.subr.mxu0 0.0
    %1300 = vmatpush1.msra.mxu0 0.0
    %1301 = vmatprep.subr.mxu0 0.0
    %1302 = vmatpush1.msra.mxu0 0.0
    %1303 = vmatprep.subr.mxu0 0.0
    %1304 = vmatpush1.msra.mxu0 0.0
    %1305 = vmatprep.subr.mxu0 0.0
    %1306 = vmatpush1.msra.mxu0 0.0
    %1307 = vmatprep.subr.mxu0 0.0
    %1308 = vmatpush1.msra.mxu0 0.0
    %1309 = vmatprep.subr.mxu0 0.0
    %1310 = vmatpush1.msra.mxu0 0.0
    %1311 = vmatprep.subr.mxu0 0.0
    %1312 = vmatpush1.msra.mxu0 0.0
    %1313 = vmatprep.subr.mxu0 0.0
    %1314 = vmatpush1.msra.mxu0 0.0
    %1315 = vmatprep.subr.mxu0 0.0
    %1316 = vmatpush1.msra.mxu0 0.0
    %1317 = vmatprep.mubr.f32.mxu0 0.0
    %1318 = vmatmul.mubr.f32.gmra.mrb[0].mxu0 %v1251
    %v1319 = vpop.f32.mrb[0].mxu0
    %v1320 = vadd.f32 0.0, %v1319
    %v1321 = vpop.f32.mrb[0].mxu0
    %1322 = vdwg.mxu0
    %v1323 = vadd.f32 %v1249, %v1320
    %v1324 = vxor.u32 %v1323, 2147483648
    %v1325 = vmul.f32 %v1324, 1.442695
    %v1326 = vpow.pop %v1325
    %v1327 = vadd.f32 %v1326, 1.0
    %v1328 = vrcp.pop %v1327
    %v1329 = vmul.f32 1.0, %v1328
    %v1330 = vtanh.pop %v1323
    %1332 = vrot.lane.b32.xlu0 %v1245, 32
    %v1333 = vpop.permute.xlu0 %1332
    %v1335 = vmul.f32 %v1329, %v1333
    %1337 = vrot.lane.b32.xlu0 %v1330, 64
    %v1338 = vpop.permute.xlu0 %1337
    %v1340 = vmul.f32 %v1329, %v1338
    %1342 = vrot.lane.b32.xlu0 %v1340, 32
    %v1343 = vpop.permute.xlu0 %1342
    %v1345 = vadd.f32 %v1335, %v1343
    %v1346 = vtanh.pop %v1345
    %1348 = vrot.lane.b32.xlu0 %v1346, 64
    %v1349 = vpop.permute.xlu0 %1348
    %v1351 = vmul.f32 %v1329, %v1349
    %v1353 = vsel %vm177, %v1246, 0
    %1355 = vmatprep.subr.mxu0 0.0
    %1356 = vmatpush1.msra.mxu0 %v323
    %1357 = vmatprep.subr.mxu0 0.0
    %1358 = vmatpush1.msra.mxu0 %v324
    %1359 = vmatprep.subr.mxu0 0.0
    %1360 = vmatpush1.msra.mxu0 %v325
    %1361 = vmatprep.subr.mxu0 0.0
    %1362 = vmatpush1.msra.mxu0 %v326
    %1363 = vmatprep.subr.mxu0 0.0
    %1364 = vmatpush1.msra.mxu0 0.0
    %1365 = vmatprep.subr.mxu0 0.0
    %1366 = vmatpush1.msra.mxu0 0.0
    %1367 = vmatprep.subr.mxu0 0.0
    %1368 = vmatpush1.msra.mxu0 0.0
    %1369 = vmatprep.subr.mxu0 0.0
    %1370 = vmatpush1.msra.mxu0 0.0
    %1371 = vmatprep.subr.mxu0 0.0
    %1372 = vmatpush1.msra.mxu0 0.0
    %1373 = vmatprep.subr.mxu0 0.0
    %1374 = vmatpush1.msra.mxu0 0.0
    %1375 = vmatprep.subr.mxu0 0.0
    %1376 = vmatpush1.msra.mxu0 0.0
    %1377 = vmatprep.subr.mxu0 0.0
    %1378 = vmatpush1.msra.mxu0 0.0
    %1379 = vmatprep.subr.mxu0 0.0
    %1380 = vmatpush1.msra.mxu0 0.0
    %1381 = vmatprep.subr.mxu0 0.0
    %1382 = vmatpush1.msra.mxu0 0.0
    %1383 = vmatprep.subr.mxu0 0.0
    %1384 = vmatpush1.msra.mxu0 0.0
    %1385 = vmatprep.subr.mxu0 0.0
    %1386 = vmatpush1.msra.mxu0 0.0
    %1387 = vmatprep.subr.mxu0 0.0
    %1388 = vmatpush1.msra.mxu0 0.0
    %1389 = vmatprep.subr.mxu0 0.0
    %1390 = vmatpush1.msra.mxu0 0.0
    %1391 = vmatprep.subr.mxu0 0.0
    %1392 = vmatpush1.msra.mxu0 0.0
    %1393 = vmatprep.subr.mxu0 0.0
    %1394 = vmatpush1.msra.mxu0 0.0
    %1395 = vmatprep.subr.mxu0 0.0
    %1396 = vmatpush1.msra.mxu0 0.0
    %1397 = vmatprep.subr.mxu0 0.0
    %1398 = vmatpush1.msra.mxu0 0.0
    %1399 = vmatprep.subr.mxu0 0.0
    %1400 = vmatpush1.msra.mxu0 0.0
    %1401 = vmatprep.subr.mxu0 0.0
    %1402 = vmatpush1.msra.mxu0 0.0
    %1403 = vmatprep.subr.mxu0 0.0
    %1404 = vmatpush1.msra.mxu0 0.0
    %1405 = vmatprep.subr.mxu0 0.0
    %1406 = vmatpush1.msra.mxu0 0.0
    %1407 = vmatprep.subr.mxu0 0.0
    %1408 = vmatpush1.msra.mxu0 0.0
    %1409 = vmatprep.subr.mxu0 0.0
    %1410 = vmatpush1.msra.mxu0 0.0
    %1411 = vmatprep.subr.mxu0 0.0
    %1412 = vmatpush1.msra.mxu0 0.0
    %1413 = vmatprep.subr.mxu0 0.0
    %1414 = vmatpush1.msra.mxu0 0.0
    %1415 = vmatprep.subr.mxu0 0.0
    %1416 = vmatpush1.msra.mxu0 0.0
    %1417 = vmatprep.subr.mxu0 0.0
    %1418 = vmatpush1.msra.mxu0 0.0
    %1419 = vmatprep.mubr.f32.mxu0 0.0
    %1420 = vmatmul.mubr.f32.gmra.mrb[0].mxu0 %v1353
    %v1421 = vpop.f32.mrb[0].mxu0
    %v1422 = vadd.f32 0.0, %v1421
    %v1423 = vpop.f32.mrb[0].mxu0
    %1424 = vdwg.mxu0
    %1426 = vrot.lane.b32.xlu0 %v1351, 32
    %v1427 = vpop.permute.xlu0 %1426
    %v1428 = vsel %vm177, %v1427, 0
    %1430 = vmatprep.subr.mxu0 0.0
    %1431 = vmatpush1.msra.mxu0 %v319
    %1432 = vmatprep.subr.mxu0 0.0
    %1433 = vmatpush1.msra.mxu0 %v320
    %1434 = vmatprep.subr.mxu0 0.0
    %1435 = vmatpush1.msra.mxu0 %v321
    %1436 = vmatprep.subr.mxu0 0.0
    %1437 = vmatpush1.msra.mxu0 %v322
    %1438 = vmatprep.subr.mxu0 0.0
    %1439 = vmatpush1.msra.mxu0 0.0
    %1440 = vmatprep.subr.mxu0 0.0
    %1441 = vmatpush1.msra.mxu0 0.0
    %1442 = vmatprep.subr.mxu0 0.0
    %1443 = vmatpush1.msra.mxu0 0.0
    %1444 = vmatprep.subr.mxu0 0.0
    %1445 = vmatpush1.msra.mxu0 0.0
    %1446 = vmatprep.subr.mxu0 0.0
    %1447 = vmatpush1.msra.mxu0 0.0
    %1448 = vmatprep.subr.mxu0 0.0
    %1449 = vmatpush1.msra.mxu0 0.0
    %1450 = vmatprep.subr.mxu0 0.0
    %1451 = vmatpush1.msra.mxu0 0.0
    %1452 = vmatprep.subr.mxu0 0.0
    %1453 = vmatpush1.msra.mxu0 0.0
    %1454 = vmatprep.subr.mxu0 0.0
    %1455 = vmatpush1.msra.mxu0 0.0
    %1456 = vmatprep.subr.mxu0 0.0
    %1457 = vmatpush1.msra.mxu0 0.0
    %1458 = vmatprep.subr.mxu0 0.0
    %1459 = vmatpush1.msra.mxu0 0.0
    %1460 = vmatprep.subr.mxu0 0.0
    %1461 = vmatpush1.msra.mxu0 0.0
    %1462 = vmatprep.subr.mxu0 0.0
    %1463 = vmatpush1.msra.mxu0 0.0
    %1464 = vmatprep.subr.mxu0 0.0
    %1465 = vmatpush1.msra.mxu0 0.0
    %1466 = vmatprep.subr.mxu0 0.0
    %1467 = vmatpush1.msra.mxu0 0.0
    %1468 = vmatprep.subr.mxu0 0.0
    %1469 = vmatpush1.msra.mxu0 0.0
    %1470 = vmatprep.subr.mxu0 0.0
    %1471 = vmatpush1.msra.mxu0 0.0
    %1472 = vmatprep.subr.mxu0 0.0
    %1473 = vmatpush1.msra.mxu0 0.0
    %1474 = vmatprep.subr.mxu0 0.0
    %1475 = vmatpush1.msra.mxu0 0.0
    %1476 = vmatprep.subr.mxu0 0.0
    %1477 = vmatpush1.msra.mxu0 0.0
    %1478 = vmatprep.subr.mxu0 0.0
    %1479 = vmatpush1.msra.mxu0 0.0
    %1480 = vmatprep.subr.mxu0 0.0
    %1481 = vmatpush1.msra.mxu0 0.0
    %1482 = vmatprep.subr.mxu0 0.0
    %1483 = vmatpush1.msra.mxu0 0.0
    %1484 = vmatprep.subr.mxu0 0.0
    %1485 = vmatpush1.msra.mxu0 0.0
    %1486 = vmatprep.subr.mxu0 0.0
    %1487 = vmatpush1.msra.mxu0 0.0
    %1488 = vmatprep.subr.mxu0 0.0
    %1489 = vmatpush1.msra.mxu0 0.0
    %1490 = vmatprep.subr.mxu0 0.0
    %1491 = vmatpush1.msra.mxu0 0.0
    %1492 = vmatprep.subr.mxu0 0.0
    %1493 = vmatpush1.msra.mxu0 0.0
    %1494 = vmatprep.mubr.f32.mxu0 0.0
    %1495 = vmatmul.mubr.f32.gmra.mrb[0].mxu0 %v1428
    %v1496 = vpop.f32.mrb[0].mxu0
    %v1497 = vadd.f32 %v1422, %v1496
    %v1498 = vpop.f32.mrb[0].mxu0
    %1499 = vdwg.mxu0
    %v1500 = vadd.f32 %v1497, %v587
    %v1501 = vxor.u32 %v1500, 2147483648
    %v1502 = vmul.f32 %v1501, 1.442695
    %v1503 = vpow.pop %v1502
    %v1504 = vadd.f32 %v1503, 1.0
    %v1505 = vrcp.pop %v1504
    %v1506 = vmul.f32 1.0, %v1505
    %v1507 = vtanh.pop %v1500
    %1509 = vrot.lane.b32.xlu0 %v1247, 32
    %v1510 = vpop.permute.xlu0 %1509
    %v1512 = vmul.f32 %v1506, %v1510
    %1514 = vrot.lane.b32.xlu0 %v1507, 64
    %v1515 = vpop.permute.xlu0 %1514
    %v1517 = vmul.f32 %v1506, %v1515
    %1519 = vrot.lane.b32.xlu0 %v1517, 32
    %v1520 = vpop.permute.xlu0 %1519
    %v1522 = vadd.f32 %v1512, %v1520
    %v1523 = vtanh.pop %v1522
    %1525 = vrot.lane.b32.xlu0 %v1523, 64
    %v1526 = vpop.permute.xlu0 %1525
    %v1528 = vmul.f32 %v1506, %v1526
    %1530 = vst.msk [vmem:[#allocation2] sm:$0xff] %vm177, %v1427
    %1532 = vrot.lane.b32.xlu0 %v1345, 96
    %v1533 = vpop.permute.xlu0 %1532
    %1535 = vst.msk [vmem:[#allocation3] sm:$0xff] %vm177, %v1533
    %1537 = vrot.lane.b32.xlu0 %v1528, 32
    %v1538 = vpop.permute.xlu0 %1537
    %1540 = vst.msk [vmem:[#allocation4] sm:$0xff] %vm177, %v1538
    %1542 = vrot.lane.b32.xlu0 %v1522, 96
    %v1543 = vpop.permute.xlu0 %1542
    %1545 = vst.msk [vmem:[#allocation5] sm:$0xff] %vm177, %v1543
    %s1546 = scalar_lea.vmem [#allocation7], 24
    %1547 = vst.msk [vmem:[%s1546] sm:$0xff] %vm177, %v1538
    %v1548 = vld [vmem:[#allocation2] sm:$0xff]
    %v1549 = vld [vmem:[#allocation3] sm:$0xff]
    %v1550 = vld [vmem:[#allocation4] sm:$0xff]
    %v1551 = vld [vmem:[#allocation5] sm:$0xff]
    %s1552 = scalar_lea.vmem [#allocation6], 32
    %v1553 = vld [vmem:[%s1552] sm:$0xff]
    %v1555 = vsel %vm177, %v1548, 0
    %1557 = vmatprep.subr.mxu0 0.0
    %1558 = vmatpush1.msra.mxu0 %v315
    %1559 = vmatprep.subr.mxu0 0.0
    %1560 = vmatpush1.msra.mxu0 %v316
    %1561 = vmatprep.subr.mxu0 0.0
    %1562 = vmatpush1.msra.mxu0 %v317
    %1563 = vmatprep.subr.mxu0 0.0
    %1564 = vmatpush1.msra.mxu0 %v318
    %1565 = vmatprep.subr.mxu0 0.0
    %1566 = vmatpush1.msra.mxu0 0.0
    %1567 = vmatprep.subr.mxu0 0.0
    %1568 = vmatpush1.msra.mxu0 0.0
    %1569 = vmatprep.subr.mxu0 0.0
    %1570 = vmatpush1.msra.mxu0 0.0
    %1571 = vmatprep.subr.mxu0 0.0
    %1572 = vmatpush1.msra.mxu0 0.0
    %1573 = vmatprep.subr.mxu0 0.0
    %1574 = vmatpush1.msra.mxu0 0.0
    %1575 = vmatprep.subr.mxu0 0.0
    %1576 = vmatpush1.msra.mxu0 0.0
    %1577 = vmatprep.subr.mxu0 0.0
    %1578 = vmatpush1.msra.mxu0 0.0
    %1579 = vmatprep.subr.mxu0 0.0
    %1580 = vmatpush1.msra.mxu0 0.0
    %1581 = vmatprep.subr.mxu0 0.0
    %1582 = vmatpush1.msra.mxu0 0.0
    %1583 = vmatprep.subr.mxu0 0.0
    %1584 = vmatpush1.msra.mxu0 0.0
    %1585 = vmatprep.subr.mxu0 0.0
    %1586 = vmatpush1.msra.mxu0 0.0
    %1587 = vmatprep.subr.mxu0 0.0
    %1588 = vmatpush1.msra.mxu0 0.0
    %1589 = vmatprep.subr.mxu0 0.0
    %1590 = vmatpush1.msra.mxu0 0.0
    %1591 = vmatprep.subr.mxu0 0.0
    %1592 = vmatpush1.msra.mxu0 0.0
    %1593 = vmatprep.subr.mxu0 0.0
    %1594 = vmatpush1.msra.mxu0 0.0
    %1595 = vmatprep.subr.mxu0 0.0
    %1596 = vmatpush1.msra.mxu0 0.0
    %1597 = vmatprep.subr.mxu0 0.0
    %1598 = vmatpush1.msra.mxu0 0.0
    %1599 = vmatprep.subr.mxu0 0.0
    %1600 = vmatpush1.msra.mxu0 0.0
    %1601 = vmatprep.subr.mxu0 0.0
    %1602 = vmatpush1.msra.mxu0 0.0
    %1603 = vmatprep.subr.mxu0 0.0
    %1604 = vmatpush1.msra.mxu0 0.0
    %1605 = vmatprep.subr.mxu0 0.0
    %1606 = vmatpush1.msra.mxu0 0.0
    %1607 = vmatprep.subr.mxu0 0.0
    %1608 = vmatpush1.msra.mxu0 0.0
    %1609 = vmatprep.subr.mxu0 0.0
    %1610 = vmatpush1.msra.mxu0 0.0
    %1611 = vmatprep.subr.mxu0 0.0
    %1612 = vmatpush1.msra.mxu0 0.0
    %1613 = vmatprep.subr.mxu0 0.0
    %1614 = vmatpush1.msra.mxu0 0.0
    %1615 = vmatprep.subr.mxu0 0.0
    %1616 = vmatpush1.msra.mxu0 0.0
    %1617 = vmatprep.subr.mxu0 0.0
    %1618 = vmatpush1.msra.mxu0 0.0
    %1619 = vmatprep.subr.mxu0 0.0
    %1620 = vmatpush1.msra.mxu0 0.0
    %1621 = vmatprep.mubr.f32.mxu0 0.0
    %1622 = vmatmul.mubr.f32.gmra.mrb[0].mxu0 %v1555
    %v1623 = vpop.f32.mrb[0].mxu0
    %v1624 = vadd.f32 0.0, %v1623
    %v1625 = vpop.f32.mrb[0].mxu0
    %1626 = vdwg.mxu0
    %v1627 = vadd.f32 %v1553, %v1624
    %v1628 = vxor.u32 %v1627, 2147483648
    %v1629 = vmul.f32 %v1628, 1.442695
    %v1630 = vpow.pop %v1629
    %v1631 = vadd.f32 %v1630, 1.0
    %v1632 = vrcp.pop %v1631
    %v1633 = vmul.f32 1.0, %v1632
    %v1634 = vtanh.pop %v1627
    %1636 = vrot.lane.b32.xlu0 %v1549, 32
    %v1637 = vpop.permute.xlu0 %1636
    %v1639 = vmul.f32 %v1633, %v1637
    %1641 = vrot.lane.b32.xlu0 %v1634, 64
    %v1642 = vpop.permute.xlu0 %1641
    %v1644 = vmul.f32 %v1633, %v1642
    %1646 = vrot.lane.b32.xlu0 %v1644, 32
    %v1647 = vpop.permute.xlu0 %1646
    %v1649 = vadd.f32 %v1639, %v1647
    %v1650 = vtanh.pop %v1649
    %1652 = vrot.lane.b32.xlu0 %v1650, 64
    %v1653 = vpop.permute.xlu0 %1652
    %v1655 = vmul.f32 %v1633, %v1653
    %v1657 = vsel %vm177, %v1550, 0
    %1659 = vmatprep.subr.mxu0 0.0
    %1660 = vmatpush1.msra.mxu0 %v323
    %1661 = vmatprep.subr.mxu0 0.0
    %1662 = vmatpush1.msra.mxu0 %v324
    %1663 = vmatprep.subr.mxu0 0.0
    %1664 = vmatpush1.msra.mxu0 %v325
    %1665 = vmatprep.subr.mxu0 0.0
    %1666 = vmatpush1.msra.mxu0 %v326
    %1667 = vmatprep.subr.mxu0 0.0
    %1668 = vmatpush1.msra.mxu0 0.0
    %1669 = vmatprep.subr.mxu0 0.0
    %1670 = vmatpush1.msra.mxu0 0.0
    %1671 = vmatprep.subr.mxu0 0.0
    %1672 = vmatpush1.msra.mxu0 0.0
    %1673 = vmatprep.subr.mxu0 0.0
    %1674 = vmatpush1.msra.mxu0 0.0
    %1675 = vmatprep.subr.mxu0 0.0
    %1676 = vmatpush1.msra.mxu0 0.0
    %1677 = vmatprep.subr.mxu0 0.0
    %1678 = vmatpush1.msra.mxu0 0.0
    %1679 = vmatprep.subr.mxu0 0.0
    %1680 = vmatpush1.msra.mxu0 0.0
    %1681 = vmatprep.subr.mxu0 0.0
    %1682 = vmatpush1.msra.mxu0 0.0
    %1683 = vmatprep.subr.mxu0 0.0
    %1684 = vmatpush1.msra.mxu0 0.0
    %1685 = vmatprep.subr.mxu0 0.0
    %1686 = vmatpush1.msra.mxu0 0.0
    %1687 = vmatprep.subr.mxu0 0.0
    %1688 = vmatpush1.msra.mxu0 0.0
    %1689 = vmatprep.subr.mxu0 0.0
    %1690 = vmatpush1.msra.mxu0 0.0
    %1691 = vmatprep.subr.mxu0 0.0
    %1692 = vmatpush1.msra.mxu0 0.0
    %1693 = vmatprep.subr.mxu0 0.0
    %1694 = vmatpush1.msra.mxu0 0.0
    %1695 = vmatprep.subr.mxu0 0.0
    %1696 = vmatpush1.msra.mxu0 0.0
    %1697 = vmatprep.subr.mxu0 0.0
    %1698 = vmatpush1.msra.mxu0 0.0
    %1699 = vmatprep.subr.mxu0 0.0
    %1700 = vmatpush1.msra.mxu0 0.0
    %1701 = vmatprep.subr.mxu0 0.0
    %1702 = vmatpush1.msra.mxu0 0.0
    %1703 = vmatprep.subr.mxu0 0.0
    %1704 = vmatpush1.msra.mxu0 0.0
    %1705 = vmatprep.subr.mxu0 0.0
    %1706 = vmatpush1.msra.mxu0 0.0
    %1707 = vmatprep.subr.mxu0 0.0
    %1708 = vmatpush1.msra.mxu0 0.0
    %1709 = vmatprep.subr.mxu0 0.0
    %1710 = vmatpush1.msra.mxu0 0.0
    %1711 = vmatprep.subr.mxu0 0.0
    %1712 = vmatpush1.msra.mxu0 0.0
    %1713 = vmatprep.subr.mxu0 0.0
    %1714 = vmatpush1.msra.mxu0 0.0
    %1715 = vmatprep.subr.mxu0 0.0
    %1716 = vmatpush1.msra.mxu0 0.0
    %1717 = vmatprep.subr.mxu0 0.0
    %1718 = vmatpush1.msra.mxu0 0.0
    %1719 = vmatprep.subr.mxu0 0.0
    %1720 = vmatpush1.msra.mxu0 0.0
    %1721 = vmatprep.subr.mxu0 0.0
    %1722 = vmatpush1.msra.mxu0 0.0
    %1723 = vmatprep.mubr.f32.mxu0 0.0
    %1724 = vmatmul.mubr.f32.gmra.mrb[0].mxu0 %v1657
    %v1725 = vpop.f32.mrb[0].mxu0
    %v1726 = vadd.f32 0.0, %v1725
    %v1727 = vpop.f32.mrb[0].mxu0
    %1728 = vdwg.mxu0
    %1730 = vrot.lane.b32.xlu0 %v1655, 32
    %v1731 = vpop.permute.xlu0 %1730
    %v1732 = vsel %vm177, %v1731, 0
    %1734 = vmatprep.subr.mxu0 0.0
    %1735 = vmatpush1.msra.mxu0 %v319
    %1736 = vmatprep.subr.mxu0 0.0
    %1737 = vmatpush1.msra.mxu0 %v320
    %1738 = vmatprep.subr.mxu0 0.0
    %1739 = vmatpush1.msra.mxu0 %v321
    %1740 = vmatprep.subr.mxu0 0.0
    %1741 = vmatpush1.msra.mxu0 %v322
    %1742 = vmatprep.subr.mxu0 0.0
    %1743 = vmatpush1.msra.mxu0 0.0
    %1744 = vmatprep.subr.mxu0 0.0
    %1745 = vmatpush1.msra.mxu0 0.0
    %1746 = vmatprep.subr.mxu0 0.0
    %1747 = vmatpush1.msra.mxu0 0.0
    %1748 = vmatprep.subr.mxu0 0.0
    %1749 = vmatpush1.msra.mxu0 0.0
    %1750 = vmatprep.subr.mxu0 0.0
    %1751 = vmatpush1.msra.mxu0 0.0
    %1752 = vmatprep.subr.mxu0 0.0
    %1753 = vmatpush1.msra.mxu0 0.0
    %1754 = vmatprep.subr.mxu0 0.0
    %1755 = vmatpush1.msra.mxu0 0.0
    %1756 = vmatprep.subr.mxu0 0.0
    %1757 = vmatpush1.msra.mxu0 0.0
    %1758 = vmatprep.subr.mxu0 0.0
    %1759 = vmatpush1.msra.mxu0 0.0
    %1760 = vmatprep.subr.mxu0 0.0
    %1761 = vmatpush1.msra.mxu0 0.0
    %1762 = vmatprep.subr.mxu0 0.0
    %1763 = vmatpush1.msra.mxu0 0.0
    %1764 = vmatprep.subr.mxu0 0.0
    %1765 = vmatpush1.msra.mxu0 0.0
    %1766 = vmatprep.subr.mxu0 0.0
    %1767 = vmatpush1.msra.mxu0 0.0
    %1768 = vmatprep.subr.mxu0 0.0
    %1769 = vmatpush1.msra.mxu0 0.0
    %1770 = vmatprep.subr.mxu0 0.0
    %1771 = vmatpush1.msra.mxu0 0.0
    %1772 = vmatprep.subr.mxu0 0.0
    %1773 = vmatpush1.msra.mxu0 0.0
    %1774 = vmatprep.subr.mxu0 0.0
    %1775 = vmatpush1.msra.mxu0 0.0
    %1776 = vmatprep.subr.mxu0 0.0
    %1777 = vmatpush1.msra.mxu0 0.0
    %1778 = vmatprep.subr.mxu0 0.0
    %1779 = vmatpush1.msra.mxu0 0.0
    %1780 = vmatprep.subr.mxu0 0.0
    %1781 = vmatpush1.msra.mxu0 0.0
    %1782 = vmatprep.subr.mxu0 0.0
    %1783 = vmatpush1.msra.mxu0 0.0
    %1784 = vmatprep.subr.mxu0 0.0
    %1785 = vmatpush1.msra.mxu0 0.0
    %1786 = vmatprep.subr.mxu0 0.0
    %1787 = vmatpush1.msra.mxu0 0.0
    %1788 = vmatprep.subr.mxu0 0.0
    %1789 = vmatpush1.msra.mxu0 0.0
    %1790 = vmatprep.subr.mxu0 0.0
    %1791 = vmatpush1.msra.mxu0 0.0
    %1792 = vmatprep.subr.mxu0 0.0
    %1793 = vmatpush1.msra.mxu0 0.0
    %1794 = vmatprep.subr.mxu0 0.0
    %1795 = vmatpush1.msra.mxu0 0.0
    %1796 = vmatprep.subr.mxu0 0.0
    %1797 = vmatpush1.msra.mxu0 0.0
    %1798 = vmatprep.mubr.f32.mxu0 0.0
    %1799 = vmatmul.mubr.f32.gmra.mrb[0].mxu0 %v1732
    %v1800 = vpop.f32.mrb[0].mxu0
    %v1801 = vadd.f32 %v1726, %v1800
    %v1802 = vpop.f32.mrb[0].mxu0
    %1803 = vdwg.mxu0
    %v1804 = vadd.f32 %v1801, %v587
    %v1805 = vxor.u32 %v1804, 2147483648
    %v1806 = vmul.f32 %v1805, 1.442695
    %v1807 = vpow.pop %v1806
    %v1808 = vadd.f32 %v1807, 1.0
    %v1809 = vrcp.pop %v1808
    %v1810 = vmul.f32 1.0, %v1809
    %v1811 = vtanh.pop %v1804
    %1813 = vrot.lane.b32.xlu0 %v1551, 32
    %v1814 = vpop.permute.xlu0 %1813
    %v1816 = vmul.f32 %v1810, %v1814
    %1818 = vrot.lane.b32.xlu0 %v1811, 64
    %v1819 = vpop.permute.xlu0 %1818
    %v1821 = vmul.f32 %v1810, %v1819
    %1823 = vrot.lane.b32.xlu0 %v1821, 32
    %v1824 = vpop.permute.xlu0 %1823
    %v1826 = vadd.f32 %v1816, %v1824
    %v1827 = vtanh.pop %v1826
    %1829 = vrot.lane.b32.xlu0 %v1827, 64
    %v1830 = vpop.permute.xlu0 %1829
    %v1832 = vmul.f32 %v1810, %v1830
    %1834 = vst.msk [vmem:[#allocation2] sm:$0xff] %vm177, %v1731
    %1836 = vrot.lane.b32.xlu0 %v1649, 96
    %v1837 = vpop.permute.xlu0 %1836
    %1839 = vst.msk [vmem:[#allocation3] sm:$0xff] %vm177, %v1837
    %1841 = vrot.lane.b32.xlu0 %v1832, 32
    %v1842 = vpop.permute.xlu0 %1841
    %1844 = vst.msk [vmem:[#allocation4] sm:$0xff] %vm177, %v1842
    %1846 = vrot.lane.b32.xlu0 %v1826, 96
    %v1847 = vpop.permute.xlu0 %1846
    %1849 = vst.msk [vmem:[#allocation5] sm:$0xff] %vm177, %v1847
    %s1850 = scalar_lea.vmem [#allocation7], 32
    %1851 = vst.msk [vmem:[%s1850] sm:$0xff] %vm177, %v1842
    %v1852 = vld [vmem:[#allocation2] sm:$0xff]
    %v1853 = vld [vmem:[#allocation3] sm:$0xff]
    %v1854 = vld [vmem:[#allocation4] sm:$0xff]
    %v1855 = vld [vmem:[#allocation5] sm:$0xff]
    %s1856 = scalar_lea.vmem [#allocation6], 40
    %v1857 = vld [vmem:[%s1856] sm:$0xff]
    %v1859 = vsel %vm177, %v1852, 0
    %1861 = vmatprep.subr.mxu0 0.0
    %1862 = vmatpush1.msra.mxu0 %v315
    %1863 = vmatprep.subr.mxu0 0.0
    %1864 = vmatpush1.msra.mxu0 %v316
    %1865 = vmatprep.subr.mxu0 0.0
    %1866 = vmatpush1.msra.mxu0 %v317
    %1867 = vmatprep.subr.mxu0 0.0
    %1868 = vmatpush1.msra.mxu0 %v318
    %1869 = vmatprep.subr.mxu0 0.0
    %1870 = vmatpush1.msra.mxu0 0.0
    %1871 = vmatprep.subr.mxu0 0.0
    %1872 = vmatpush1.msra.mxu0 0.0
    %1873 = vmatprep.subr.mxu0 0.0
    %1874 = vmatpush1.msra.mxu0 0.0
    %1875 = vmatprep.subr.mxu0 0.0
    %1876 = vmatpush1.msra.mxu0 0.0
    %1877 = vmatprep.subr.mxu0 0.0
    %1878 = vmatpush1.msra.mxu0 0.0
    %1879 = vmatprep.subr.mxu0 0.0
    %1880 = vmatpush1.msra.mxu0 0.0
    %1881 = vmatprep.subr.mxu0 0.0
    %1882 = vmatpush1.msra.mxu0 0.0
    %1883 = vmatprep.subr.mxu0 0.0
    %1884 = vmatpush1.msra.mxu0 0.0
    %1885 = vmatprep.subr.mxu0 0.0
    %1886 = vmatpush1.msra.mxu0 0.0
    %1887 = vmatprep.subr.mxu0 0.0
    %1888 = vmatpush1.msra.mxu0 0.0
    %1889 = vmatprep.subr.mxu0 0.0
    %1890 = vmatpush1.msra.mxu0 0.0
    %1891 = vmatprep.subr.mxu0 0.0
    %1892 = vmatpush1.msra.mxu0 0.0
    %1893 = vmatprep.subr.mxu0 0.0
    %1894 = vmatpush1.msra.mxu0 0.0
    %1895 = vmatprep.subr.mxu0 0.0
    %1896 = vmatpush1.msra.mxu0 0.0
    %1897 = vmatprep.subr.mxu0 0.0
    %1898 = vmatpush1.msra.mxu0 0.0
    %1899 = vmatprep.subr.mxu0 0.0
    %1900 = vmatpush1.msra.mxu0 0.0
    %1901 = vmatprep.subr.mxu0 0.0
    %1902 = vmatpush1.msra.mxu0 0.0
    %1903 = vmatprep.subr.mxu0 0.0
    %1904 = vmatpush1.msra.mxu0 0.0
    %1905 = vmatprep.subr.mxu0 0.0
    %1906 = vmatpush1.msra.mxu0 0.0
    %1907 = vmatprep.subr.mxu0 0.0
    %1908 = vmatpush1.msra.mxu0 0.0
    %1909 = vmatprep.subr.mxu0 0.0
    %1910 = vmatpush1.msra.mxu0 0.0
    %1911 = vmatprep.subr.mxu0 0.0
    %1912 = vmatpush1.msra.mxu0 0.0
    %1913 = vmatprep.subr.mxu0 0.0
    %1914 = vmatpush1.msra.mxu0 0.0
    %1915 = vmatprep.subr.mxu0 0.0
    %1916 = vmatpush1.msra.mxu0 0.0
    %1917 = vmatprep.subr.mxu0 0.0
    %1918 = vmatpush1.msra.mxu0 0.0
    %1919 = vmatprep.subr.mxu0 0.0
    %1920 = vmatpush1.msra.mxu0 0.0
    %1921 = vmatprep.subr.mxu0 0.0
    %1922 = vmatpush1.msra.mxu0 0.0
    %1923 = vmatprep.subr.mxu0 0.0
    %1924 = vmatpush1.msra.mxu0 0.0
    %1925 = vmatprep.mubr.f32.mxu0 0.0
    %1926 = vmatmul.mubr.f32.gmra.mrb[0].mxu0 %v1859
    %v1927 = vpop.f32.mrb[0].mxu0
    %v1928 = vadd.f32 0.0, %v1927
    %v1929 = vpop.f32.mrb[0].mxu0
    %1930 = vdwg.mxu0
    %v1931 = vadd.f32 %v1857, %v1928
    %v1932 = vxor.u32 %v1931, 2147483648
    %v1933 = vmul.f32 %v1932, 1.442695
    %v1934 = vpow.pop %v1933
    %v1935 = vadd.f32 %v1934, 1.0
    %v1936 = vrcp.pop %v1935
    %v1937 = vmul.f32 1.0, %v1936
    %v1938 = vtanh.pop %v1931
    %1940 = vrot.lane.b32.xlu0 %v1853, 32
    %v1941 = vpop.permute.xlu0 %1940
    %v1943 = vmul.f32 %v1937, %v1941
    %1945 = vrot.lane.b32.xlu0 %v1938, 64
    %v1946 = vpop.permute.xlu0 %1945
    %v1948 = vmul.f32 %v1937, %v1946
    %1950 = vrot.lane.b32.xlu0 %v1948, 32
    %v1951 = vpop.permute.xlu0 %1950
    %v1953 = vadd.f32 %v1943, %v1951
    %v1954 = vtanh.pop %v1953
    %1956 = vrot.lane.b32.xlu0 %v1954, 64
    %v1957 = vpop.permute.xlu0 %1956
    %v1959 = vmul.f32 %v1937, %v1957
    %v1961 = vsel %vm177, %v1854, 0
    %1963 = vmatprep.subr.mxu0 0.0
    %1964 = vmatpush1.msra.mxu0 %v323
    %1965 = vmatprep.subr.mxu0 0.0
    %1966 = vmatpush1.msra.mxu0 %v324
    %1967 = vmatprep.subr.mxu0 0.0
    %1968 = vmatpush1.msra.mxu0 %v325
    %1969 = vmatprep.subr.mxu0 0.0
    %1970 = vmatpush1.msra.mxu0 %v326
    %1971 = vmatprep.subr.mxu0 0.0
    %1972 = vmatpush1.msra.mxu0 0.0
    %1973 = vmatprep.subr.mxu0 0.0
    %1974 = vmatpush1.msra.mxu0 0.0
    %1975 = vmatprep.subr.mxu0 0.0
    %1976 = vmatpush1.msra.mxu0 0.0
    %1977 = vmatprep.subr.mxu0 0.0
    %1978 = vmatpush1.msra.mxu0 0.0
    %1979 = vmatprep.subr.mxu0 0.0
    %1980 = vmatpush1.msra.mxu0 0.0
    %1981 = vmatprep.subr.mxu0 0.0
    %1982 = vmatpush1.msra.mxu0 0.0
    %1983 = vmatprep.subr.mxu0 0.0
    %1984 = vmatpush1.msra.mxu0 0.0
    %1985 = vmatprep.subr.mxu0 0.0
    %1986 = vmatpush1.msra.mxu0 0.0
    %1987 = vmatprep.subr.mxu0 0.0
    %1988 = vmatpush1.msra.mxu0 0.0
    %1989 = vmatprep.subr.mxu0 0.0
    %1990 = vmatpush1.msra.mxu0 0.0
    %1991 = vmatprep.subr.mxu0 0.0
    %1992 = vmatpush1.msra.mxu0 0.0
    %1993 = vmatprep.subr.mxu0 0.0
    %1994 = vmatpush1.msra.mxu0 0.0
    %1995 = vmatprep.subr.mxu0 0.0
    %1996 = vmatpush1.msra.mxu0 0.0
    %1997 = vmatprep.subr.mxu0 0.0
    %1998 = vmatpush1.msra.mxu0 0.0
    %1999 = vmatprep.subr.mxu0 0.0
    %2000 = vmatpush1.msra.mxu0 0.0
    %2001 = vmatprep.subr.mxu0 0.0
    %2002 = vmatpush1.msra.mxu0 0.0
    %2003 = vmatprep.subr.mxu0 0.0
    %2004 = vmatpush1.msra.mxu0 0.0
    %2005 = vmatprep.subr.mxu0 0.0
    %2006 = vmatpush1.msra.mxu0 0.0
    %2007 = vmatprep.subr.mxu0 0.0
    %2008 = vmatpush1.msra.mxu0 0.0
    %2009 = vmatprep.subr.mxu0 0.0
    %2010 = vmatpush1.msra.mxu0 0.0
    %2011 = vmatprep.subr.mxu0 0.0
    %2012 = vmatpush1.msra.mxu0 0.0
    %2013 = vmatprep.subr.mxu0 0.0
    %2014 = vmatpush1.msra.mxu0 0.0
    %2015 = vmatprep.subr.mxu0 0.0
    %2016 = vmatpush1.msra.mxu0 0.0
    %2017 = vmatprep.subr.mxu0 0.0
    %2018 = vmatpush1.msra.mxu0 0.0
    %2019 = vmatprep.subr.mxu0 0.0
    %2020 = vmatpush1.msra.mxu0 0.0
    %2021 = vmatprep.subr.mxu0 0.0
    %2022 = vmatpush1.msra.mxu0 0.0
    %2023 = vmatprep.subr.mxu0 0.0
    %2024 = vmatpush1.msra.mxu0 0.0
    %2025 = vmatprep.subr.mxu0 0.0
    %2026 = vmatpush1.msra.mxu0 0.0
    %2027 = vmatprep.mubr.f32.mxu0 0.0
    %2028 = vmatmul.mubr.f32.gmra.mrb[0].mxu0 %v1961
    %v2029 = vpop.f32.mrb[0].mxu0
    %v2030 = vadd.f32 0.0, %v2029
    %v2031 = vpop.f32.mrb[0].mxu0
    %2032 = vdwg.mxu0
    %2034 = vrot.lane.b32.xlu0 %v1959, 32
    %v2035 = vpop.permute.xlu0 %2034
    %v2036 = vsel %vm177, %v2035, 0
    %2038 = vmatprep.subr.mxu0 0.0
    %2039 = vmatpush1.msra.mxu0 %v319
    %2040 = vmatprep.subr.mxu0 0.0
    %2041 = vmatpush1.msra.mxu0 %v320
    %2042 = vmatprep.subr.mxu0 0.0
    %2043 = vmatpush1.msra.mxu0 %v321
    %2044 = vmatprep.subr.mxu0 0.0
    %2045 = vmatpush1.msra.mxu0 %v322
    %2046 = vmatprep.subr.mxu0 0.0
    %2047 = vmatpush1.msra.mxu0 0.0
    %2048 = vmatprep.subr.mxu0 0.0
    %2049 = vmatpush1.msra.mxu0 0.0
    %2050 = vmatprep.subr.mxu0 0.0
    %2051 = vmatpush1.msra.mxu0 0.0
    %2052 = vmatprep.subr.mxu0 0.0
    %2053 = vmatpush1.msra.mxu0 0.0
    %2054 = vmatprep.subr.mxu0 0.0
    %2055 = vmatpush1.msra.mxu0 0.0
    %2056 = vmatprep.subr.mxu0 0.0
    %2057 = vmatpush1.msra.mxu0 0.0
    %2058 = vmatprep.subr.mxu0 0.0
    %2059 = vmatpush1.msra.mxu0 0.0
    %2060 = vmatprep.subr.mxu0 0.0
    %2061 = vmatpush1.msra.mxu0 0.0
    %2062 = vmatprep.subr.mxu0 0.0
    %2063 = vmatpush1.msra.mxu0 0.0
    %2064 = vmatprep.subr.mxu0 0.0
    %2065 = vmatpush1.msra.mxu0 0.0
    %2066 = vmatprep.subr.mxu0 0.0
    %2067 = vmatpush1.msra.mxu0 0.0
    %2068 = vmatprep.subr.mxu0 0.0
    %2069 = vmatpush1.msra.mxu0 0.0
    %2070 = vmatprep.subr.mxu0 0.0
    %2071 = vmatpush1.msra.mxu0 0.0
    %2072 = vmatprep.subr.mxu0 0.0
    %2073 = vmatpush1.msra.mxu0 0.0
    %2074 = vmatprep.subr.mxu0 0.0
    %2075 = vmatpush1.msra.mxu0 0.0
    %2076 = vmatprep.subr.mxu0 0.0
    %2077 = vmatpush1.msra.mxu0 0.0
    %2078 = vmatprep.subr.mxu0 0.0
    %2079 = vmatpush1.msra.mxu0 0.0
    %2080 = vmatprep.subr.mxu0 0.0
    %2081 = vmatpush1.msra.mxu0 0.0
    %2082 = vmatprep.subr.mxu0 0.0
    %2083 = vmatpush1.msra.mxu0 0.0
    %2084 = vmatprep.subr.mxu0 0.0
    %2085 = vmatpush1.msra.mxu0 0.0
    %2086 = vmatprep.subr.mxu0 0.0
    %2087 = vmatpush1.msra.mxu0 0.0
    %2088 = vmatprep.subr.mxu0 0.0
    %2089 = vmatpush1.msra.mxu0 0.0
    %2090 = vmatprep.subr.mxu0 0.0
    %2091 = vmatpush1.msra.mxu0 0.0
    %2092 = vmatprep.subr.mxu0 0.0
    %2093 = vmatpush1.msra.mxu0 0.0
    %2094 = vmatprep.subr.mxu0 0.0
    %2095 = vmatpush1.msra.mxu0 0.0
    %2096 = vmatprep.subr.mxu0 0.0
    %2097 = vmatpush1.msra.mxu0 0.0
    %2098 = vmatprep.subr.mxu0 0.0
    %2099 = vmatpush1.msra.mxu0 0.0
    %2100 = vmatprep.subr.mxu0 0.0
    %2101 = vmatpush1.msra.mxu0 0.0
    %2102 = vmatprep.mubr.f32.mxu0 0.0
    %2103 = vmatmul.mubr.f32.gmra.mrb[0].mxu0 %v2036
    %v2104 = vpop.f32.mrb[0].mxu0
    %v2105 = vadd.f32 %v2030, %v2104
    %v2106 = vpop.f32.mrb[0].mxu0
    %2107 = vdwg.mxu0
    %v2108 = vadd.f32 %v2105, %v587
    %v2109 = vxor.u32 %v2108, 2147483648
    %v2110 = vmul.f32 %v2109, 1.442695
    %v2111 = vpow.pop %v2110
    %v2112 = vadd.f32 %v2111, 1.0
    %v2113 = vrcp.pop %v2112
    %v2114 = vmul.f32 1.0, %v2113
    %v2115 = vtanh.pop %v2108
    %2117 = vrot.lane.b32.xlu0 %v1855, 32
    %v2118 = vpop.permute.xlu0 %2117
    %v2120 = vmul.f32 %v2114, %v2118
    %2122 = vrot.lane.b32.xlu0 %v2115, 64
    %v2123 = vpop.permute.xlu0 %2122
    %v2125 = vmul.f32 %v2114, %v2123
    %2127 = vrot.lane.b32.xlu0 %v2125, 32
    %v2128 = vpop.permute.xlu0 %2127
    %v2130 = vadd.f32 %v2120, %v2128
    %v2131 = vtanh.pop %v2130
    %2133 = vrot.lane.b32.xlu0 %v2131, 64
    %v2134 = vpop.permute.xlu0 %2133
    %v2136 = vmul.f32 %v2114, %v2134
    %2138 = vst.msk [vmem:[#allocation2] sm:$0xff] %vm177, %v2035
    %2140 = vrot.lane.b32.xlu0 %v1953, 96
    %v2141 = vpop.permute.xlu0 %2140
    %2143 = vst.msk [vmem:[#allocation3] sm:$0xff] %vm177, %v2141
    %2145 = vrot.lane.b32.xlu0 %v2136, 32
    %v2146 = vpop.permute.xlu0 %2145
    %2148 = vst.msk [vmem:[#allocation4] sm:$0xff] %vm177, %v2146
    %2150 = vrot.lane.b32.xlu0 %v2130, 96
    %v2151 = vpop.permute.xlu0 %2150
    %2153 = vst.msk [vmem:[#allocation5] sm:$0xff] %vm177, %v2151
    %s2154 = scalar_lea.vmem [#allocation7], 40
    %2155 = vst.msk [vmem:[%s2154] sm:$0xff] %vm177, %v2146
    %v2156 = vld [vmem:[#allocation2] sm:$0xff]
    %v2157 = vld [vmem:[#allocation3] sm:$0xff]
    %v2158 = vld [vmem:[#allocation4] sm:$0xff]
    %v2159 = vld [vmem:[#allocation5] sm:$0xff]
    %s2160 = scalar_lea.vmem [#allocation6], 48
    %v2161 = vld [vmem:[%s2160] sm:$0xff]
    %v2163 = vsel %vm177, %v2156, 0
    %2165 = vmatprep.subr.mxu0 0.0
    %2166 = vmatpush1.msra.mxu0 %v315
    %2167 = vmatprep.subr.mxu0 0.0
    %2168 = vmatpush1.msra.mxu0 %v316
    %2169 = vmatprep.subr.mxu0 0.0
    %2170 = vmatpush1.msra.mxu0 %v317
    %2171 = vmatprep.subr.mxu0 0.0
    %2172 = vmatpush1.msra.mxu0 %v318
    %2173 = vmatprep.subr.mxu0 0.0
    %2174 = vmatpush1.msra.mxu0 0.0
    %2175 = vmatprep.subr.mxu0 0.0
    %2176 = vmatpush1.msra.mxu0 0.0
    %2177 = vmatprep.subr.mxu0 0.0
    %2178 = vmatpush1.msra.mxu0 0.0
    %2179 = vmatprep.subr.mxu0 0.0
    %2180 = vmatpush1.msra.mxu0 0.0
    %2181 = vmatprep.subr.mxu0 0.0
    %2182 = vmatpush1.msra.mxu0 0.0
    %2183 = vmatprep.subr.mxu0 0.0
    %2184 = vmatpush1.msra.mxu0 0.0
    %2185 = vmatprep.subr.mxu0 0.0
    %2186 = vmatpush1.msra.mxu0 0.0
    %2187 = vmatprep.subr.mxu0 0.0
    %2188 = vmatpush1.msra.mxu0 0.0
    %2189 = vmatprep.subr.mxu0 0.0
    %2190 = vmatpush1.msra.mxu0 0.0
    %2191 = vmatprep.subr.mxu0 0.0
    %2192 = vmatpush1.msra.mxu0 0.0
    %2193 = vmatprep.subr.mxu0 0.0
    %2194 = vmatpush1.msra.mxu0 0.0
    %2195 = vmatprep.subr.mxu0 0.0
    %2196 = vmatpush1.msra.mxu0 0.0
    %2197 = vmatprep.subr.mxu0 0.0
    %2198 = vmatpush1.msra.mxu0 0.0
    %2199 = vmatprep.subr.mxu0 0.0
    %2200 = vmatpush1.msra.mxu0 0.0
    %2201 = vmatprep.subr.mxu0 0.0
    %2202 = vmatpush1.msra.mxu0 0.0
    %2203 = vmatprep.subr.mxu0 0.0
    %2204 = vmatpush1.msra.mxu0 0.0
    %2205 = vmatprep.subr.mxu0 0.0
    %2206 = vmatpush1.msra.mxu0 0.0
    %2207 = vmatprep.subr.mxu0 0.0
    %2208 = vmatpush1.msra.mxu0 0.0
    %2209 = vmatprep.subr.mxu0 0.0
    %2210 = vmatpush1.msra.mxu0 0.0
    %2211 = vmatprep.subr.mxu0 0.0
    %2212 = vmatpush1.msra.mxu0 0.0
    %2213 = vmatprep.subr.mxu0 0.0
    %2214 = vmatpush1.msra.mxu0 0.0
    %2215 = vmatprep.subr.mxu0 0.0
    %2216 = vmatpush1.msra.mxu0 0.0
    %2217 = vmatprep.subr.mxu0 0.0
    %2218 = vmatpush1.msra.mxu0 0.0
    %2219 = vmatprep.subr.mxu0 0.0
    %2220 = vmatpush1.msra.mxu0 0.0
    %2221 = vmatprep.subr.mxu0 0.0
    %2222 = vmatpush1.msra.mxu0 0.0
    %2223 = vmatprep.subr.mxu0 0.0
    %2224 = vmatpush1.msra.mxu0 0.0
    %2225 = vmatprep.subr.mxu0 0.0
    %2226 = vmatpush1.msra.mxu0 0.0
    %2227 = vmatprep.subr.mxu0 0.0
    %2228 = vmatpush1.msra.mxu0 0.0
    %2229 = vmatprep.mubr.f32.mxu0 0.0
    %2230 = vmatmul.mubr.f32.gmra.mrb[0].mxu0 %v2163
    %v2231 = vpop.f32.mrb[0].mxu0
    %v2232 = vadd.f32 0.0, %v2231
    %v2233 = vpop.f32.mrb[0].mxu0
    %2234 = vdwg.mxu0
    %v2235 = vadd.f32 %v2161, %v2232
    %v2236 = vxor.u32 %v2235, 2147483648
    %v2237 = vmul.f32 %v2236, 1.442695
    %v2238 = vpow.pop %v2237
    %v2239 = vadd.f32 %v2238, 1.0
    %v2240 = vrcp.pop %v2239
    %v2241 = vmul.f32 1.0, %v2240
    %v2242 = vtanh.pop %v2235
    %2244 = vrot.lane.b32.xlu0 %v2157, 32
    %v2245 = vpop.permute.xlu0 %2244
    %v2247 = vmul.f32 %v2241, %v2245
    %2249 = vrot.lane.b32.xlu0 %v2242, 64
    %v2250 = vpop.permute.xlu0 %2249
    %v2252 = vmul.f32 %v2241, %v2250
    %2254 = vrot.lane.b32.xlu0 %v2252, 32
    %v2255 = vpop.permute.xlu0 %2254
    %v2257 = vadd.f32 %v2247, %v2255
    %v2258 = vtanh.pop %v2257
    %2260 = vrot.lane.b32.xlu0 %v2258, 64
    %v2261 = vpop.permute.xlu0 %2260
    %v2263 = vmul.f32 %v2241, %v2261
    %v2265 = vsel %vm177, %v2158, 0
    %2267 = vmatprep.subr.mxu0 0.0
    %2268 = vmatpush1.msra.mxu0 %v323
    %2269 = vmatprep.subr.mxu0 0.0
    %2270 = vmatpush1.msra.mxu0 %v324
    %2271 = vmatprep.subr.mxu0 0.0
    %2272 = vmatpush1.msra.mxu0 %v325
    %2273 = vmatprep.subr.mxu0 0.0
    %2274 = vmatpush1.msra.mxu0 %v326
    %2275 = vmatprep.subr.mxu0 0.0
    %2276 = vmatpush1.msra.mxu0 0.0
    %2277 = vmatprep.subr.mxu0 0.0
    %2278 = vmatpush1.msra.mxu0 0.0
    %2279 = vmatprep.subr.mxu0 0.0
    %2280 = vmatpush1.msra.mxu0 0.0
    %2281 = vmatprep.subr.mxu0 0.0
    %2282 = vmatpush1.msra.mxu0 0.0
    %2283 = vmatprep.subr.mxu0 0.0
    %2284 = vmatpush1.msra.mxu0 0.0
    %2285 = vmatprep.subr.mxu0 0.0
    %2286 = vmatpush1.msra.mxu0 0.0
    %2287 = vmatprep.subr.mxu0 0.0
    %2288 = vmatpush1.msra.mxu0 0.0
    %2289 = vmatprep.subr.mxu0 0.0
    %2290 = vmatpush1.msra.mxu0 0.0
    %2291 = vmatprep.subr.mxu0 0.0
    %2292 = vmatpush1.msra.mxu0 0.0
    %2293 = vmatprep.subr.mxu0 0.0
    %2294 = vmatpush1.msra.mxu0 0.0
    %2295 = vmatprep.subr.mxu0 0.0
    %2296 = vmatpush1.msra.mxu0 0.0
    %2297 = vmatprep.subr.mxu0 0.0
    %2298 = vmatpush1.msra.mxu0 0.0
    %2299 = vmatprep.subr.mxu0 0.0
    %2300 = vmatpush1.msra.mxu0 0.0
    %2301 = vmatprep.subr.mxu0 0.0
    %2302 = vmatpush1.msra.mxu0 0.0
    %2303 = vmatprep.subr.mxu0 0.0
    %2304 = vmatpush1.msra.mxu0 0.0
    %2305 = vmatprep.subr.mxu0 0.0
    %2306 = vmatpush1.msra.mxu0 0.0
    %2307 = vmatprep.subr.mxu0 0.0
    %2308 = vmatpush1.msra.mxu0 0.0
    %2309 = vmatprep.subr.mxu0 0.0
    %2310 = vmatpush1.msra.mxu0 0.0
    %2311 = vmatprep.subr.mxu0 0.0
    %2312 = vmatpush1.msra.mxu0 0.0
    %2313 = vmatprep.subr.mxu0 0.0
    %2314 = vmatpush1.msra.mxu0 0.0
    %2315 = vmatprep.subr.mxu0 0.0
    %2316 = vmatpush1.msra.mxu0 0.0
    %2317 = vmatprep.subr.mxu0 0.0
    %2318 = vmatpush1.msra.mxu0 0.0
    %2319 = vmatprep.subr.mxu0 0.0
    %2320 = vmatpush1.msra.mxu0 0.0
    %2321 = vmatprep.subr.mxu0 0.0
    %2322 = vmatpush1.msra.mxu0 0.0
    %2323 = vmatprep.subr.mxu0 0.0
    %2324 = vmatpush1.msra.mxu0 0.0
    %2325 = vmatprep.subr.mxu0 0.0
    %2326 = vmatpush1.msra.mxu0 0.0
    %2327 = vmatprep.subr.mxu0 0.0
    %2328 = vmatpush1.msra.mxu0 0.0
    %2329 = vmatprep.subr.mxu0 0.0
    %2330 = vmatpush1.msra.mxu0 0.0
    %2331 = vmatprep.mubr.f32.mxu0 0.0
    %2332 = vmatmul.mubr.f32.gmra.mrb[0].mxu0 %v2265
    %v2333 = vpop.f32.mrb[0].mxu0
    %v2334 = vadd.f32 0.0, %v2333
    %v2335 = vpop.f32.mrb[0].mxu0
    %2336 = vdwg.mxu0
    %2338 = vrot.lane.b32.xlu0 %v2263, 32
    %v2339 = vpop.permute.xlu0 %2338
    %v2340 = vsel %vm177, %v2339, 0
    %2342 = vmatprep.subr.mxu0 0.0
    %2343 = vmatpush1.msra.mxu0 %v319
    %2344 = vmatprep.subr.mxu0 0.0
    %2345 = vmatpush1.msra.mxu0 %v320
    %2346 = vmatprep.subr.mxu0 0.0
    %2347 = vmatpush1.msra.mxu0 %v321
    %2348 = vmatprep.subr.mxu0 0.0
    %2349 = vmatpush1.msra.mxu0 %v322
    %2350 = vmatprep.subr.mxu0 0.0
    %2351 = vmatpush1.msra.mxu0 0.0
    %2352 = vmatprep.subr.mxu0 0.0
    %2353 = vmatpush1.msra.mxu0 0.0
    %2354 = vmatprep.subr.mxu0 0.0
    %2355 = vmatpush1.msra.mxu0 0.0
    %2356 = vmatprep.subr.mxu0 0.0
    %2357 = vmatpush1.msra.mxu0 0.0
    %2358 = vmatprep.subr.mxu0 0.0
    %2359 = vmatpush1.msra.mxu0 0.0
    %2360 = vmatprep.subr.mxu0 0.0
    %2361 = vmatpush1.msra.mxu0 0.0
    %2362 = vmatprep.subr.mxu0 0.0
    %2363 = vmatpush1.msra.mxu0 0.0
    %2364 = vmatprep.subr.mxu0 0.0
    %2365 = vmatpush1.msra.mxu0 0.0
    %2366 = vmatprep.subr.mxu0 0.0
    %2367 = vmatpush1.msra.mxu0 0.0
    %2368 = vmatprep.subr.mxu0 0.0
    %2369 = vmatpush1.msra.mxu0 0.0
    %2370 = vmatprep.subr.mxu0 0.0
    %2371 = vmatpush1.msra.mxu0 0.0
    %2372 = vmatprep.subr.mxu0 0.0
    %2373 = vmatpush1.msra.mxu0 0.0
    %2374 = vmatprep.subr.mxu0 0.0
    %2375 = vmatpush1.msra.mxu0 0.0
    %2376 = vmatprep.subr.mxu0 0.0
    %2377 = vmatpush1.msra.mxu0 0.0
    %2378 = vmatprep.subr.mxu0 0.0
    %2379 = vmatpush1.msra.mxu0 0.0
    %2380 = vmatprep.subr.mxu0 0.0
    %2381 = vmatpush1.msra.mxu0 0.0
    %2382 = vmatprep.subr.mxu0 0.0
    %2383 = vmatpush1.msra.mxu0 0.0
    %2384 = vmatprep.subr.mxu0 0.0
    %2385 = vmatpush1.msra.mxu0 0.0
    %2386 = vmatprep.subr.mxu0 0.0
    %2387 = vmatpush1.msra.mxu0 0.0
    %2388 = vmatprep.subr.mxu0 0.0
    %2389 = vmatpush1.msra.mxu0 0.0
    %2390 = vmatprep.subr.mxu0 0.0
    %2391 = vmatpush1.msra.mxu0 0.0
    %2392 = vmatprep.subr.mxu0 0.0
    %2393 = vmatpush1.msra.mxu0 0.0
    %2394 = vmatprep.subr.mxu0 0.0
    %2395 = vmatpush1.msra.mxu0 0.0
    %2396 = vmatprep.subr.mxu0 0.0
    %2397 = vmatpush1.msra.mxu0 0.0
    %2398 = vmatprep.subr.mxu0 0.0
    %2399 = vmatpush1.msra.mxu0 0.0
    %2400 = vmatprep.subr.mxu0 0.0
    %2401 = vmatpush1.msra.mxu0 0.0
    %2402 = vmatprep.subr.mxu0 0.0
    %2403 = vmatpush1.msra.mxu0 0.0
    %2404 = vmatprep.subr.mxu0 0.0
    %2405 = vmatpush1.msra.mxu0 0.0
    %2406 = vmatprep.mubr.f32.mxu0 0.0
    %2407 = vmatmul.mubr.f32.gmra.mrb[0].mxu0 %v2340
    %v2408 = vpop.f32.mrb[0].mxu0
    %v2409 = vadd.f32 %v2334, %v2408
    %v2410 = vpop.f32.mrb[0].mxu0
    %2411 = vdwg.mxu0
    %v2412 = vadd.f32 %v2409, %v587
    %v2413 = vxor.u32 %v2412, 2147483648
    %v2414 = vmul.f32 %v2413, 1.442695
    %v2415 = vpow.pop %v2414
    %v2416 = vadd.f32 %v2415, 1.0
    %v2417 = vrcp.pop %v2416
    %v2418 = vmul.f32 1.0, %v2417
    %v2419 = vtanh.pop %v2412
    %2421 = vrot.lane.b32.xlu0 %v2159, 32
    %v2422 = vpop.permute.xlu0 %2421
    %v2424 = vmul.f32 %v2418, %v2422
    %2426 = vrot.lane.b32.xlu0 %v2419, 64
    %v2427 = vpop.permute.xlu0 %2426
    %v2429 = vmul.f32 %v2418, %v2427
    %2431 = vrot.lane.b32.xlu0 %v2429, 32
    %v2432 = vpop.permute.xlu0 %2431
    %v2434 = vadd.f32 %v2424, %v2432
    %v2435 = vtanh.pop %v2434
    %2437 = vrot.lane.b32.xlu0 %v2435, 64
    %v2438 = vpop.permute.xlu0 %2437
    %v2440 = vmul.f32 %v2418, %v2438
    %2442 = vst.msk [vmem:[#allocation2] sm:$0xff] %vm177, %v2339
    %2444 = vrot.lane.b32.xlu0 %v2257, 96
    %v2445 = vpop.permute.xlu0 %2444
    %2447 = vst.msk [vmem:[#allocation3] sm:$0xff] %vm177, %v2445
    %2449 = vrot.lane.b32.xlu0 %v2440, 32
    %v2450 = vpop.permute.xlu0 %2449
    %2452 = vst.msk [vmem:[#allocation4] sm:$0xff] %vm177, %v2450
    %2454 = vrot.lane.b32.xlu0 %v2434, 96
    %v2455 = vpop.permute.xlu0 %2454
    %2457 = vst.msk [vmem:[#allocation5] sm:$0xff] %vm177, %v2455
    %s2458 = scalar_lea.vmem [#allocation7], 48
    %2459 = vst.msk [vmem:[%s2458] sm:$0xff] %vm177, %v2450
    %v2460 = vld [vmem:[#allocation2] sm:$0xff]
    %v2461 = vld [vmem:[#allocation3] sm:$0xff]
    %v2462 = vld [vmem:[#allocation4] sm:$0xff]
    %v2463 = vld [vmem:[#allocation5] sm:$0xff]
    %s2464 = scalar_lea.vmem [#allocation6], 56
    %v2465 = vld [vmem:[%s2464] sm:$0xff]
    %v2467 = vsel %vm177, %v2460, 0
    %2469 = vmatprep.subr.mxu0 0.0
    %2470 = vmatpush1.msra.mxu0 %v315
    %2471 = vmatprep.subr.mxu0 0.0
    %2472 = vmatpush1.msra.mxu0 %v316
    %2473 = vmatprep.subr.mxu0 0.0
    %2474 = vmatpush1.msra.mxu0 %v317
    %2475 = vmatprep.subr.mxu0 0.0
    %2476 = vmatpush1.msra.mxu0 %v318
    %2477 = vmatprep.subr.mxu0 0.0
    %2478 = vmatpush1.msra.mxu0 0.0
    %2479 = vmatprep.subr.mxu0 0.0
    %2480 = vmatpush1.msra.mxu0 0.0
    %2481 = vmatprep.subr.mxu0 0.0
    %2482 = vmatpush1.msra.mxu0 0.0
    %2483 = vmatprep.subr.mxu0 0.0
    %2484 = vmatpush1.msra.mxu0 0.0
    %2485 = vmatprep.subr.mxu0 0.0
    %2486 = vmatpush1.msra.mxu0 0.0
    %2487 = vmatprep.subr.mxu0 0.0
    %2488 = vmatpush1.msra.mxu0 0.0
    %2489 = vmatprep.subr.mxu0 0.0
    %2490 = vmatpush1.msra.mxu0 0.0
    %2491 = vmatprep.subr.mxu0 0.0
    %2492 = vmatpush1.msra.mxu0 0.0
    %2493 = vmatprep.subr.mxu0 0.0
    %2494 = vmatpush1.msra.mxu0 0.0
    %2495 = vmatprep.subr.mxu0 0.0
    %2496 = vmatpush1.msra.mxu0 0.0
    %2497 = vmatprep.subr.mxu0 0.0
    %2498 = vmatpush1.msra.mxu0 0.0
    %2499 = vmatprep.subr.mxu0 0.0
    %2500 = vmatpush1.msra.mxu0 0.0
    %2501 = vmatprep.subr.mxu0 0.0
    %2502 = vmatpush1.msra.mxu0 0.0
    %2503 = vmatprep.subr.mxu0 0.0
    %2504 = vmatpush1.msra.mxu0 0.0
    %2505 = vmatprep.subr.mxu0 0.0
    %2506 = vmatpush1.msra.mxu0 0.0
    %2507 = vmatprep.subr.mxu0 0.0
    %2508 = vmatpush1.msra.mxu0 0.0
    %2509 = vmatprep.subr.mxu0 0.0
    %2510 = vmatpush1.msra.mxu0 0.0
    %2511 = vmatprep.subr.mxu0 0.0
    %2512 = vmatpush1.msra.mxu0 0.0
    %2513 = vmatprep.subr.mxu0 0.0
    %2514 = vmatpush1.msra.mxu0 0.0
    %2515 = vmatprep.subr.mxu0 0.0
    %2516 = vmatpush1.msra.mxu0 0.0
    %2517 = vmatprep.subr.mxu0 0.0
    %2518 = vmatpush1.msra.mxu0 0.0
    %2519 = vmatprep.subr.mxu0 0.0
    %2520 = vmatpush1.msra.mxu0 0.0
    %2521 = vmatprep.subr.mxu0 0.0
    %2522 = vmatpush1.msra.mxu0 0.0
    %2523 = vmatprep.subr.mxu0 0.0
    %2524 = vmatpush1.msra.mxu0 0.0
    %2525 = vmatprep.subr.mxu0 0.0
    %2526 = vmatpush1.msra.mxu0 0.0
    %2527 = vmatprep.subr.mxu0 0.0
    %2528 = vmatpush1.msra.mxu0 0.0
    %2529 = vmatprep.subr.mxu0 0.0
    %2530 = vmatpush1.msra.mxu0 0.0
    %2531 = vmatprep.subr.mxu0 0.0
    %2532 = vmatpush1.msra.mxu0 0.0
    %2533 = vmatprep.mubr.f32.mxu0 0.0
    %2534 = vmatmul.mubr.f32.gmra.mrb[0].mxu0 %v2467
    %v2535 = vpop.f32.mrb[0].mxu0
    %v2536 = vadd.f32 0.0, %v2535
    %v2537 = vpop.f32.mrb[0].mxu0
    %2538 = vdwg.mxu0
    %v2539 = vadd.f32 %v2465, %v2536
    %v2540 = vxor.u32 %v2539, 2147483648
    %v2541 = vmul.f32 %v2540, 1.442695
    %v2542 = vpow.pop %v2541
    %v2543 = vadd.f32 %v2542, 1.0
    %v2544 = vrcp.pop %v2543
    %v2545 = vmul.f32 1.0, %v2544
    %v2546 = vtanh.pop %v2539
    %2548 = vrot.lane.b32.xlu0 %v2461, 32
    %v2549 = vpop.permute.xlu0 %2548
    %v2551 = vmul.f32 %v2545, %v2549
    %2553 = vrot.lane.b32.xlu0 %v2546, 64
    %v2554 = vpop.permute.xlu0 %2553
    %v2556 = vmul.f32 %v2545, %v2554
    %2558 = vrot.lane.b32.xlu0 %v2556, 32
    %v2559 = vpop.permute.xlu0 %2558
    %v2561 = vadd.f32 %v2551, %v2559
    %v2562 = vtanh.pop %v2561
    %2564 = vrot.lane.b32.xlu0 %v2562, 64
    %v2565 = vpop.permute.xlu0 %2564
    %v2567 = vmul.f32 %v2545, %v2565
    %v2569 = vsel %vm177, %v2462, 0
    %2571 = vmatprep.subr.mxu0 0.0
    %2572 = vmatpush1.msra.mxu0 %v323
    %2573 = vmatprep.subr.mxu0 0.0
    %2574 = vmatpush1.msra.mxu0 %v324
    %2575 = vmatprep.subr.mxu0 0.0
    %2576 = vmatpush1.msra.mxu0 %v325
    %2577 = vmatprep.subr.mxu0 0.0
    %2578 = vmatpush1.msra.mxu0 %v326
    %2579 = vmatprep.subr.mxu0 0.0
    %2580 = vmatpush1.msra.mxu0 0.0
    %2581 = vmatprep.subr.mxu0 0.0
    %2582 = vmatpush1.msra.mxu0 0.0
    %2583 = vmatprep.subr.mxu0 0.0
    %2584 = vmatpush1.msra.mxu0 0.0
    %2585 = vmatprep.subr.mxu0 0.0
    %2586 = vmatpush1.msra.mxu0 0.0
    %2587 = vmatprep.subr.mxu0 0.0
    %2588 = vmatpush1.msra.mxu0 0.0
    %2589 = vmatprep.subr.mxu0 0.0
    %2590 = vmatpush1.msra.mxu0 0.0
    %2591 = vmatprep.subr.mxu0 0.0
    %2592 = vmatpush1.msra.mxu0 0.0
    %2593 = vmatprep.subr.mxu0 0.0
    %2594 = vmatpush1.msra.mxu0 0.0
    %2595 = vmatprep.subr.mxu0 0.0
    %2596 = vmatpush1.msra.mxu0 0.0
    %2597 = vmatprep.subr.mxu0 0.0
    %2598 = vmatpush1.msra.mxu0 0.0
    %2599 = vmatprep.subr.mxu0 0.0
    %2600 = vmatpush1.msra.mxu0 0.0
    %2601 = vmatprep.subr.mxu0 0.0
    %2602 = vmatpush1.msra.mxu0 0.0
    %2603 = vmatprep.subr.mxu0 0.0
    %2604 = vmatpush1.msra.mxu0 0.0
    %2605 = vmatprep.subr.mxu0 0.0
    %2606 = vmatpush1.msra.mxu0 0.0
    %2607 = vmatprep.subr.mxu0 0.0
    %2608 = vmatpush1.msra.mxu0 0.0
    %2609 = vmatprep.subr.mxu0 0.0
    %2610 = vmatpush1.msra.mxu0 0.0
    %2611 = vmatprep.subr.mxu0 0.0
    %2612 = vmatpush1.msra.mxu0 0.0
    %2613 = vmatprep.subr.mxu0 0.0
    %2614 = vmatpush1.msra.mxu0 0.0
    %2615 = vmatprep.subr.mxu0 0.0
    %2616 = vmatpush1.msra.mxu0 0.0
    %2617 = vmatprep.subr.mxu0 0.0
    %2618 = vmatpush1.msra.mxu0 0.0
    %2619 = vmatprep.subr.mxu0 0.0
    %2620 = vmatpush1.msra.mxu0 0.0
    %2621 = vmatprep.subr.mxu0 0.0
    %2622 = vmatpush1.msra.mxu0 0.0
    %2623 = vmatprep.subr.mxu0 0.0
    %2624 = vmatpush1.msra.mxu0 0.0
    %2625 = vmatprep.subr.mxu0 0.0
    %2626 = vmatpush1.msra.mxu0 0.0
    %2627 = vmatprep.subr.mxu0 0.0
    %2628 = vmatpush1.msra.mxu0 0.0
    %2629 = vmatprep.subr.mxu0 0.0
    %2630 = vmatpush1.msra.mxu0 0.0
    %2631 = vmatprep.subr.mxu0 0.0
    %2632 = vmatpush1.msra.mxu0 0.0
    %2633 = vmatprep.subr.mxu0 0.0
    %2634 = vmatpush1.msra.mxu0 0.0
    %2635 = vmatprep.mubr.f32.mxu0 0.0
    %2636 = vmatmul.mubr.f32.gmra.mrb[0].mxu0 %v2569
    %v2637 = vpop.f32.mrb[0].mxu0
    %v2638 = vadd.f32 0.0, %v2637
    %v2639 = vpop.f32.mrb[0].mxu0
    %2640 = vdwg.mxu0
    %2642 = vrot.lane.b32.xlu0 %v2567, 32
    %v2643 = vpop.permute.xlu0 %2642
    %v2644 = vsel %vm177, %v2643, 0
    %2646 = vmatprep.subr.mxu0 0.0
    %2647 = vmatpush1.msra.mxu0 %v319
    %2648 = vmatprep.subr.mxu0 0.0
    %2649 = vmatpush1.msra.mxu0 %v320
    %2650 = vmatprep.subr.mxu0 0.0
    %2651 = vmatpush1.msra.mxu0 %v321
    %2652 = vmatprep.subr.mxu0 0.0
    %2653 = vmatpush1.msra.mxu0 %v322
    %2654 = vmatprep.subr.mxu0 0.0
    %2655 = vmatpush1.msra.mxu0 0.0
    %2656 = vmatprep.subr.mxu0 0.0
    %2657 = vmatpush1.msra.mxu0 0.0
    %2658 = vmatprep.subr.mxu0 0.0
    %2659 = vmatpush1.msra.mxu0 0.0
    %2660 = vmatprep.subr.mxu0 0.0
    %2661 = vmatpush1.msra.mxu0 0.0
    %2662 = vmatprep.subr.mxu0 0.0
    %2663 = vmatpush1.msra.mxu0 0.0
    %2664 = vmatprep.subr.mxu0 0.0
    %2665 = vmatpush1.msra.mxu0 0.0
    %2666 = vmatprep.subr.mxu0 0.0
    %2667 = vmatpush1.msra.mxu0 0.0
    %2668 = vmatprep.subr.mxu0 0.0
    %2669 = vmatpush1.msra.mxu0 0.0
    %2670 = vmatprep.subr.mxu0 0.0
    %2671 = vmatpush1.msra.mxu0 0.0
    %2672 = vmatprep.subr.mxu0 0.0
    %2673 = vmatpush1.msra.mxu0 0.0
    %2674 = vmatprep.subr.mxu0 0.0
    %2675 = vmatpush1.msra.mxu0 0.0
    %2676 = vmatprep.subr.mxu0 0.0
    %2677 = vmatpush1.msra.mxu0 0.0
    %2678 = vmatprep.subr.mxu0 0.0
    %2679 = vmatpush1.msra.mxu0 0.0
    %2680 = vmatprep.subr.mxu0 0.0
    %2681 = vmatpush1.msra.mxu0 0.0
    %2682 = vmatprep.subr.mxu0 0.0
    %2683 = vmatpush1.msra.mxu0 0.0
    %2684 = vmatprep.subr.mxu0 0.0
    %2685 = vmatpush1.msra.mxu0 0.0
    %2686 = vmatprep.subr.mxu0 0.0
    %2687 = vmatpush1.msra.mxu0 0.0
    %2688 = vmatprep.subr.mxu0 0.0
    %2689 = vmatpush1.msra.mxu0 0.0
    %2690 = vmatprep.subr.mxu0 0.0
    %2691 = vmatpush1.msra.mxu0 0.0
    %2692 = vmatprep.subr.mxu0 0.0
    %2693 = vmatpush1.msra.mxu0 0.0
    %2694 = vmatprep.subr.mxu0 0.0
    %2695 = vmatpush1.msra.mxu0 0.0
    %2696 = vmatprep.subr.mxu0 0.0
    %2697 = vmatpush1.msra.mxu0 0.0
    %2698 = vmatprep.subr.mxu0 0.0
    %2699 = vmatpush1.msra.mxu0 0.0
    %2700 = vmatprep.subr.mxu0 0.0
    %2701 = vmatpush1.msra.mxu0 0.0
    %2702 = vmatprep.subr.mxu0 0.0
    %2703 = vmatpush1.msra.mxu0 0.0
    %2704 = vmatprep.subr.mxu0 0.0
    %2705 = vmatpush1.msra.mxu0 0.0
    %2706 = vmatprep.subr.mxu0 0.0
    %2707 = vmatpush1.msra.mxu0 0.0
    %2708 = vmatprep.subr.mxu0 0.0
    %2709 = vmatpush1.msra.mxu0 0.0
    %2710 = vmatprep.mubr.f32.mxu0 0.0
    %2711 = vmatmul.mubr.f32.gmra.mrb[0].mxu0 %v2644
    %v2712 = vpop.f32.mrb[0].mxu0
    %v2713 = vadd.f32 %v2638, %v2712
    %v2714 = vpop.f32.mrb[0].mxu0
    %2715 = vdwg.mxu0
    %v2716 = vadd.f32 %v2713, %v587
    %v2717 = vxor.u32 %v2716, 2147483648
    %v2718 = vmul.f32 %v2717, 1.442695
    %v2719 = vpow.pop %v2718
    %v2720 = vadd.f32 %v2719, 1.0
    %v2721 = vrcp.pop %v2720
    %v2722 = vmul.f32 1.0, %v2721
    %v2723 = vtanh.pop %v2716
    %2725 = vrot.lane.b32.xlu0 %v2463, 32
    %v2726 = vpop.permute.xlu0 %2725
    %v2728 = vmul.f32 %v2722, %v2726
    %2730 = vrot.lane.b32.xlu0 %v2723, 64
    %v2731 = vpop.permute.xlu0 %2730
    %v2733 = vmul.f32 %v2722, %v2731
    %2735 = vrot.lane.b32.xlu0 %v2733, 32
    %v2736 = vpop.permute.xlu0 %2735
    %v2738 = vadd.f32 %v2728, %v2736
    %v2739 = vtanh.pop %v2738
    %2741 = vrot.lane.b32.xlu0 %v2739, 64
    %v2742 = vpop.permute.xlu0 %2741
    %v2744 = vmul.f32 %v2722, %v2742
    %2746 = vst.msk [vmem:[#allocation2] sm:$0xff] %vm177, %v2643
    %2748 = vrot.lane.b32.xlu0 %v2561, 96
    %v2749 = vpop.permute.xlu0 %2748
    %2751 = vst.msk [vmem:[#allocation3] sm:$0xff] %vm177, %v2749
    %2753 = vrot.lane.b32.xlu0 %v2744, 32
    %v2754 = vpop.permute.xlu0 %2753
    %2756 = vst.msk [vmem:[#allocation4] sm:$0xff] %vm177, %v2754
    %2758 = vrot.lane.b32.xlu0 %v2738, 96
    %v2759 = vpop.permute.xlu0 %2758
    %2761 = vst.msk [vmem:[#allocation5] sm:$0xff] %vm177, %v2759
    %s2762 = scalar_lea.vmem [#allocation7], 56
    %2763 = vst.msk [vmem:[%s2762] sm:$0xff] %vm177, %v2754
    %v2764 = vld [vmem:[#allocation7] sm:$0xff]
    %v2765 = vld [vmem:[#allocation7 + $0x8] sm:$0xff]
    %v2766 = vld [vmem:[#allocation7 + $0x10] sm:$0xff]
    %v2767 = vld [vmem:[#allocation7 + $0x18] sm:$0xff]
    %v2768 = vld [vmem:[#allocation7 + $0x20] sm:$0xff]
    %v2769 = vld [vmem:[#allocation7 + $0x28] sm:$0xff]
    %v2770 = vld [vmem:[#allocation7 + $0x30] sm:$0xff]
    %v2771 = vld [vmem:[#allocation7 + $0x38] sm:$0xff]
    %v2772 = vld [vmem:[#allocation17] sm:$0xff]
    %v2773 = vld [vmem:[#allocation17 + $0x8] sm:$0xff]
    %v2774 = vld [vmem:[#allocation17 + $0x10] sm:$0xff]
    %v2775 = vld [vmem:[#allocation17 + $0x18] sm:$0xff]
    %v2776 = vld [vmem:[#allocation19] sm:$0x1]
    %v2778 = vlaneseq
    %v2779 = vshrl.u32 %v2778, 7
    %v2780 = vsub.s32 0, %v2779
    %v2781 = vrot.slane %v2776, %v2780
    %v2784 = vsel %vm177, %v2764, 0
    %v2787 = vsel %vm177, %v2765, 0
    %v2790 = vsel %vm177, %v2766, 0
    %v2793 = vsel %vm177, %v2767, 0
    %v2796 = vsel %vm177, %v2768, 0
    %v2799 = vsel %vm177, %v2769, 0
    %v2802 = vsel %vm177, %v2770, 0
    %v2805 = vsel %vm177, %v2771, 0
    %2807 = vmatprep.subr.mxu0 0.0
    %2808 = vmatpush1.msra.mxu0 %v2772
    %2809 = vmatprep.subr.mxu0 0.0
    %2810 = vmatpush1.msra.mxu0 %v2773
    %2811 = vmatprep.subr.mxu0 0.0
    %2812 = vmatpush1.msra.mxu0 %v2774
    %2813 = vmatprep.subr.mxu0 0.0
    %2814 = vmatpush1.msra.mxu0 %v2775
    %2815 = vmatprep.subr.mxu0 0.0
    %2816 = vmatpush1.msra.mxu0 0.0
    %2817 = vmatprep.subr.mxu0 0.0
    %2818 = vmatpush1.msra.mxu0 0.0
    %2819 = vmatprep.subr.mxu0 0.0
    %2820 = vmatpush1.msra.mxu0 0.0
    %2821 = vmatprep.subr.mxu0 0.0
    %2822 = vmatpush1.msra.mxu0 0.0
    %2823 = vmatprep.subr.mxu0 0.0
    %2824 = vmatpush1.msra.mxu0 0.0
    %2825 = vmatprep.subr.mxu0 0.0
    %2826 = vmatpush1.msra.mxu0 0.0
    %2827 = vmatprep.subr.mxu0 0.0
    %2828 = vmatpush1.msra.mxu0 0.0
    %2829 = vmatprep.subr.mxu0 0.0
    %2830 = vmatpush1.msra.mxu0 0.0
    %2831 = vmatprep.subr.mxu0 0.0
    %2832 = vmatpush1.msra.mxu0 0.0
    %2833 = vmatprep.subr.mxu0 0.0
    %2834 = vmatpush1.msra.mxu0 0.0
    %2835 = vmatprep.subr.mxu0 0.0
    %2836 = vmatpush1.msra.mxu0 0.0
    %2837 = vmatprep.subr.mxu0 0.0
    %2838 = vmatpush1.msra.mxu0 0.0
    %2839 = vmatprep.subr.mxu0 0.0
    %2840 = vmatpush1.msra.mxu0 0.0
    %2841 = vmatprep.subr.mxu0 0.0
    %2842 = vmatpush1.msra.mxu0 0.0
    %2843 = vmatprep.subr.mxu0 0.0
    %2844 = vmatpush1.msra.mxu0 0.0
    %2845 = vmatprep.subr.mxu0 0.0
    %2846 = vmatpush1.msra.mxu0 0.0
    %2847 = vmatprep.subr.mxu0 0.0
    %2848 = vmatpush1.msra.mxu0 0.0
    %2849 = vmatprep.subr.mxu0 0.0
    %2850 = vmatpush1.msra.mxu0 0.0
    %2851 = vmatprep.subr.mxu0 0.0
    %2852 = vmatpush1.msra.mxu0 0.0
    %2853 = vmatprep.subr.mxu0 0.0
    %2854 = vmatpush1.msra.mxu0 0.0
    %2855 = vmatprep.subr.mxu0 0.0
    %2856 = vmatpush1.msra.mxu0 0.0
    %2857 = vmatprep.subr.mxu0 0.0
    %2858 = vmatpush1.msra.mxu0 0.0
    %2859 = vmatprep.subr.mxu0 0.0
    %2860 = vmatpush1.msra.mxu0 0.0
    %2861 = vmatprep.subr.mxu0 0.0
    %2862 = vmatpush1.msra.mxu0 0.0
    %2863 = vmatprep.subr.mxu0 0.0
    %2864 = vmatpush1.msra.mxu0 0.0
    %2865 = vmatprep.subr.mxu0 0.0
    %2866 = vmatpush1.msra.mxu0 0.0
    %2867 = vmatprep.subr.mxu0 0.0
    %2868 = vmatpush1.msra.mxu0 0.0
    %2869 = vmatprep.subr.mxu0 0.0
    %2870 = vmatpush1.msra.mxu0 0.0
    %2871 = vmatprep.mubr.f32.mxu0 0.0
    %2872 = vmatmul.mubr.f32.gmra.mrb[0].mxu0 %v2784
    %v2873 = vpop.f32.mrb[0].mxu0
    %v2874 = vadd.f32 %v2781, %v2873
    %v2875 = vpop.f32.mrb[0].mxu0
    %2876 = vmatprep.mubr.f32.mxu0 0.0
    %2877 = vmatmul.mubr.f32.gmra.mrb[0].mxu0 %v2787
    %v2878 = vpop.f32.mrb[0].mxu0
    %v2879 = vadd.f32 %v2781, %v2878
    %v2880 = vpop.f32.mrb[0].mxu0
    %2881 = vmatprep.mubr.f32.mxu0 0.0
    %2882 = vmatmul.mubr.f32.gmra.mrb[0].mxu0 %v2790
    %v2883 = vpop.f32.mrb[0].mxu0
    %v2884 = vadd.f32 %v2781, %v2883
    %v2885 = vpop.f32.mrb[0].mxu0
    %2886 = vmatprep.mubr.f32.mxu0 0.0
    %2887 = vmatmul.mubr.f32.gmra.mrb[0].mxu0 %v2793
    %v2888 = vpop.f32.mrb[0].mxu0
    %v2889 = vadd.f32 %v2781, %v2888
    %v2890 = vpop.f32.mrb[0].mxu0
    %2891 = vmatprep.mubr.f32.mxu0 0.0
    %2892 = vmatmul.mubr.f32.gmra.mrb[0].mxu0 %v2796
    %v2893 = vpop.f32.mrb[0].mxu0
    %v2894 = vadd.f32 %v2781, %v2893
    %v2895 = vpop.f32.mrb[0].mxu0
    %2896 = vmatprep.mubr.f32.mxu0 0.0
    %2897 = vmatmul.mubr.f32.gmra.mrb[0].mxu0 %v2799
    %v2898 = vpop.f32.mrb[0].mxu0
    %v2899 = vadd.f32 %v2781, %v2898
    %v2900 = vpop.f32.mrb[0].mxu0
    %2901 = vmatprep.mubr.f32.mxu0 0.0
    %2902 = vmatmul.mubr.f32.gmra.mrb[0].mxu0 %v2802
    %v2903 = vpop.f32.mrb[0].mxu0
    %v2904 = vadd.f32 %v2781, %v2903
    %v2905 = vpop.f32.mrb[0].mxu0
    %2906 = vmatprep.mubr.f32.mxu0 0.0
    %2907 = vmatmul.mubr.f32.gmra.mrb[0].mxu0 %v2805
    %v2908 = vpop.f32.mrb[0].mxu0
    %v2909 = vadd.f32 %v2781, %v2908
    %v2910 = vpop.f32.mrb[0].mxu0
    %2911 = vdwg.mxu0
    %2912 = vst [vmem:[#allocation20] sm:$0xff] %v2874
    %2913 = vst [vmem:[#allocation20 + $0x8] sm:$0xff] %v2879
    %2914 = vst [vmem:[#allocation20 + $0x10] sm:$0xff] %v2884
    %2915 = vst [vmem:[#allocation20 + $0x18] sm:$0xff] %v2889
    %2916 = vst [vmem:[#allocation20 + $0x20] sm:$0xff] %v2894
    %2917 = vst [vmem:[#allocation20 + $0x28] sm:$0xff] %v2899
    %2918 = vst [vmem:[#allocation20 + $0x30] sm:$0xff] %v2904
    %2919 = vst [vmem:[#allocation20 + $0x38] sm:$0xff] %v2909
    // Predicated region
    $region86: #{tpu_custom_call.1} parent=1 // pred_check
      %p2920 = pneg %p145
    $region87: #{tpu_custom_call.1} parent=1 // pred_check_branch
      %2922 = sbr.rel (%p2920) target = $region89
    $region88: #{tpu_custom_call.1} parent=1 // pred_region
      %v2923 = vld [vmem:[#allocation2] sm:$0xff]
      %2924 = vst.msk [vmem:[#allocation21] sm:$0xff] %vm177, %v2923
      %v2925 = vld [vmem:[#allocation3] sm:$0xff]
      %2926 = vst.msk [vmem:[#allocation23] sm:$0xff] %vm177, %v2925
      %v2927 = vld [vmem:[#allocation4] sm:$0xff]
      %2928 = vst.msk [vmem:[#allocation24] sm:$0xff] %vm177, %v2927
      %v2929 = vld [vmem:[#allocation5] sm:$0xff]
      %2930 = vst.msk [vmem:[#allocation26] sm:$0xff] %vm177, %v2929
    $region89: #{tpu_custom_call.1} parent=1 // pred_fallthru
      _
    // Predicated region
    $region90: #{tpu_custom_call.1} parent=1 // pred_check
      _
    $region91: #{tpu_custom_call.1} parent=1 // pred_check_branch
      %2932 = sbr.rel (0) target = $region93
    $region92: #{tpu_custom_call.1} parent=1 // pred_region
      %s2934 = ssub.s32 1024, 1024
      %2935 = vsyncadd [#allocation10], %s2934
      %s2936 = sshll.u32 [#allocation20], 4
      %s2937 = int_to_ptr.vmem [resolvable:$true] %s2936
      %2942 = dma.vmem_to_hbm [thread:$0]  %s2937, 1024, %s13, [#allocation10], 128, 128, 8
    $region93: #{tpu_custom_call.1} parent=1 // pred_fallthru
      _
    // Predicated region
    $region94: #{tpu_custom_call.1} parent=1 // pred_check
      _
    $region95: #{tpu_custom_call.1} parent=1 // pred_check_branch
      %2944 = sbr.rel (0) target = $region97
    $region96: #{tpu_custom_call.1} parent=1 // pred_region
      %s2946 = ssub.s32 128, 128
      %2947 = vsyncadd [#allocation22], %s2946
      %s2949 = sshll.u32 [#allocation21], 4
      %s2950 = int_to_ptr.vmem [resolvable:$true] %s2949
      %2952 = dma.vmem_to_hbm [thread:$0]  %s2950, 128, %s14, [#allocation22]
    $region97: #{tpu_custom_call.1} parent=1 // pred_fallthru
      _
    // Predicated region
    $region98: #{tpu_custom_call.1} parent=1 // pred_check
      _
    $region99: #{tpu_custom_call.1} parent=1 // pred_check_branch
      %2954 = sbr.rel (0) target = $region101
    $region100: #{tpu_custom_call.1} parent=1 // pred_region
      %s2956 = ssub.s32 128, 128
      %2957 = vsyncadd [#allocation22], %s2956
      %s2959 = sshll.u32 [#allocation23], 4
      %s2960 = int_to_ptr.vmem [resolvable:$true] %s2959
      %2962 = dma.vmem_to_hbm [thread:$0]  %s2960, 128, %s15, [#allocation22]
    $region101: #{tpu_custom_call.1} parent=1 // pred_fallthru
      _
    // Predicated region
    $region102: #{tpu_custom_call.1} parent=1 // pred_check
      _
    $region103: #{tpu_custom_call.1} parent=1 // pred_check_branch
      %2964 = sbr.rel (0) target = $region105
    $region104: #{tpu_custom_call.1} parent=1 // pred_region
      %s2966 = ssub.s32 128, 128
      %2967 = vsyncadd [#allocation25], %s2966
      %s2969 = sshll.u32 [#allocation24], 4
      %s2970 = int_to_ptr.vmem [resolvable:$true] %s2969
      %2972 = dma.vmem_to_hbm [thread:$0]  %s2970, 128, %s16, [#allocation25]
    $region105: #{tpu_custom_call.1} parent=1 // pred_fallthru
      _
    // Predicated region
    $region106: #{tpu_custom_call.1} parent=1 // pred_check
      _
    $region107: #{tpu_custom_call.1} parent=1 // pred_check_branch
      %2974 = sbr.rel (0) target = $region109
    $region108: #{tpu_custom_call.1} parent=1 // pred_region
      %s2976 = ssub.s32 128, 128
      %2977 = vsyncadd [#allocation25], %s2976
      %s2979 = sshll.u32 [#allocation26], 4
      %s2980 = int_to_ptr.vmem [resolvable:$true] %s2979
      %2982 = dma.vmem_to_hbm [thread:$0]  %s2980, 128, %s17, [#allocation25]
    $region109: #{tpu_custom_call.1} parent=1 // pred_fallthru
      _
    // Predicated region
    $region110: #{tpu_custom_call.1} parent=1 // pred_check
      _
    $region111: #{tpu_custom_call.1} parent=1 // pred_check_branch
      %2984 = sbr.rel (0) target = $region113
    $region112: #{tpu_custom_call.1} parent=1 // pred_region
      %2985 = dma.done [#allocation10], 1024
    $region113: #{tpu_custom_call.1} parent=1 // pred_fallthru
      _
    // Predicated region
    $region114: #{tpu_custom_call.1} parent=1 // pred_check
      _
    $region115: #{tpu_custom_call.1} parent=1 // pred_check_branch
      %2987 = sbr.rel (0) target = $region117
    $region116: #{tpu_custom_call.1} parent=1 // pred_region
      %2988 = dma.done [#allocation22], 128
    $region117: #{tpu_custom_call.1} parent=1 // pred_fallthru
      _
    // Predicated region
    $region118: #{tpu_custom_call.1} parent=1 // pred_check
      _
    $region119: #{tpu_custom_call.1} parent=1 // pred_check_branch
      %2990 = sbr.rel (0) target = $region121
    $region120: #{tpu_custom_call.1} parent=1 // pred_region
      %2991 = dma.done [#allocation22], 128
    $region121: #{tpu_custom_call.1} parent=1 // pred_fallthru
      _
    // Predicated region
    $region122: #{tpu_custom_call.1} parent=1 // pred_check
      _
    $region123: #{tpu_custom_call.1} parent=1 // pred_check_branch
      %2993 = sbr.rel (0) target = $region125
    $region124: #{tpu_custom_call.1} parent=1 // pred_region
      %2994 = dma.done [#allocation25], 128
    $region125: #{tpu_custom_call.1} parent=1 // pred_fallthru
      _
    // Predicated region
    $region126: #{tpu_custom_call.1} parent=1 // pred_check
      _
    $region127: #{tpu_custom_call.1} parent=1 // pred_check_branch
      %2996 = sbr.rel (0) target = $region129
    $region128: #{tpu_custom_call.1} parent=1 // pred_region
      %2997 = dma.done [#allocation25], 128
    $region129: #{tpu_custom_call.1} parent=1 // pred_fallthru
      _
    %2998 = vsyncpa [#allocation9], 1
    %2999 = vsyncpa [#allocation12], 1
    %3000 = vsyncpa [#allocation15], 1
    %3001 = vsyncpa [#allocation18], 1
    %3002 = vsyncpa [#allocation10], 1
    %3003 = vsyncpa [#allocation22], 1
    %3004 = vsyncpa [#allocation25], 1

</llo_original>
